<compile_context>
chip_gen: v7x
topology: tpu7x:2x2x1
jax: 0.10.0
libtpu: 0.0.40
codegen_flags: <defaults>
</compile_context>

<pallas_src>
import functools
import math

import jax
import jax.numpy as jnp
from jax.experimental import pallas as pl
from jax.experimental.pallas import tpu as pltpu

# bf16 operands double MXU throughput on v6e/v7x and halve HBM/VMEM traffic.
# Accumulation stays f32 (preferred_element_type) and h/c state stays f32.
MATMUL_DTYPE = jnp.bfloat16

# Large negative gate preactivation: sigmoid -> 0, tanh -> -1, so a padded
# timestep leaves (h, c) exactly unchanged at zero and emits h == 0.
_NEUTRAL_GATE = -1e4


# ----------------------------------------------------------------------------
# Small helpers.
# ----------------------------------------------------------------------------
def _round_up(n, m):
    return ((n + m - 1) // m) * m


def _vmem_limit_bytes():
    """Generation-aware scoped-VMEM limit (<= 48 MiB on v7x, <= 56 MiB else)."""
    cap = 128 * 1024 * 1024
    try:
        info = pltpu.get_tpu_info()
        cap = int(getattr(info, "vmem_capacity_bytes", cap))
    except Exception:  # pragma: no cover - fall back to a safe default
        pass
    return int(min((cap * 3) // 4, 56 * 1024 * 1024))


_VMEM_LIMIT = _vmem_limit_bytes()


def _const_spec(shape):
    """BlockSpec for a block whose index never changes: single-buffered."""
    nd = len(shape)
    idx = lambda c: (0,) * nd
    try:
        return pl.BlockSpec(shape, idx, pipeline_mode=pl.Buffered(1))
    except (AttributeError, TypeError):
        # Older JAX without pipeline_mode / Buffered: fall back (just 2x VMEM).
        return pl.BlockSpec(shape, idx)


def _pick_time_chunk(T, max_chunk=32):
    """Return (TS, Tp): timesteps per grid step and padded sequence length."""
    best = 1
    for ts in range(min(T, max_chunk), 0, -1):
        if T % ts == 0:
            best = ts
            break
    if T <= max_chunk or best >= max(1, max_chunk // 4):
        return best, T
    # Awkward T (e.g. prime): pad up to a multiple of max_chunk instead of
    # degrading to a tiny chunk.
    ts = max_chunk
    return ts, _round_up(T, ts)


def _pad_time(g, Tp):
    """Pad gate tensor (T, B, G) along time with neutral gate preactivations."""
    T = g.shape[0]
    if Tp == T:
        return g
    pad = jnp.full((Tp - T,) + g.shape[1:], _NEUTRAL_GATE, g.dtype)
    return jnp.concatenate([g, pad], axis=0)


# ----------------------------------------------------------------------------
# Pallas kernel: batched input projection  gates = sum_p x_p @ W_p + b
# (time-independent -> one big MXU-friendly GEMM over all T*B rows).
# ----------------------------------------------------------------------------
def _proj_kernel(n_parts, *refs):
    x_refs = refs[:n_parts]
    w_refs = refs[n_parts:2 * n_parts]
    b_ref = refs[2 * n_parts]
    out_ref = refs[2 * n_parts + 1]

    acc = jnp.dot(x_refs[0][...].astype(MATMUL_DTYPE),
                  w_refs[0][...].astype(MATMUL_DTYPE),
                  preferred_element_type=jnp.float32)
    for p in range(1, n_parts):
        acc = acc + jnp.dot(x_refs[p][...].astype(MATMUL_DTYPE),
                            w_refs[p][...].astype(MATMUL_DTYPE),
                            preferred_element_type=jnp.float32)
    out_ref[...] = (acc + b_ref[...]).astype(out_ref.dtype)  # (1, G) bias bcast


def input_projection(parts, weights, bias):
    """parts[p]: (N, D_p); weights[p]: (D_p, G); bias: (1, G) -> (N, G) bf16."""
    n = len(parts)
    N = parts[0].shape[0]
    G = bias.shape[1]

    RB = min(_round_up(N, 8), 512)        # lane/sublane friendly row block
    Np = _round_up(N, RB)                 # pad rows instead of full-N fallback
    if Np != N:
        parts = [jnp.pad(p, ((0, Np - N), (0, 0))) for p in parts]

    in_specs = (
        [pl.BlockSpec((RB, p.shape[1]), lambda r: (r, 0)) for p in parts]
        + [_const_spec((w.shape[0], G)) for w in weights]
        + [_const_spec((1, G))]
    )
    out = pl.pallas_call(
        functools.partial(_proj_kernel, n),
        out_shape=jax.ShapeDtypeStruct((Np, G), MATMUL_DTYPE),
        grid_spec=pltpu.PrefetchScalarGridSpec(
            num_scalar_prefetch=0,
            grid=(Np // RB,),
            in_specs=in_specs,
            out_specs=pl.BlockSpec((RB, G), lambda r: (r, 0)),
        ),
        compiler_params=pltpu.CompilerParams(
            dimension_semantics=("parallel",),
            vmem_limit_bytes=_VMEM_LIMIT),
    )(*parts, *weights, bias)
    return out[:N]


# ----------------------------------------------------------------------------
# LSTM cell (gates precomputed from x; only h @ W_hh + elementwise here).
# Gate column order is [i, f, o, g]: one sigmoid over 3H cols + one tanh.
# ----------------------------------------------------------------------------
def _lstm_cell(g_x, h, c, w_hh, H):
    gates = g_x.astype(jnp.float32) + jnp.dot(
        h.astype(w_hh.dtype), w_hh, preferred_element_type=jnp.float32)
    sig = jax.nn.sigmoid(gates[:, :3 * H])
    g_g = jnp.tanh(gates[:, 3 * H:])
    i_g = sig[:, 0 * H:1 * H]
    f_g = sig[:, 1 * H:2 * H]
    o_g = sig[:, 2 * H:3 * H]
    c_new = f_g * c + i_g * g_g
    h_new = o_g * jnp.tanh(c_new)
    return h_new, c_new


# ----------------------------------------------------------------------------
# Fused bidirectional recurrence: both directions in one sweep, reversed
# index_maps for the backward direction (no flips), TS timesteps per step.
# ----------------------------------------------------------------------------
def _bilstm_kernel(gf_ref, gb_ref, whf_ref, whb_ref, yf_ref, yb_ref,
                   hf_sc, cf_sc, hb_sc, cb_sc):
    @pl.when(pl.program_id(0) == 0)
    def _():
        hf_sc[...] = jnp.zeros_like(hf_sc)
        cf_sc[...] = jnp.zeros_like(cf_sc)
        hb_sc[...] = jnp.zeros_like(hb_sc)
        cb_sc[...] = jnp.zeros_like(cb_sc)

    TS = gf_ref.shape[0]
    H = hf_sc.shape[1]
    w_f = whf_ref[...]
    w_b = whb_ref[...]

    h_f, c_f = hf_sc[...], cf_sc[...]
    h_b, c_b = hb_sc[...], cb_sc[...]
    for s in range(TS):                      # static unroll over the chunk
        # forward direction: local time s
        h_f, c_f = _lstm_cell(gf_ref[s], h_f, c_f, w_f, H)
        yf_ref[s] = h_f.astype(yf_ref.dtype)
        # backward direction: local time TS-1-s of the (reversed-order) chunk
        sb = TS - 1 - s
        h_b, c_b = _lstm_cell(gb_ref[sb], h_b, c_b, w_b, H)
        yb_ref[sb] = h_b.astype(yb_ref.dtype)

    hf_sc[...], cf_sc[...] = h_f, c_f
    hb_sc[...], cb_sc[...] = h_b, c_b


def bilstm_recurrence(gates, whh_f, whh_b, H, TS):
    """gates: (Tp, B, 8H) [cols :4H fwd, 4H: bwd] -> (y_f, y_b), each (Tp,B,H)."""
    Tp, B, _ = gates.shape
    G = 4 * H
    Tc = Tp // TS
    y_shape = jax.ShapeDtypeStruct((Tp, B, H), MATMUL_DTYPE)
    return pl.pallas_call(
        _bilstm_kernel,
        out_shape=(y_shape, y_shape),
        grid_spec=pltpu.PrefetchScalarGridSpec(
            num_scalar_prefetch=0,
            grid=(Tc,),
            in_specs=[
                # forward gates view (column block 0), chunk c
                pl.BlockSpec((TS, B, G), lambda c: (c, 0, 0)),
                # backward gates view (column block 1), reversed chunk order
                pl.BlockSpec((TS, B, G), lambda c: (Tc - 1 - c, 0, 1)),
                _const_spec((H, G)),
                _const_spec((H, G)),
            ],
            out_specs=[
                pl.BlockSpec((TS, B, H), lambda c: (c, 0, 0)),
                pl.BlockSpec((TS, B, H), lambda c: (Tc - 1 - c, 0, 0)),
            ],
            scratch_shapes=[pltpu.VMEM((B, H), jnp.float32)] * 4,
        ),
        compiler_params=pltpu.CompilerParams(
            dimension_semantics=("arbitrary",),   # recurrent over time
            vmem_limit_bytes=_VMEM_LIMIT),
    )(gates, gates, whh_f, whh_b)


# ----------------------------------------------------------------------------
# Unidirectional recurrence (layer 3) with the output heads fused in:
# out[t] = sigmoid(h_t @ W_heads + b_heads), W_heads zero-padded lane-dense.
# ----------------------------------------------------------------------------
def _lstm_heads_kernel(g_ref, whh_ref, wh_ref, bh_ref, out_ref, h_sc, c_sc):
    @pl.when(pl.program_id(0) == 0)
    def _():
        h_sc[...] = jnp.zeros_like(h_sc)
        c_sc[...] = jnp.zeros_like(c_sc)

    TS = g_ref.shape[0]
    H = h_sc.shape[1]
    w_hh = whh_ref[...]
    w_h = wh_ref[...]
    b_h = bh_ref[...]

    h, cst = h_sc[...], c_sc[...]
    for s in range(TS):
        h, cst = _lstm_cell(g_ref[s], h, cst, w_hh, H)
        out_ref[s] = jax.nn.sigmoid(
            jnp.dot(h.astype(w_h.dtype), w_h, preferred_element_type=jnp.float32)
            + b_h).astype(out_ref.dtype)
    h_sc[...], c_sc[...] = h, cst


def lstm_heads_recurrence(gates, whh, w_heads, b_heads, H, TS):
    """gates: (Tp, B, 4H) -> sigmoid head outputs (Tp, B, O_pad) in f32."""
    Tp, B, G = gates.shape
    O = w_heads.shape[1]
    Tc = Tp // TS
    return pl.pallas_call(
        _lstm_heads_kernel,
        out_shape=jax.ShapeDtypeStruct((Tp, B, O), jnp.float32),
        grid_spec=pltpu.PrefetchScalarGridSpec(
            num_scalar_prefetch=0,
            grid=(Tc,),
            in_specs=[
                pl.BlockSpec((TS, B, G), lambda c: (c, 0, 0)),
                _const_spec((H, G)),
                _const_spec((H, O)),
                _const_spec((1, O)),
            ],
            out_specs=pl.BlockSpec((TS, B, O), lambda c: (c, 0, 0)),
            scratch_shapes=[pltpu.VMEM((B, H), jnp.float32)] * 2,
        ),
        compiler_params=pltpu.CompilerParams(
            dimension_semantics=("arbitrary",),
            vmem_limit_bytes=_VMEM_LIMIT),
    )(gates, whh, w_heads, b_heads)


# ----------------------------------------------------------------------------
# Parameters (PyTorch-style U(-1/sqrt(H), 1/sqrt(H)); bias = b_ih + b_hh).
# Stored transposed vs PyTorch, gate order converted [i,f,g,o] -> [i,f,o,g],
# matmul weights in bf16, biases in f32.
# ----------------------------------------------------------------------------
def _reorder_gates(w):
    i, f, g, o = jnp.split(w, 4, axis=-1)
    return jnp.concatenate([i, f, o, g], axis=-1)


def _lstm_dir_weights(key, d_in, H):
    k = 1.0 / math.sqrt(H)
    k1, k2, k3, k4 = jax.random.split(key, 4)
    w_ih = jax.random.uniform(k1, (d_in, 4 * H), jnp.float32, -k, k)
    w_hh = jax.random.uniform(k2, (H, 4 * H), jnp.float32, -k, k)
    b = (jax.random.uniform(k3, (1, 4 * H), jnp.float32, -k, k)
         + jax.random.uniform(k4, (1, 4 * H), jnp.float32, -k, k))
    return _reorder_gates(w_ih), _reorder_gates(w_hh), _reorder_gates(b)


def init_params(key, input_size, hidden_size):
    I, H = input_size, hidden_size
    # H % 128 == 0 recommended in production (lane-aligned gate slices);
    # H % 32 == 0 is the hard requirement for legal TPU tiling here.
    assert H % 32 == 0, "hidden_size must be a multiple of 32 for TPU tiling"
    keys = jax.random.split(key, 9)
    k = 1.0 / math.sqrt(H)
    mm = MATMUL_DTYPE

    w1f, whh1f, b1f = _lstm_dir_weights(keys[0], 2 * I, H)   # lstm1 fwd
    w1b, whh1b, b1b = _lstm_dir_weights(keys[1], 2 * I, H)   # lstm1 bwd
    w2f, whh2f, b2f = _lstm_dir_weights(keys[2], 2 * H, H)   # lstm2 fwd
    w2b, whh2b, b2b = _lstm_dir_weights(keys[3], 2 * H, H)   # lstm2 bwd
    w3, whh3, b3 = _lstm_dir_weights(keys[4], 2 * H, H)      # lstm3

    w_note = jax.random.uniform(keys[5], (H, I), jnp.float32, -k, k)
    b_note = jax.random.uniform(keys[6], (1, I), jnp.float32, -k, k)
    w_vel = jax.random.uniform(keys[7], (H, I), jnp.float32, -k, k)
    b_vel = jax.random.uniform(keys[8], (1, I), jnp.float32, -k, k)

    # fused output heads, zero-padded to a lane-dense multiple of 128 columns
    O = 2 * I
    O_pad = max(128, _round_up(O, 128))
    w_heads = jnp.pad(jnp.concatenate([w_note, w_vel], axis=1),
                      ((0, 0), (0, O_pad - O))).astype(mm)           # (H, O_pad)
    b_heads = jnp.pad(jnp.concatenate([b_note, b_vel], axis=1),
                      ((0, 0), (0, O_pad - O)))                       # (1, O_pad)

    return {
        "input_size": I,
        "hidden_size": H,
        # layer 1 (bidirectional): both directions' input weights fused (2I, 8H)
        "l1_wih": jnp.concatenate([w1f, w1b], axis=1).astype(mm),
        "l1_b": jnp.concatenate([b1f, b1b], axis=1),
        "l1_whh_f": whh1f.astype(mm), "l1_whh_b": whh1b.astype(mm),
        # layer 2: input weights split by which half (fwd/bwd) of y1 they multiply
        "l2_wih_p0": jnp.concatenate([w2f[:H], w2b[:H]], axis=1).astype(mm),
        "l2_wih_p1": jnp.concatenate([w2f[H:], w2b[H:]], axis=1).astype(mm),
        "l2_b": jnp.concatenate([b2f, b2b], axis=1),
        "l2_whh_f": whh2f.astype(mm), "l2_whh_b": whh2b.astype(mm),
        # layer 3 (unidirectional)
        "l3_wih_p0": w3[:H].astype(mm), "l3_wih_p1": w3[H:].astype(mm),
        "l3_b": b3,
        "l3_whh": whh3.astype(mm),
        # fused + padded output heads
        "w_heads": w_heads,
        "b_heads": b_heads,
    }


# ----------------------------------------------------------------------------
# Full forward pass (mirrors MusicLSTM.forward; dropout = identity in eval).
# NOTE: for best recurrence utilization pad/batch B up to the sublane width
# (>=16 for bf16) on the caller side; kept as-is here for fidelity.
# ----------------------------------------------------------------------------
def music_lstm_forward(params, x):
    I = params["input_size"]
    H = params["hidden_size"]
    B, T, _ = x.shape
    TS, Tp = _pick_time_chunk(T)

    # split + re-cat (identity, kept for fidelity with the PyTorch code)
    notes, velocities = x[:, :, :I], x[:, :, I:]
    x = jnp.concatenate([notes, velocities], axis=-1)

    xt = jnp.transpose(x, (1, 0, 2))                         # (T, B, 2I) time-major
    x_flat = xt.reshape(T * B, 2 * I).astype(MATMUL_DTYPE)

    # ---- lstm1 (bidirectional): hoisted projection + fused bidir recurrence
    g1 = input_projection([x_flat], [params["l1_wih"]], params["l1_b"])
    g1 = _pad_time(g1.reshape(T, B, 8 * H), Tp)
    y1f, y1b = bilstm_recurrence(g1, params["l1_whh_f"], params["l1_whh_b"], H, TS)
    y1f = y1f[:T].reshape(T * B, H)
    y1b = y1b[:T].reshape(T * B, H)
    # dropout1: identity (eval mode)

    # ---- lstm2 (bidirectional): consumes fwd/bwd halves directly (no concat)
    g2 = input_projection([y1f, y1b],
                          [params["l2_wih_p0"], params["l2_wih_p1"]],
                          params["l2_b"])
    g2 = _pad_time(g2.reshape(T, B, 8 * H), Tp)
    y2f, y2b = bilstm_recurrence(g2, params["l2_whh_f"], params["l2_whh_b"], H, TS)
    y2f = y2f[:T].reshape(T * B, H)
    y2b = y2b[:T].reshape(T * B, H)
    # dropout2: identity (eval mode)

    # ---- lstm3 (unidirectional) with the sigmoid output heads fused in
    g3 = input_projection([y2f, y2b],
                          [params["l3_wih_p0"], params["l3_wih_p1"]],
                          params["l3_b"])
    g3 = _pad_time(g3.reshape(T, B, 4 * H), Tp)
    out = lstm_heads_recurrence(g3, params["l3_whh"],
                                params["w_heads"], params["b_heads"], H, TS)
    # dropout3: identity (eval mode)

    out = out[:T, :, :2 * I].transpose(1, 0, 2)              # (B, T, 2I)
    return out[:, :, :I], out[:, :, I:]


if __name__ == "__main__":
    # Small shapes consistent with the module: input_size=8 -> x features = 16
    INPUT_SIZE = 8
    HIDDEN = 32
    B, T = 2, 8

    key = jax.random.PRNGKey(0)
    k_param, k_x = jax.random.split(key)
    params = init_params(k_param, INPUT_SIZE, HIDDEN)
    x = jax.random.normal(k_x, (B, T, 2 * INPUT_SIZE), jnp.float32)

    fwd = jax.jit(functools.partial(music_lstm_forward, params))
    note_out, vel_out = fwd(x)
    jax.block_until_ready((note_out, vel_out))

    assert note_out.shape == (B, T, INPUT_SIZE)
    assert vel_out.shape == (B, T, INPUT_SIZE)
    assert bool(jnp.all(jnp.isfinite(note_out)))
    assert bool(jnp.all(jnp.isfinite(vel_out)))
    assert bool(jnp.all((note_out >= 0) & (note_out <= 1)))
    assert bool(jnp.all((vel_out >= 0) & (vel_out <= 1)))
    print("KERNEL_OK")
</pallas_src>

<mosaic_0001>
module attributes {stable_mosaic.version = 11 : i64} {
  func.func @_proj_kernel(%arg0: i32, %arg1: memref<16x16xbf16, #tpu.memory_space<vmem>>, %arg2: memref<16x256xbf16, #tpu.memory_space<vmem>>, %arg3: memref<1x256xf32, #tpu.memory_space<vmem>>, %arg4: memref<16x256xbf16, #tpu.memory_space<vmem>>) attributes {dimension_semantics = [#tpu.dimension_semantics<parallel>], iteration_bounds = array<i64: 1>, scalar_prefetch = 0 : i64, scratch_operands = 0 : i64, tpu.core_type = #tpu.core_type<tc>, window_params = [{transform_indices = @transform_0, window_bounds = array<i64: 16, 16>}, {pipeline_mode = #tpu.pipeline_mode<synchronous>, transform_indices = @transform_1, window_bounds = array<i64: 16, 256>}, {pipeline_mode = #tpu.pipeline_mode<synchronous>, transform_indices = @transform_2, window_bounds = array<i64: 1, 256>}, {transform_indices = @transform_3, window_bounds = array<i64: 16, 256>}]} {
    %c0 = arith.constant 0 : index
    %c0_0 = arith.constant 0 : index
    %0 = vector.load %arg1[%c0, %c0_0] : memref<16x16xbf16, #tpu.memory_space<vmem>>, vector<16x16xbf16>
    %c0_1 = arith.constant 0 : index
    %c0_2 = arith.constant 0 : index
    %1 = vector.load %arg2[%c0_1, %c0_2] : memref<16x256xbf16, #tpu.memory_space<vmem>>, vector<16x256xbf16>
    %cst = arith.constant dense<0.000000e+00> : vector<16x256xf32>
    %2 = tpu.matmul %0, %1, %cst {dimension_numbers = #tpu.dot_dimension_numbers<[1], [0], [0], [1], [0, 0, 1, 1], [], []>} : vector<16x16xbf16>, vector<16x256xbf16>, vector<16x256xf32> -> vector<16x256xf32>
    %c0_3 = arith.constant 0 : index
    %c0_4 = arith.constant 0 : index
    %3 = vector.load %arg3[%c0_3, %c0_4] : memref<1x256xf32, #tpu.memory_space<vmem>>, vector<1x256xf32>
    %4 = vector.broadcast %3 : vector<1x256xf32> to vector<16x256xf32>
    %5 = arith.addf %2, %4 : vector<16x256xf32>
    %6 = arith.truncf %5 : vector<16x256xf32> to vector<16x256xbf16>
    %c0_5 = arith.constant 0 : index
    %c0_6 = arith.constant 0 : index
    %7 = vector.load %arg4[%c0_5, %c0_6] : memref<16x256xbf16, #tpu.memory_space<vmem>>, vector<16x256xbf16>
    tpu.vector_store %arg4[%c0_5, %c0_6], %6 {strides = array<i32>} : memref<16x256xbf16, #tpu.memory_space<vmem>>, vector<16x256xbf16>,
    return
  }
  func.func @transform_0(%arg0: i32) -> (i32, i32) {
    %c0_i32 = arith.constant 0 : i32
    %c0_i32_0 = arith.constant 0 : i32
    return %arg0, %c0_i32 : i32, i32
  }
  func.func @transform_1(%arg0: i32) -> (i32, i32) {
    %c0_i32 = arith.constant 0 : i32
    %c0_i32_0 = arith.constant 0 : i32
    %c0_i32_1 = arith.constant 0 : i32
    return %c0_i32, %c0_i32_0 : i32, i32
  }
  func.func @transform_2(%arg0: i32) -> (i32, i32) {
    %c0_i32 = arith.constant 0 : i32
    %c0_i32_0 = arith.constant 0 : i32
    %c0_i32_1 = arith.constant 0 : i32
    return %c0_i32, %c0_i32_0 : i32, i32
  }
  func.func @transform_3(%arg0: i32) -> (i32, i32) {
    %c0_i32 = arith.constant 0 : i32
    %c0_i32_0 = arith.constant 0 : i32
    return %arg0, %c0_i32 : i32, i32
  }
}

module attributes {stable_mosaic.version = 11 : i64} {
  func.func @_proj_kernel(%arg0: i32, %arg1: memref<16x32xbf16, #tpu.memory_space<vmem>>, %arg2: memref<16x32xbf16, #tpu.memory_space<vmem>>, %arg3: memref<32x256xbf16, #tpu.memory_space<vmem>>, %arg4: memref<32x256xbf16, #tpu.memory_space<vmem>>, %arg5: memref<1x256xf32, #tpu.memory_space<vmem>>, %arg6: memref<16x256xbf16, #tpu.memory_space<vmem>>) attributes {dimension_semantics = [#tpu.dimension_semantics<parallel>], iteration_bounds = array<i64: 1>, scalar_prefetch = 0 : i64, scratch_operands = 0 : i64, tpu.core_type = #tpu.core_type<tc>, window_params = [{transform_indices = @transform_0, window_bounds = array<i64: 16, 32>}, {transform_indices = @transform_1, window_bounds = array<i64: 16, 32>}, {pipeline_mode = #tpu.pipeline_mode<synchronous>, transform_indices = @transform_2, window_bounds = array<i64: 32, 256>}, {pipeline_mode = #tpu.pipeline_mode<synchronous>, transform_indices = @transform_3, window_bounds = array<i64: 32, 256>}, {pipeline_mode = #tpu.pipeline_mode<synchronous>, transform_indices = @transform_4, window_bounds = array<i64: 1, 256>}, {transform_indices = @transform_5, window_bounds = array<i64: 16, 256>}]} {
    %c0 = arith.constant 0 : index
    %c0_0 = arith.constant 0 : index
    %0 = vector.load %arg1[%c0, %c0_0] : memref<16x32xbf16, #tpu.memory_space<vmem>>, vector<16x32xbf16>
    %c0_1 = arith.constant 0 : index
    %c0_2 = arith.constant 0 : index
    %1 = vector.load %arg3[%c0_1, %c0_2] : memref<32x256xbf16, #tpu.memory_space<vmem>>, vector<32x256xbf16>
    %cst = arith.constant dense<0.000000e+00> : vector<16x256xf32>
    %2 = tpu.matmul %0, %1, %cst {dimension_numbers = #tpu.dot_dimension_numbers<[1], [0], [0], [1], [0, 0, 1, 1], [], []>} : vector<16x32xbf16>, vector<32x256xbf16>, vector<16x256xf32> -> vector<16x256xf32>
    %c0_3 = arith.constant 0 : index
    %c0_4 = arith.constant 0 : index
    %3 = vector.load %arg2[%c0_3, %c0_4] : memref<16x32xbf16, #tpu.memory_space<vmem>>, vector<16x32xbf16>
    %c0_5 = arith.constant 0 : index
    %c0_6 = arith.constant 0 : index
    %4 = vector.load %arg4[%c0_5, %c0_6] : memref<32x256xbf16, #tpu.memory_space<vmem>>, vector<32x256xbf16>
    %cst_7 = arith.constant dense<0.000000e+00> : vector<16x256xf32>
    %5 = tpu.matmul %3, %4, %cst_7 {dimension_numbers = #tpu.dot_dimension_numbers<[1], [0], [0], [1], [0, 0, 1, 1], [], []>} : vector<16x32xbf16>, vector<32x256xbf16>, vector<16x256xf32> -> vector<16x256xf32>
    %6 = arith.addf %2, %5 : vector<16x256xf32>
    %c0_8 = arith.constant 0 : index
    %c0_9 = arith.constant 0 : index
    %7 = vector.load %arg5[%c0_8, %c0_9] : memref<1x256xf32, #tpu.memory_space<vmem>>, vector<1x256xf32>
    %8 = vector.broadcast %7 : vector<1x256xf32> to vector<16x256xf32>
    %9 = arith.addf %6, %8 : vector<16x256xf32>
    %10 = arith.truncf %9 : vector<16x256xf32> to vector<16x256xbf16>
    %c0_10 = arith.constant 0 : index
    %c0_11 = arith.constant 0 : index
    %11 = vector.load %arg6[%c0_10, %c0_11] : memref<16x256xbf16, #tpu.memory_space<vmem>>, vector<16x256xbf16>
    tpu.vector_store %arg6[%c0_10, %c0_11], %10 {strides = array<i32>} : memref<16x256xbf16, #tpu.memory_space<vmem>>, vector<16x256xbf16>,
    return
  }
  func.func @transform_0(%arg0: i32) -> (i32, i32) {
    %c0_i32 = arith.constant 0 : i32
    %c0_i32_0 = arith.constant 0 : i32
    return %arg0, %c0_i32 : i32, i32
  }
  func.func @transform_1(%arg0: i32) -> (i32, i32) {
    %c0_i32 = arith.constant 0 : i32
    %c0_i32_0 = arith.constant 0 : i32
    return %arg0, %c0_i32 : i32, i32
  }
  func.func @transform_2(%arg0: i32) -> (i32, i32) {
    %c0_i32 = arith.constant 0 : i32
    %c0_i32_0 = arith.constant 0 : i32
    %c0_i32_1 = arith.constant 0 : i32
    return %c0_i32, %c0_i32_0 : i32, i32
  }
  func.func @transform_3(%arg0: i32) -> (i32, i32) {
    %c0_i32 = arith.constant 0 : i32
    %c0_i32_0 = arith.constant 0 : i32
    %c0_i32_1 = arith.constant 0 : i32
    return %c0_i32, %c0_i32_0 : i32, i32
  }
  func.func @transform_4(%arg0: i32) -> (i32, i32) {
    %c0_i32 = arith.constant 0 : i32
    %c0_i32_0 = arith.constant 0 : i32
    %c0_i32_1 = arith.constant 0 : i32
    return %c0_i32, %c0_i32_0 : i32, i32
  }
  func.func @transform_5(%arg0: i32) -> (i32, i32) {
    %c0_i32 = arith.constant 0 : i32
    %c0_i32_0 = arith.constant 0 : i32
    return %arg0, %c0_i32 : i32, i32
  }
}

module attributes {stable_mosaic.version = 11 : i64} {
  func.func @_bilstm_kernel(%arg0: i32, %arg1: memref<8x2x128xbf16, #tpu.memory_space<vmem>>, %arg2: memref<8x2x128xbf16, #tpu.memory_space<vmem>>, %arg3: memref<32x128xbf16, #tpu.memory_space<vmem>>, %arg4: memref<32x128xbf16, #tpu.memory_space<vmem>>, %arg5: memref<8x2x32xbf16, #tpu.memory_space<vmem>>, %arg6: memref<8x2x32xbf16, #tpu.memory_space<vmem>>, %arg7: memref<2x32xf32, #tpu.memory_space<vmem>>, %arg8: memref<2x32xf32, #tpu.memory_space<vmem>>, %arg9: memref<2x32xf32, #tpu.memory_space<vmem>>, %arg10: memref<2x32xf32, #tpu.memory_space<vmem>>) attributes {dimension_semantics = [#tpu.dimension_semantics<arbitrary>], iteration_bounds = array<i64: 1>, scalar_prefetch = 0 : i64, scratch_operands = 4 : i64, tpu.core_type = #tpu.core_type<tc>, window_params = [{transform_indices = @transform_0, window_bounds = array<i64: 8, 2, 128>}, {transform_indices = @transform_1, window_bounds = array<i64: 8, 2, 128>}, {pipeline_mode = #tpu.pipeline_mode<synchronous>, transform_indices = @transform_2, window_bounds = array<i64: 32, 128>}, {pipeline_mode = #tpu.pipeline_mode<synchronous>, transform_indices = @transform_3, window_bounds = array<i64: 32, 128>}, {transform_indices = @transform_4, window_bounds = array<i64: 8, 2, 32>}, {transform_indices = @transform_5, window_bounds = array<i64: 8, 2, 32>}]} {
    %c0_i32 = arith.constant 0 : i32
    %0 = arith.cmpi eq, %arg0, %c0_i32 : i32
    %1 = arith.extui %0 : i1 to i32
    %c0_i32_0 = arith.constant 0 : i32
    %2 = arith.cmpi ne, %1, %c0_i32_0 : i32
    scf.if %2 {
      %cst_140 = arith.constant 0.000000e+00 : f32
      %429 = vector.broadcast %cst_140 : f32 to vector<2x32xf32>
      %c0_141 = arith.constant 0 : index
      %c0_142 = arith.constant 0 : index
      %430 = vector.load %arg7[%c0_141, %c0_142] : memref<2x32xf32, #tpu.memory_space<vmem>>, vector<2x32xf32>
      tpu.vector_store %arg7[%c0_141, %c0_142], %429 {strides = array<i32>} : memref<2x32xf32, #tpu.memory_space<vmem>>, vector<2x32xf32>,
      %cst_143 = arith.constant 0.000000e+00 : f32
      %431 = vector.broadcast %cst_143 : f32 to vector<2x32xf32>
      %c0_144 = arith.constant 0 : index
      %c0_145 = arith.constant 0 : index
      %432 = vector.load %arg8[%c0_144, %c0_145] : memref<2x32xf32, #tpu.memory_space<vmem>>, vector<2x32xf32>
      tpu.vector_store %arg8[%c0_144, %c0_145], %431 {strides = array<i32>} : memref<2x32xf32, #tpu.memory_space<vmem>>, vector<2x32xf32>,
      %cst_146 = arith.constant 0.000000e+00 : f32
      %433 = vector.broadcast %cst_146 : f32 to vector<2x32xf32>
      %c0_147 = arith.constant 0 : index
      %c0_148 = arith.constant 0 : index
      %434 = vector.load %arg9[%c0_147, %c0_148] : memref<2x32xf32, #tpu.memory_space<vmem>>, vector<2x32xf32>
      tpu.vector_store %arg9[%c0_147, %c0_148], %433 {strides = array<i32>} : memref<2x32xf32, #tpu.memory_space<vmem>>, vector<2x32xf32>,
      %cst_149 = arith.constant 0.000000e+00 : f32
      %435 = vector.broadcast %cst_149 : f32 to vector<2x32xf32>
      %c0_150 = arith.constant 0 : index
      %c0_151 = arith.constant 0 : index
      %436 = vector.load %arg10[%c0_150, %c0_151] : memref<2x32xf32, #tpu.memory_space<vmem>>, vector<2x32xf32>
      tpu.vector_store %arg10[%c0_150, %c0_151], %435 {strides = array<i32>} : memref<2x32xf32, #tpu.memory_space<vmem>>, vector<2x32xf32>,
    } else {
    }
    %c0 = arith.constant 0 : index
    %c0_1 = arith.constant 0 : index
    %3 = vector.load %arg3[%c0, %c0_1] : memref<32x128xbf16, #tpu.memory_space<vmem>>, vector<32x128xbf16>
    %c0_2 = arith.constant 0 : index
    %c0_3 = arith.constant 0 : index
    %4 = vector.load %arg4[%c0_2, %c0_3] : memref<32x128xbf16, #tpu.memory_space<vmem>>, vector<32x128xbf16>
    %c0_4 = arith.constant 0 : index
    %c0_5 = arith.constant 0 : index
    %5 = vector.load %arg7[%c0_4, %c0_5] : memref<2x32xf32, #tpu.memory_space<vmem>>, vector<2x32xf32>
    %c0_6 = arith.constant 0 : index
    %c0_7 = arith.constant 0 : index
    %6 = vector.load %arg8[%c0_6, %c0_7] : memref<2x32xf32, #tpu.memory_space<vmem>>, vector<2x32xf32>
    %c0_8 = arith.constant 0 : index
    %c0_9 = arith.constant 0 : index
    %7 = vector.load %arg9[%c0_8, %c0_9] : memref<2x32xf32, #tpu.memory_space<vmem>>, vector<2x32xf32>
    %c0_10 = arith.constant 0 : index
    %c0_11 = arith.constant 0 : index
    %8 = vector.load %arg10[%c0_10, %c0_11] : memref<2x32xf32, #tpu.memory_space<vmem>>, vector<2x32xf32>
    %c0_12 = arith.constant 0 : index
    %c0_13 = arith.constant 0 : index
    %c0_14 = arith.constant 0 : index
    %9 = vector.load %arg1[%c0_12, %c0_13, %c0_14] : memref<8x2x128xbf16, #tpu.memory_space<vmem>>, vector<1x2x128xbf16>
    %10 = vector.shape_cast %9 : vector<1x2x128xbf16> to vector<2x128xbf16>
    %11 = arith.extf %10 : vector<2x128xbf16> to vector<2x128xf32>
    %12 = arith.truncf %5 : vector<2x32xf32> to vector<2x32xbf16>
    %cst = arith.constant dense<0.000000e+00> : vector<2x128xf32>
    %13 = tpu.matmul %12, %3, %cst {dimension_numbers = #tpu.dot_dimension_numbers<[1], [0], [0], [1], [0, 0, 1, 1], [], []>} : vector<2x32xbf16>, vector<32x128xbf16>, vector<2x128xf32> -> vector<2x128xf32>
    %14 = arith.addf %11, %13 : vector<2x128xf32>
    %15 = vector.extract_strided_slice %14 {offsets = [0, 0], sizes = [2, 96], strides = [1, 1]} : vector<2x128xf32> to vector<2x96xf32>
    %16 = arith.negf %15 : vector<2x96xf32>
    %17 = math.exp %16 : vector<2x96xf32>
    %cst_15 = arith.constant 1.000000e+00 : f32
    %18 = vector.broadcast %cst_15 : f32 to vector<2x96xf32>
    %19 = arith.addf %18, %17 : vector<2x96xf32>
    %20 = arith.divf %18, %19 : vector<2x96xf32>
    %21 = vector.extract_strided_slice %14 {offsets = [0, 96], sizes = [2, 32], strides = [1, 1]} : vector<2x128xf32> to vector<2x32xf32>
    %22 = math.tanh %21 : vector<2x32xf32>
    %23 = vector.extract_strided_slice %20 {offsets = [0, 0], sizes = [2, 32], strides = [1, 1]} : vector<2x96xf32> to vector<2x32xf32>
    %24 = vector.extract_strided_slice %20 {offsets = [0, 32], sizes = [2, 32], strides = [1, 1]} : vector<2x96xf32> to vector<2x32xf32>
    %25 = vector.extract_strided_slice %20 {offsets = [0, 64], sizes = [2, 32], strides = [1, 1]} : vector<2x96xf32> to vector<2x32xf32>
    %26 = arith.mulf %24, %6 : vector<2x32xf32>
    %27 = arith.mulf %23, %22 : vector<2x32xf32>
    %28 = arith.addf %26, %27 : vector<2x32xf32>
    %29 = math.tanh %28 : vector<2x32xf32>
    %30 = arith.mulf %25, %29 : vector<2x32xf32>
    %31 = arith.truncf %30 : vector<2x32xf32> to vector<2x32xbf16>
    %c0_16 = arith.constant 0 : index
    %c0_17 = arith.constant 0 : index
    %c0_18 = arith.constant 0 : index
    %32 = vector.load %arg5[%c0_16, %c0_17, %c0_18] : memref<8x2x32xbf16, #tpu.memory_space<vmem>>, vector<1x2x32xbf16>
    %33 = vector.shape_cast %32 : vector<1x2x32xbf16> to vector<2x32xbf16>
    %34 = vector.shape_cast %31 : vector<2x32xbf16> to vector<1x2x32xbf16>
    tpu.vector_store %arg5[%c0_16, %c0_17, %c0_18], %34 {strides = array<i32>} : memref<8x2x32xbf16, #tpu.memory_space<vmem>>, vector<1x2x32xbf16>,
    %c7 = arith.constant 7 : index
    %c0_19 = arith.constant 0 : index
    %c0_20 = arith.constant 0 : index
    %35 = vector.load %arg2[%c7, %c0_19, %c0_20] : memref<8x2x128xbf16, #tpu.memory_space<vmem>>, vector<1x2x128xbf16>
    %36 = vector.shape_cast %35 : vector<1x2x128xbf16> to vector<2x128xbf16>
    %37 = arith.extf %36 : vector<2x128xbf16> to vector<2x128xf32>
    %38 = arith.truncf %7 : vector<2x32xf32> to vector<2x32xbf16>
    %cst_21 = arith.constant dense<0.000000e+00> : vector<2x128xf32>
    %39 = tpu.matmul %38, %4, %cst_21 {dimension_numbers = #tpu.dot_dimension_numbers<[1], [0], [0], [1], [0, 0, 1, 1], [], []>} : vector<2x32xbf16>, vector<32x128xbf16>, vector<2x128xf32> -> vector<2x128xf32>
    %40 = arith.addf %37, %39 : vector<2x128xf32>
    %41 = vector.extract_strided_slice %40 {offsets = [0, 0], sizes = [2, 96], strides = [1, 1]} : vector<2x128xf32> to vector<2x96xf32>
    %42 = arith.negf %41 : vector<2x96xf32>
    %43 = math.exp %42 : vector<2x96xf32>
    %cst_22 = arith.constant 1.000000e+00 : f32
    %44 = vector.broadcast %cst_22 : f32 to vector<2x96xf32>
    %45 = arith.addf %44, %43 : vector<2x96xf32>
    %46 = arith.divf %44, %45 : vector<2x96xf32>
    %47 = vector.extract_strided_slice %40 {offsets = [0, 96], sizes = [2, 32], strides = [1, 1]} : vector<2x128xf32> to vector<2x32xf32>
    %48 = math.tanh %47 : vector<2x32xf32>
    %49 = vector.extract_strided_slice %46 {offsets = [0, 0], sizes = [2, 32], strides = [1, 1]} : vector<2x96xf32> to vector<2x32xf32>
    %50 = vector.extract_strided_slice %46 {offsets = [0, 32], sizes = [2, 32], strides = [1, 1]} : vector<2x96xf32> to vector<2x32xf32>
    %51 = vector.extract_strided_slice %46 {offsets = [0, 64], sizes = [2, 32], strides = [1, 1]} : vector<2x96xf32> to vector<2x32xf32>
    %52 = arith.mulf %50, %8 : vector<2x32xf32>
    %53 = arith.mulf %49, %48 : vector<2x32xf32>
    %54 = arith.addf %52, %53 : vector<2x32xf32>
    %55 = math.tanh %54 : vector<2x32xf32>
    %56 = arith.mulf %51, %55 : vector<2x32xf32>
    %57 = arith.truncf %56 : vector<2x32xf32> to vector<2x32xbf16>
    %c7_23 = arith.constant 7 : index
    %c0_24 = arith.constant 0 : index
    %c0_25 = arith.constant 0 : index
    %58 = vector.load %arg6[%c7_23, %c0_24, %c0_25] : memref<8x2x32xbf16, #tpu.memory_space<vmem>>, vector<1x2x32xbf16>
    %59 = vector.shape_cast %58 : vector<1x2x32xbf16> to vector<2x32xbf16>
    %60 = vector.shape_cast %57 : vector<2x32xbf16> to vector<1x2x32xbf16>
    tpu.vector_store %arg6[%c7_23, %c0_24, %c0_25], %60 {strides = array<i32>} : memref<8x2x32xbf16, #tpu.memory_space<vmem>>, vector<1x2x32xbf16>,
    %c1 = arith.constant 1 : index
    %c0_26 = arith.constant 0 : index
    %c0_27 = arith.constant 0 : index
    %61 = vector.load %arg1[%c1, %c0_26, %c0_27] : memref<8x2x128xbf16, #tpu.memory_space<vmem>>, vector<1x2x128xbf16>
    %62 = vector.shape_cast %61 : vector<1x2x128xbf16> to vector<2x128xbf16>
    %63 = arith.extf %62 : vector<2x128xbf16> to vector<2x128xf32>
    %64 = arith.truncf %30 : vector<2x32xf32> to vector<2x32xbf16>
    %cst_28 = arith.constant dense<0.000000e+00> : vector<2x128xf32>
    %65 = tpu.matmul %64, %3, %cst_28 {dimension_numbers = #tpu.dot_dimension_numbers<[1], [0], [0], [1], [0, 0, 1, 1], [], []>} : vector<2x32xbf16>, vector<32x128xbf16>, vector<2x128xf32> -> vector<2x128xf32>
    %66 = arith.addf %63, %65 : vector<2x128xf32>
    %67 = vector.extract_strided_slice %66 {offsets = [0, 0], sizes = [2, 96], strides = [1, 1]} : vector<2x128xf32> to vector<2x96xf32>
    %68 = arith.negf %67 : vector<2x96xf32>
    %69 = math.exp %68 : vector<2x96xf32>
    %cst_29 = arith.constant 1.000000e+00 : f32
    %70 = vector.broadcast %cst_29 : f32 to vector<2x96xf32>
    %71 = arith.addf %70, %69 : vector<2x96xf32>
    %72 = arith.divf %70, %71 : vector<2x96xf32>
    %73 = vector.extract_strided_slice %66 {offsets = [0, 96], sizes = [2, 32], strides = [1, 1]} : vector<2x128xf32> to vector<2x32xf32>
    %74 = math.tanh %73 : vector<2x32xf32>
    %75 = vector.extract_strided_slice %72 {offsets = [0, 0], sizes = [2, 32], strides = [1, 1]} : vector<2x96xf32> to vector<2x32xf32>
    %76 = vector.extract_strided_slice %72 {offsets = [0, 32], sizes = [2, 32], strides = [1, 1]} : vector<2x96xf32> to vector<2x32xf32>
    %77 = vector.extract_strided_slice %72 {offsets = [0, 64], sizes = [2, 32], strides = [1, 1]} : vector<2x96xf32> to vector<2x32xf32>
    %78 = arith.mulf %76, %28 : vector<2x32xf32>
    %79 = arith.mulf %75, %74 : vector<2x32xf32>
    %80 = arith.addf %78, %79 : vector<2x32xf32>
    %81 = math.tanh %80 : vector<2x32xf32>
    %82 = arith.mulf %77, %81 : vector<2x32xf32>
    %83 = arith.truncf %82 : vector<2x32xf32> to vector<2x32xbf16>
    %c1_30 = arith.constant 1 : index
    %c0_31 = arith.constant 0 : index
    %c0_32 = arith.constant 0 : index
    %84 = vector.load %arg5[%c1_30, %c0_31, %c0_32] : memref<8x2x32xbf16, #tpu.memory_space<vmem>>, vector<1x2x32xbf16>
    %85 = vector.shape_cast %84 : vector<1x2x32xbf16> to vector<2x32xbf16>
    %86 = vector.shape_cast %83 : vector<2x32xbf16> to vector<1x2x32xbf16>
    tpu.vector_store %arg5[%c1_30, %c0_31, %c0_32], %86 {strides = array<i32>} : memref<8x2x32xbf16, #tpu.memory_space<vmem>>, vector<1x2x32xbf16>,
    %c6 = arith.constant 6 : index
    %c0_33 = arith.constant 0 : index
    %c0_34 = arith.constant 0 : index
    %87 = vector.load %arg2[%c6, %c0_33, %c0_34] : memref<8x2x128xbf16, #tpu.memory_space<vmem>>, vector<1x2x128xbf16>
    %88 = vector.shape_cast %87 : vector<1x2x128xbf16> to vector<2x128xbf16>
    %89 = arith.extf %88 : vector<2x128xbf16> to vector<2x128xf32>
    %90 = arith.truncf %56 : vector<2x32xf32> to vector<2x32xbf16>
    %cst_35 = arith.constant dense<0.000000e+00> : vector<2x128xf32>
    %91 = tpu.matmul %90, %4, %cst_35 {dimension_numbers = #tpu.dot_dimension_numbers<[1], [0], [0], [1], [0, 0, 1, 1], [], []>} : vector<2x32xbf16>, vector<32x128xbf16>, vector<2x128xf32> -> vector<2x128xf32>
    %92 = arith.addf %89, %91 : vector<2x128xf32>
    %93 = vector.extract_strided_slice %92 {offsets = [0, 0], sizes = [2, 96], strides = [1, 1]} : vector<2x128xf32> to vector<2x96xf32>
    %94 = arith.negf %93 : vector<2x96xf32>
    %95 = math.exp %94 : vector<2x96xf32>
    %cst_36 = arith.constant 1.000000e+00 : f32
    %96 = vector.broadcast %cst_36 : f32 to vector<2x96xf32>
    %97 = arith.addf %96, %95 : vector<2x96xf32>
    %98 = arith.divf %96, %97 : vector<2x96xf32>
    %99 = vector.extract_strided_slice %92 {offsets = [0, 96], sizes = [2, 32], strides = [1, 1]} : vector<2x128xf32> to vector<2x32xf32>
    %100 = math.tanh %99 : vector<2x32xf32>
    %101 = vector.extract_strided_slice %98 {offsets = [0, 0], sizes = [2, 32], strides = [1, 1]} : vector<2x96xf32> to vector<2x32xf32>
    %102 = vector.extract_strided_slice %98 {offsets = [0, 32], sizes = [2, 32], strides = [1, 1]} : vector<2x96xf32> to vector<2x32xf32>
    %103 = vector.extract_strided_slice %98 {offsets = [0, 64], sizes = [2, 32], strides = [1, 1]} : vector<2x96xf32> to vector<2x32xf32>
    %104 = arith.mulf %102, %54 : vector<2x32xf32>
    %105 = arith.mulf %101, %100 : vector<2x32xf32>
    %106 = arith.addf %104, %105 : vector<2x32xf32>
    %107 = math.tanh %106 : vector<2x32xf32>
    %108 = arith.mulf %103, %107 : vector<2x32xf32>
    %109 = arith.truncf %108 : vector<2x32xf32> to vector<2x32xbf16>
    %c6_37 = arith.constant 6 : index
    %c0_38 = arith.constant 0 : index
    %c0_39 = arith.constant 0 : index
    %110 = vector.load %arg6[%c6_37, %c0_38, %c0_39] : memref<8x2x32xbf16, #tpu.memory_space<vmem>>, vector<1x2x32xbf16>
    %111 = vector.shape_cast %110 : vector<1x2x32xbf16> to vector<2x32xbf16>
    %112 = vector.shape_cast %109 : vector<2x32xbf16> to vector<1x2x32xbf16>
    tpu.vector_store %arg6[%c6_37, %c0_38, %c0_39], %112 {strides = array<i32>} : memref<8x2x32xbf16, #tpu.memory_space<vmem>>, vector<1x2x32xbf16>,
    %c2 = arith.constant 2 : index
    %c0_40 = arith.constant 0 : index
    %c0_41 = arith.constant 0 : index
    %113 = vector.load %arg1[%c2, %c0_40, %c0_41] : memref<8x2x128xbf16, #tpu.memory_space<vmem>>, vector<1x2x128xbf16>
    %114 = vector.shape_cast %113 : vector<1x2x128xbf16> to vector<2x128xbf16>
    %115 = arith.extf %114 : vector<2x128xbf16> to vector<2x128xf32>
    %116 = arith.truncf %82 : vector<2x32xf32> to vector<2x32xbf16>
    %cst_42 = arith.constant dense<0.000000e+00> : vector<2x128xf32>
    %117 = tpu.matmul %116, %3, %cst_42 {dimension_numbers = #tpu.dot_dimension_numbers<[1], [0], [0], [1], [0, 0, 1, 1], [], []>} : vector<2x32xbf16>, vector<32x128xbf16>, vector<2x128xf32> -> vector<2x128xf32>
    %118 = arith.addf %115, %117 : vector<2x128xf32>
    %119 = vector.extract_strided_slice %118 {offsets = [0, 0], sizes = [2, 96], strides = [1, 1]} : vector<2x128xf32> to vector<2x96xf32>
    %120 = arith.negf %119 : vector<2x96xf32>
    %121 = math.exp %120 : vector<2x96xf32>
    %cst_43 = arith.constant 1.000000e+00 : f32
    %122 = vector.broadcast %cst_43 : f32 to vector<2x96xf32>
    %123 = arith.addf %122, %121 : vector<2x96xf32>
    %124 = arith.divf %122, %123 : vector<2x96xf32>
    %125 = vector.extract_strided_slice %118 {offsets = [0, 96], sizes = [2, 32], strides = [1, 1]} : vector<2x128xf32> to vector<2x32xf32>
    %126 = math.tanh %125 : vector<2x32xf32>
    %127 = vector.extract_strided_slice %124 {offsets = [0, 0], sizes = [2, 32], strides = [1, 1]} : vector<2x96xf32> to vector<2x32xf32>
    %128 = vector.extract_strided_slice %124 {offsets = [0, 32], sizes = [2, 32], strides = [1, 1]} : vector<2x96xf32> to vector<2x32xf32>
    %129 = vector.extract_strided_slice %124 {offsets = [0, 64], sizes = [2, 32], strides = [1, 1]} : vector<2x96xf32> to vector<2x32xf32>
    %130 = arith.mulf %128, %80 : vector<2x32xf32>
    %131 = arith.mulf %127, %126 : vector<2x32xf32>
    %132 = arith.addf %130, %131 : vector<2x32xf32>
    %133 = math.tanh %132 : vector<2x32xf32>
    %134 = arith.mulf %129, %133 : vector<2x32xf32>
    %135 = arith.truncf %134 : vector<2x32xf32> to vector<2x32xbf16>
    %c2_44 = arith.constant 2 : index
    %c0_45 = arith.constant 0 : index
    %c0_46 = arith.constant 0 : index
    %136 = vector.load %arg5[%c2_44, %c0_45, %c0_46] : memref<8x2x32xbf16, #tpu.memory_space<vmem>>, vector<1x2x32xbf16>
    %137 = vector.shape_cast %136 : vector<1x2x32xbf16> to vector<2x32xbf16>
    %138 = vector.shape_cast %135 : vector<2x32xbf16> to vector<1x2x32xbf16>
    tpu.vector_store %arg5[%c2_44, %c0_45, %c0_46], %138 {strides = array<i32>} : memref<8x2x32xbf16, #tpu.memory_space<vmem>>, vector<1x2x32xbf16>,
    %c5 = arith.constant 5 : index
    %c0_47 = arith.constant 0 : index
    %c0_48 = arith.constant 0 : index
    %139 = vector.load %arg2[%c5, %c0_47, %c0_48] : memref<8x2x128xbf16, #tpu.memory_space<vmem>>, vector<1x2x128xbf16>
    %140 = vector.shape_cast %139 : vector<1x2x128xbf16> to vector<2x128xbf16>
    %141 = arith.extf %140 : vector<2x128xbf16> to vector<2x128xf32>
    %142 = arith.truncf %108 : vector<2x32xf32> to vector<2x32xbf16>
    %cst_49 = arith.constant dense<0.000000e+00> : vector<2x128xf32>
    %143 = tpu.matmul %142, %4, %cst_49 {dimension_numbers = #tpu.dot_dimension_numbers<[1], [0], [0], [1], [0, 0, 1, 1], [], []>} : vector<2x32xbf16>, vector<32x128xbf16>, vector<2x128xf32> -> vector<2x128xf32>
    %144 = arith.addf %141, %143 : vector<2x128xf32>
    %145 = vector.extract_strided_slice %144 {offsets = [0, 0], sizes = [2, 96], strides = [1, 1]} : vector<2x128xf32> to vector<2x96xf32>
    %146 = arith.negf %145 : vector<2x96xf32>
    %147 = math.exp %146 : vector<2x96xf32>
    %cst_50 = arith.constant 1.000000e+00 : f32
    %148 = vector.broadcast %cst_50 : f32 to vector<2x96xf32>
    %149 = arith.addf %148, %147 : vector<2x96xf32>
    %150 = arith.divf %148, %149 : vector<2x96xf32>
    %151 = vector.extract_strided_slice %144 {offsets = [0, 96], sizes = [2, 32], strides = [1, 1]} : vector<2x128xf32> to vector<2x32xf32>
    %152 = math.tanh %151 : vector<2x32xf32>
    %153 = vector.extract_strided_slice %150 {offsets = [0, 0], sizes = [2, 32], strides = [1, 1]} : vector<2x96xf32> to vector<2x32xf32>
    %154 = vector.extract_strided_slice %150 {offsets = [0, 32], sizes = [2, 32], strides = [1, 1]} : vector<2x96xf32> to vector<2x32xf32>
    %155 = vector.extract_strided_slice %150 {offsets = [0, 64], sizes = [2, 32], strides = [1, 1]} : vector<2x96xf32> to vector<2x32xf32>
    %156 = arith.mulf %154, %106 : vector<2x32xf32>
    %157 = arith.mulf %153, %152 : vector<2x32xf32>
    %158 = arith.addf %156, %157 : vector<2x32xf32>
    %159 = math.tanh %158 : vector<2x32xf32>
    %160 = arith.mulf %155, %159 : vector<2x32xf32>
    %161 = arith.truncf %160 : vector<2x32xf32> to vector<2x32xbf16>
    %c5_51 = arith.constant 5 : index
    %c0_52 = arith.constant 0 : index
    %c0_53 = arith.constant 0 : index
    %162 = vector.load %arg6[%c5_51, %c0_52, %c0_53] : memref<8x2x32xbf16, #tpu.memory_space<vmem>>, vector<1x2x32xbf16>
    %163 = vector.shape_cast %162 : vector<1x2x32xbf16> to vector<2x32xbf16>
    %164 = vector.shape_cast %161 : vector<2x32xbf16> to vector<1x2x32xbf16>
    tpu.vector_store %arg6[%c5_51, %c0_52, %c0_53], %164 {strides = array<i32>} : memref<8x2x32xbf16, #tpu.memory_space<vmem>>, vector<1x2x32xbf16>,
    %c3 = arith.constant 3 : index
    %c0_54 = arith.constant 0 : index
    %c0_55 = arith.constant 0 : index
    %165 = vector.load %arg1[%c3, %c0_54, %c0_55] : memref<8x2x128xbf16, #tpu.memory_space<vmem>>, vector<1x2x128xbf16>
    %166 = vector.shape_cast %165 : vector<1x2x128xbf16> to vector<2x128xbf16>
    %167 = arith.extf %166 : vector<2x128xbf16> to vector<2x128xf32>
    %168 = arith.truncf %134 : vector<2x32xf32> to vector<2x32xbf16>
    %cst_56 = arith.constant dense<0.000000e+00> : vector<2x128xf32>
    %169 = tpu.matmul %168, %3, %cst_56 {dimension_numbers = #tpu.dot_dimension_numbers<[1], [0], [0], [1], [0, 0, 1, 1], [], []>} : vector<2x32xbf16>, vector<32x128xbf16>, vector<2x128xf32> -> vector<2x128xf32>
    %170 = arith.addf %167, %169 : vector<2x128xf32>
    %171 = vector.extract_strided_slice %170 {offsets = [0, 0], sizes = [2, 96], strides = [1, 1]} : vector<2x128xf32> to vector<2x96xf32>
    %172 = arith.negf %171 : vector<2x96xf32>
    %173 = math.exp %172 : vector<2x96xf32>
    %cst_57 = arith.constant 1.000000e+00 : f32
    %174 = vector.broadcast %cst_57 : f32 to vector<2x96xf32>
    %175 = arith.addf %174, %173 : vector<2x96xf32>
    %176 = arith.divf %174, %175 : vector<2x96xf32>
    %177 = vector.extract_strided_slice %170 {offsets = [0, 96], sizes = [2, 32], strides = [1, 1]} : vector<2x128xf32> to vector<2x32xf32>
    %178 = math.tanh %177 : vector<2x32xf32>
    %179 = vector.extract_strided_slice %176 {offsets = [0, 0], sizes = [2, 32], strides = [1, 1]} : vector<2x96xf32> to vector<2x32xf32>
    %180 = vector.extract_strided_slice %176 {offsets = [0, 32], sizes = [2, 32], strides = [1, 1]} : vector<2x96xf32> to vector<2x32xf32>
    %181 = vector.extract_strided_slice %176 {offsets = [0, 64], sizes = [2, 32], strides = [1, 1]} : vector<2x96xf32> to vector<2x32xf32>
    %182 = arith.mulf %180, %132 : vector<2x32xf32>
    %183 = arith.mulf %179, %178 : vector<2x32xf32>
    %184 = arith.addf %182, %183 : vector<2x32xf32>
    %185 = math.tanh %184 : vector<2x32xf32>
    %186 = arith.mulf %181, %185 : vector<2x32xf32>
    %187 = arith.truncf %186 : vector<2x32xf32> to vector<2x32xbf16>
    %c3_58 = arith.constant 3 : index
    %c0_59 = arith.constant 0 : index
    %c0_60 = arith.constant 0 : index
    %188 = vector.load %arg5[%c3_58, %c0_59, %c0_60] : memref<8x2x32xbf16, #tpu.memory_space<vmem>>, vector<1x2x32xbf16>
    %189 = vector.shape_cast %188 : vector<1x2x32xbf16> to vector<2x32xbf16>
    %190 = vector.shape_cast %187 : vector<2x32xbf16> to vector<1x2x32xbf16>
    tpu.vector_store %arg5[%c3_58, %c0_59, %c0_60], %190 {strides = array<i32>} : memref<8x2x32xbf16, #tpu.memory_space<vmem>>, vector<1x2x32xbf16>,
    %c4 = arith.constant 4 : index
    %c0_61 = arith.constant 0 : index
    %c0_62 = arith.constant 0 : index
    %191 = vector.load %arg2[%c4, %c0_61, %c0_62] : memref<8x2x128xbf16, #tpu.memory_space<vmem>>, vector<1x2x128xbf16>
    %192 = vector.shape_cast %191 : vector<1x2x128xbf16> to vector<2x128xbf16>
    %193 = arith.extf %192 : vector<2x128xbf16> to vector<2x128xf32>
    %194 = arith.truncf %160 : vector<2x32xf32> to vector<2x32xbf16>
    %cst_63 = arith.constant dense<0.000000e+00> : vector<2x128xf32>
    %195 = tpu.matmul %194, %4, %cst_63 {dimension_numbers = #tpu.dot_dimension_numbers<[1], [0], [0], [1], [0, 0, 1, 1], [], []>} : vector<2x32xbf16>, vector<32x128xbf16>, vector<2x128xf32> -> vector<2x128xf32>
    %196 = arith.addf %193, %195 : vector<2x128xf32>
    %197 = vector.extract_strided_slice %196 {offsets = [0, 0], sizes = [2, 96], strides = [1, 1]} : vector<2x128xf32> to vector<2x96xf32>
    %198 = arith.negf %197 : vector<2x96xf32>
    %199 = math.exp %198 : vector<2x96xf32>
    %cst_64 = arith.constant 1.000000e+00 : f32
    %200 = vector.broadcast %cst_64 : f32 to vector<2x96xf32>
    %201 = arith.addf %200, %199 : vector<2x96xf32>
    %202 = arith.divf %200, %201 : vector<2x96xf32>
    %203 = vector.extract_strided_slice %196 {offsets = [0, 96], sizes = [2, 32], strides = [1, 1]} : vector<2x128xf32> to vector<2x32xf32>
    %204 = math.tanh %203 : vector<2x32xf32>
    %205 = vector.extract_strided_slice %202 {offsets = [0, 0], sizes = [2, 32], strides = [1, 1]} : vector<2x96xf32> to vector<2x32xf32>
    %206 = vector.extract_strided_slice %202 {offsets = [0, 32], sizes = [2, 32], strides = [1, 1]} : vector<2x96xf32> to vector<2x32xf32>
    %207 = vector.extract_strided_slice %202 {offsets = [0, 64], sizes = [2, 32], strides = [1, 1]} : vector<2x96xf32> to vector<2x32xf32>
    %208 = arith.mulf %206, %158 : vector<2x32xf32>
    %209 = arith.mulf %205, %204 : vector<2x32xf32>
    %210 = arith.addf %208, %209 : vector<2x32xf32>
    %211 = math.tanh %210 : vector<2x32xf32>
    %212 = arith.mulf %207, %211 : vector<2x32xf32>
    %213 = arith.truncf %212 : vector<2x32xf32> to vector<2x32xbf16>
    %c4_65 = arith.constant 4 : index
    %c0_66 = arith.constant 0 : index
    %c0_67 = arith.constant 0 : index
    %214 = vector.load %arg6[%c4_65, %c0_66, %c0_67] : memref<8x2x32xbf16, #tpu.memory_space<vmem>>, vector<1x2x32xbf16>
    %215 = vector.shape_cast %214 : vector<1x2x32xbf16> to vector<2x32xbf16>
    %216 = vector.shape_cast %213 : vector<2x32xbf16> to vector<1x2x32xbf16>
    tpu.vector_store %arg6[%c4_65, %c0_66, %c0_67], %216 {strides = array<i32>} : memref<8x2x32xbf16, #tpu.memory_space<vmem>>, vector<1x2x32xbf16>,
    %c4_68 = arith.constant 4 : index
    %c0_69 = arith.constant 0 : index
    %c0_70 = arith.constant 0 : index
    %217 = vector.load %arg1[%c4_68, %c0_69, %c0_70] : memref<8x2x128xbf16, #tpu.memory_space<vmem>>, vector<1x2x128xbf16>
    %218 = vector.shape_cast %217 : vector<1x2x128xbf16> to vector<2x128xbf16>
    %219 = arith.extf %218 : vector<2x128xbf16> to vector<2x128xf32>
    %220 = arith.truncf %186 : vector<2x32xf32> to vector<2x32xbf16>
    %cst_71 = arith.constant dense<0.000000e+00> : vector<2x128xf32>
    %221 = tpu.matmul %220, %3, %cst_71 {dimension_numbers = #tpu.dot_dimension_numbers<[1], [0], [0], [1], [0, 0, 1, 1], [], []>} : vector<2x32xbf16>, vector<32x128xbf16>, vector<2x128xf32> -> vector<2x128xf32>
    %222 = arith.addf %219, %221 : vector<2x128xf32>
    %223 = vector.extract_strided_slice %222 {offsets = [0, 0], sizes = [2, 96], strides = [1, 1]} : vector<2x128xf32> to vector<2x96xf32>
    %224 = arith.negf %223 : vector<2x96xf32>
    %225 = math.exp %224 : vector<2x96xf32>
    %cst_72 = arith.constant 1.000000e+00 : f32
    %226 = vector.broadcast %cst_72 : f32 to vector<2x96xf32>
    %227 = arith.addf %226, %225 : vector<2x96xf32>
    %228 = arith.divf %226, %227 : vector<2x96xf32>
    %229 = vector.extract_strided_slice %222 {offsets = [0, 96], sizes = [2, 32], strides = [1, 1]} : vector<2x128xf32> to vector<2x32xf32>
    %230 = math.tanh %229 : vector<2x32xf32>
    %231 = vector.extract_strided_slice %228 {offsets = [0, 0], sizes = [2, 32], strides = [1, 1]} : vector<2x96xf32> to vector<2x32xf32>
    %232 = vector.extract_strided_slice %228 {offsets = [0, 32], sizes = [2, 32], strides = [1, 1]} : vector<2x96xf32> to vector<2x32xf32>
    %233 = vector.extract_strided_slice %228 {offsets = [0, 64], sizes = [2, 32], strides = [1, 1]} : vector<2x96xf32> to vector<2x32xf32>
    %234 = arith.mulf %232, %184 : vector<2x32xf32>
    %235 = arith.mulf %231, %230 : vector<2x32xf32>
    %236 = arith.addf %234, %235 : vector<2x32xf32>
    %237 = math.tanh %236 : vector<2x32xf32>
    %238 = arith.mulf %233, %237 : vector<2x32xf32>
    %239 = arith.truncf %238 : vector<2x32xf32> to vector<2x32xbf16>
    %c4_73 = arith.constant 4 : index
    %c0_74 = arith.constant 0 : index
    %c0_75 = arith.constant 0 : index
    %240 = vector.load %arg5[%c4_73, %c0_74, %c0_75] : memref<8x2x32xbf16, #tpu.memory_space<vmem>>, vector<1x2x32xbf16>
    %241 = vector.shape_cast %240 : vector<1x2x32xbf16> to vector<2x32xbf16>
    %242 = vector.shape_cast %239 : vector<2x32xbf16> to vector<1x2x32xbf16>
    tpu.vector_store %arg5[%c4_73, %c0_74, %c0_75], %242 {strides = array<i32>} : memref<8x2x32xbf16, #tpu.memory_space<vmem>>, vector<1x2x32xbf16>,
    %c3_76 = arith.constant 3 : index
    %c0_77 = arith.constant 0 : index
    %c0_78 = arith.constant 0 : index
    %243 = vector.load %arg2[%c3_76, %c0_77, %c0_78] : memref<8x2x128xbf16, #tpu.memory_space<vmem>>, vector<1x2x128xbf16>
    %244 = vector.shape_cast %243 : vector<1x2x128xbf16> to vector<2x128xbf16>
    %245 = arith.extf %244 : vector<2x128xbf16> to vector<2x128xf32>
    %246 = arith.truncf %212 : vector<2x32xf32> to vector<2x32xbf16>
    %cst_79 = arith.constant dense<0.000000e+00> : vector<2x128xf32>
    %247 = tpu.matmul %246, %4, %cst_79 {dimension_numbers = #tpu.dot_dimension_numbers<[1], [0], [0], [1], [0, 0, 1, 1], [], []>} : vector<2x32xbf16>, vector<32x128xbf16>, vector<2x128xf32> -> vector<2x128xf32>
    %248 = arith.addf %245, %247 : vector<2x128xf32>
    %249 = vector.extract_strided_slice %248 {offsets = [0, 0], sizes = [2, 96], strides = [1, 1]} : vector<2x128xf32> to vector<2x96xf32>
    %250 = arith.negf %249 : vector<2x96xf32>
    %251 = math.exp %250 : vector<2x96xf32>
    %cst_80 = arith.constant 1.000000e+00 : f32
    %252 = vector.broadcast %cst_80 : f32 to vector<2x96xf32>
    %253 = arith.addf %252, %251 : vector<2x96xf32>
    %254 = arith.divf %252, %253 : vector<2x96xf32>
    %255 = vector.extract_strided_slice %248 {offsets = [0, 96], sizes = [2, 32], strides = [1, 1]} : vector<2x128xf32> to vector<2x32xf32>
    %256 = math.tanh %255 : vector<2x32xf32>
    %257 = vector.extract_strided_slice %254 {offsets = [0, 0], sizes = [2, 32], strides = [1, 1]} : vector<2x96xf32> to vector<2x32xf32>
    %258 = vector.extract_strided_slice %254 {offsets = [0, 32], sizes = [2, 32], strides = [1, 1]} : vector<2x96xf32> to vector<2x32xf32>
    %259 = vector.extract_strided_slice %254 {offsets = [0, 64], sizes = [2, 32], strides = [1, 1]} : vector<2x96xf32> to vector<2x32xf32>
    %260 = arith.mulf %258, %210 : vector<2x32xf32>
    %261 = arith.mulf %257, %256 : vector<2x32xf32>
    %262 = arith.addf %260, %261 : vector<2x32xf32>
    %263 = math.tanh %262 : vector<2x32xf32>
    %264 = arith.mulf %259, %263 : vector<2x32xf32>
    %265 = arith.truncf %264 : vector<2x32xf32> to vector<2x32xbf16>
    %c3_81 = arith.constant 3 : index
    %c0_82 = arith.constant 0 : index
    %c0_83 = arith.constant 0 : index
    %266 = vector.load %arg6[%c3_81, %c0_82, %c0_83] : memref<8x2x32xbf16, #tpu.memory_space<vmem>>, vector<1x2x32xbf16>
    %267 = vector.shape_cast %266 : vector<1x2x32xbf16> to vector<2x32xbf16>
    %268 = vector.shape_cast %265 : vector<2x32xbf16> to vector<1x2x32xbf16>
    tpu.vector_store %arg6[%c3_81, %c0_82, %c0_83], %268 {strides = array<i32>} : memref<8x2x32xbf16, #tpu.memory_space<vmem>>, vector<1x2x32xbf16>,
    %c5_84 = arith.constant 5 : index
    %c0_85 = arith.constant 0 : index
    %c0_86 = arith.constant 0 : index
    %269 = vector.load %arg1[%c5_84, %c0_85, %c0_86] : memref<8x2x128xbf16, #tpu.memory_space<vmem>>, vector<1x2x128xbf16>
    %270 = vector.shape_cast %269 : vector<1x2x128xbf16> to vector<2x128xbf16>
    %271 = arith.extf %270 : vector<2x128xbf16> to vector<2x128xf32>
    %272 = arith.truncf %238 : vector<2x32xf32> to vector<2x32xbf16>
    %cst_87 = arith.constant dense<0.000000e+00> : vector<2x128xf32>
    %273 = tpu.matmul %272, %3, %cst_87 {dimension_numbers = #tpu.dot_dimension_numbers<[1], [0], [0], [1], [0, 0, 1, 1], [], []>} : vector<2x32xbf16>, vector<32x128xbf16>, vector<2x128xf32> -> vector<2x128xf32>
    %274 = arith.addf %271, %273 : vector<2x128xf32>
    %275 = vector.extract_strided_slice %274 {offsets = [0, 0], sizes = [2, 96], strides = [1, 1]} : vector<2x128xf32> to vector<2x96xf32>
    %276 = arith.negf %275 : vector<2x96xf32>
    %277 = math.exp %276 : vector<2x96xf32>
    %cst_88 = arith.constant 1.000000e+00 : f32
    %278 = vector.broadcast %cst_88 : f32 to vector<2x96xf32>
    %279 = arith.addf %278, %277 : vector<2x96xf32>
    %280 = arith.divf %278, %279 : vector<2x96xf32>
    %281 = vector.extract_strided_slice %274 {offsets = [0, 96], sizes = [2, 32], strides = [1, 1]} : vector<2x128xf32> to vector<2x32xf32>
    %282 = math.tanh %281 : vector<2x32xf32>
    %283 = vector.extract_strided_slice %280 {offsets = [0, 0], sizes = [2, 32], strides = [1, 1]} : vector<2x96xf32> to vector<2x32xf32>
    %284 = vector.extract_strided_slice %280 {offsets = [0, 32], sizes = [2, 32], strides = [1, 1]} : vector<2x96xf32> to vector<2x32xf32>
    %285 = vector.extract_strided_slice %280 {offsets = [0, 64], sizes = [2, 32], strides = [1, 1]} : vector<2x96xf32> to vector<2x32xf32>
    %286 = arith.mulf %284, %236 : vector<2x32xf32>
    %287 = arith.mulf %283, %282 : vector<2x32xf32>
    %288 = arith.addf %286, %287 : vector<2x32xf32>
    %289 = math.tanh %288 : vector<2x32xf32>
    %290 = arith.mulf %285, %289 : vector<2x32xf32>
    %291 = arith.truncf %290 : vector<2x32xf32> to vector<2x32xbf16>
    %c5_89 = arith.constant 5 : index
    %c0_90 = arith.constant 0 : index
    %c0_91 = arith.constant 0 : index
    %292 = vector.load %arg5[%c5_89, %c0_90, %c0_91] : memref<8x2x32xbf16, #tpu.memory_space<vmem>>, vector<1x2x32xbf16>
    %293 = vector.shape_cast %292 : vector<1x2x32xbf16> to vector<2x32xbf16>
    %294 = vector.shape_cast %291 : vector<2x32xbf16> to vector<1x2x32xbf16>
    tpu.vector_store %arg5[%c5_89, %c0_90, %c0_91], %294 {strides = array<i32>} : memref<8x2x32xbf16, #tpu.memory_space<vmem>>, vector<1x2x32xbf16>,
    %c2_92 = arith.constant 2 : index
    %c0_93 = arith.constant 0 : index
    %c0_94 = arith.constant 0 : index
    %295 = vector.load %arg2[%c2_92, %c0_93, %c0_94] : memref<8x2x128xbf16, #tpu.memory_space<vmem>>, vector<1x2x128xbf16>
    %296 = vector.shape_cast %295 : vector<1x2x128xbf16> to vector<2x128xbf16>
    %297 = arith.extf %296 : vector<2x128xbf16> to vector<2x128xf32>
    %298 = arith.truncf %264 : vector<2x32xf32> to vector<2x32xbf16>
    %cst_95 = arith.constant dense<0.000000e+00> : vector<2x128xf32>
    %299 = tpu.matmul %298, %4, %cst_95 {dimension_numbers = #tpu.dot_dimension_numbers<[1], [0], [0], [1], [0, 0, 1, 1], [], []>} : vector<2x32xbf16>, vector<32x128xbf16>, vector<2x128xf32> -> vector<2x128xf32>
    %300 = arith.addf %297, %299 : vector<2x128xf32>
    %301 = vector.extract_strided_slice %300 {offsets = [0, 0], sizes = [2, 96], strides = [1, 1]} : vector<2x128xf32> to vector<2x96xf32>
    %302 = arith.negf %301 : vector<2x96xf32>
    %303 = math.exp %302 : vector<2x96xf32>
    %cst_96 = arith.constant 1.000000e+00 : f32
    %304 = vector.broadcast %cst_96 : f32 to vector<2x96xf32>
    %305 = arith.addf %304, %303 : vector<2x96xf32>
    %306 = arith.divf %304, %305 : vector<2x96xf32>
    %307 = vector.extract_strided_slice %300 {offsets = [0, 96], sizes = [2, 32], strides = [1, 1]} : vector<2x128xf32> to vector<2x32xf32>
    %308 = math.tanh %307 : vector<2x32xf32>
    %309 = vector.extract_strided_slice %306 {offsets = [0, 0], sizes = [2, 32], strides = [1, 1]} : vector<2x96xf32> to vector<2x32xf32>
    %310 = vector.extract_strided_slice %306 {offsets = [0, 32], sizes = [2, 32], strides = [1, 1]} : vector<2x96xf32> to vector<2x32xf32>
    %311 = vector.extract_strided_slice %306 {offsets = [0, 64], sizes = [2, 32], strides = [1, 1]} : vector<2x96xf32> to vector<2x32xf32>
    %312 = arith.mulf %310, %262 : vector<2x32xf32>
    %313 = arith.mulf %309, %308 : vector<2x32xf32>
    %314 = arith.addf %312, %313 : vector<2x32xf32>
    %315 = math.tanh %314 : vector<2x32xf32>
    %316 = arith.mulf %311, %315 : vector<2x32xf32>
    %317 = arith.truncf %316 : vector<2x32xf32> to vector<2x32xbf16>
    %c2_97 = arith.constant 2 : index
    %c0_98 = arith.constant 0 : index
    %c0_99 = arith.constant 0 : index
    %318 = vector.load %arg6[%c2_97, %c0_98, %c0_99] : memref<8x2x32xbf16, #tpu.memory_space<vmem>>, vector<1x2x32xbf16>
    %319 = vector.shape_cast %318 : vector<1x2x32xbf16> to vector<2x32xbf16>
    %320 = vector.shape_cast %317 : vector<2x32xbf16> to vector<1x2x32xbf16>
    tpu.vector_store %arg6[%c2_97, %c0_98, %c0_99], %320 {strides = array<i32>} : memref<8x2x32xbf16, #tpu.memory_space<vmem>>, vector<1x2x32xbf16>,
    %c6_100 = arith.constant 6 : index
    %c0_101 = arith.constant 0 : index
    %c0_102 = arith.constant 0 : index
    %321 = vector.load %arg1[%c6_100, %c0_101, %c0_102] : memref<8x2x128xbf16, #tpu.memory_space<vmem>>, vector<1x2x128xbf16>
    %322 = vector.shape_cast %321 : vector<1x2x128xbf16> to vector<2x128xbf16>
    %323 = arith.extf %322 : vector<2x128xbf16> to vector<2x128xf32>
    %324 = arith.truncf %290 : vector<2x32xf32> to vector<2x32xbf16>
    %cst_103 = arith.constant dense<0.000000e+00> : vector<2x128xf32>
    %325 = tpu.matmul %324, %3, %cst_103 {dimension_numbers = #tpu.dot_dimension_numbers<[1], [0], [0], [1], [0, 0, 1, 1], [], []>} : vector<2x32xbf16>, vector<32x128xbf16>, vector<2x128xf32> -> vector<2x128xf32>
    %326 = arith.addf %323, %325 : vector<2x128xf32>
    %327 = vector.extract_strided_slice %326 {offsets = [0, 0], sizes = [2, 96], strides = [1, 1]} : vector<2x128xf32> to vector<2x96xf32>
    %328 = arith.negf %327 : vector<2x96xf32>
    %329 = math.exp %328 : vector<2x96xf32>
    %cst_104 = arith.constant 1.000000e+00 : f32
    %330 = vector.broadcast %cst_104 : f32 to vector<2x96xf32>
    %331 = arith.addf %330, %329 : vector<2x96xf32>
    %332 = arith.divf %330, %331 : vector<2x96xf32>
    %333 = vector.extract_strided_slice %326 {offsets = [0, 96], sizes = [2, 32], strides = [1, 1]} : vector<2x128xf32> to vector<2x32xf32>
    %334 = math.tanh %333 : vector<2x32xf32>
    %335 = vector.extract_strided_slice %332 {offsets = [0, 0], sizes = [2, 32], strides = [1, 1]} : vector<2x96xf32> to vector<2x32xf32>
    %336 = vector.extract_strided_slice %332 {offsets = [0, 32], sizes = [2, 32], strides = [1, 1]} : vector<2x96xf32> to vector<2x32xf32>
    %337 = vector.extract_strided_slice %332 {offsets = [0, 64], sizes = [2, 32], strides = [1, 1]} : vector<2x96xf32> to vector<2x32xf32>
    %338 = arith.mulf %336, %288 : vector<2x32xf32>
    %339 = arith.mulf %335, %334 : vector<2x32xf32>
    %340 = arith.addf %338, %339 : vector<2x32xf32>
    %341 = math.tanh %340 : vector<2x32xf32>
    %342 = arith.mulf %337, %341 : vector<2x32xf32>
    %343 = arith.truncf %342 : vector<2x32xf32> to vector<2x32xbf16>
    %c6_105 = arith.constant 6 : index
    %c0_106 = arith.constant 0 : index
    %c0_107 = arith.constant 0 : index
    %344 = vector.load %arg5[%c6_105, %c0_106, %c0_107] : memref<8x2x32xbf16, #tpu.memory_space<vmem>>, vector<1x2x32xbf16>
    %345 = vector.shape_cast %344 : vector<1x2x32xbf16> to vector<2x32xbf16>
    %346 = vector.shape_cast %343 : vector<2x32xbf16> to vector<1x2x32xbf16>
    tpu.vector_store %arg5[%c6_105, %c0_106, %c0_107], %346 {strides = array<i32>} : memref<8x2x32xbf16, #tpu.memory_space<vmem>>, vector<1x2x32xbf16>,
    %c1_108 = arith.constant 1 : index
    %c0_109 = arith.constant 0 : index
    %c0_110 = arith.constant 0 : index
    %347 = vector.load %arg2[%c1_108, %c0_109, %c0_110] : memref<8x2x128xbf16, #tpu.memory_space<vmem>>, vector<1x2x128xbf16>
    %348 = vector.shape_cast %347 : vector<1x2x128xbf16> to vector<2x128xbf16>
    %349 = arith.extf %348 : vector<2x128xbf16> to vector<2x128xf32>
    %350 = arith.truncf %316 : vector<2x32xf32> to vector<2x32xbf16>
    %cst_111 = arith.constant dense<0.000000e+00> : vector<2x128xf32>
    %351 = tpu.matmul %350, %4, %cst_111 {dimension_numbers = #tpu.dot_dimension_numbers<[1], [0], [0], [1], [0, 0, 1, 1], [], []>} : vector<2x32xbf16>, vector<32x128xbf16>, vector<2x128xf32> -> vector<2x128xf32>
    %352 = arith.addf %349, %351 : vector<2x128xf32>
    %353 = vector.extract_strided_slice %352 {offsets = [0, 0], sizes = [2, 96], strides = [1, 1]} : vector<2x128xf32> to vector<2x96xf32>
    %354 = arith.negf %353 : vector<2x96xf32>
    %355 = math.exp %354 : vector<2x96xf32>
    %cst_112 = arith.constant 1.000000e+00 : f32
    %356 = vector.broadcast %cst_112 : f32 to vector<2x96xf32>
    %357 = arith.addf %356, %355 : vector<2x96xf32>
    %358 = arith.divf %356, %357 : vector<2x96xf32>
    %359 = vector.extract_strided_slice %352 {offsets = [0, 96], sizes = [2, 32], strides = [1, 1]} : vector<2x128xf32> to vector<2x32xf32>
    %360 = math.tanh %359 : vector<2x32xf32>
    %361 = vector.extract_strided_slice %358 {offsets = [0, 0], sizes = [2, 32], strides = [1, 1]} : vector<2x96xf32> to vector<2x32xf32>
    %362 = vector.extract_strided_slice %358 {offsets = [0, 32], sizes = [2, 32], strides = [1, 1]} : vector<2x96xf32> to vector<2x32xf32>
    %363 = vector.extract_strided_slice %358 {offsets = [0, 64], sizes = [2, 32], strides = [1, 1]} : vector<2x96xf32> to vector<2x32xf32>
    %364 = arith.mulf %362, %314 : vector<2x32xf32>
    %365 = arith.mulf %361, %360 : vector<2x32xf32>
    %366 = arith.addf %364, %365 : vector<2x32xf32>
    %367 = math.tanh %366 : vector<2x32xf32>
    %368 = arith.mulf %363, %367 : vector<2x32xf32>
    %369 = arith.truncf %368 : vector<2x32xf32> to vector<2x32xbf16>
    %c1_113 = arith.constant 1 : index
    %c0_114 = arith.constant 0 : index
    %c0_115 = arith.constant 0 : index
    %370 = vector.load %arg6[%c1_113, %c0_114, %c0_115] : memref<8x2x32xbf16, #tpu.memory_space<vmem>>, vector<1x2x32xbf16>
    %371 = vector.shape_cast %370 : vector<1x2x32xbf16> to vector<2x32xbf16>
    %372 = vector.shape_cast %369 : vector<2x32xbf16> to vector<1x2x32xbf16>
    tpu.vector_store %arg6[%c1_113, %c0_114, %c0_115], %372 {strides = array<i32>} : memref<8x2x32xbf16, #tpu.memory_space<vmem>>, vector<1x2x32xbf16>,
    %c7_116 = arith.constant 7 : index
    %c0_117 = arith.constant 0 : index
    %c0_118 = arith.constant 0 : index
    %373 = vector.load %arg1[%c7_116, %c0_117, %c0_118] : memref<8x2x128xbf16, #tpu.memory_space<vmem>>, vector<1x2x128xbf16>
    %374 = vector.shape_cast %373 : vector<1x2x128xbf16> to vector<2x128xbf16>
    %375 = arith.extf %374 : vector<2x128xbf16> to vector<2x128xf32>
    %376 = arith.truncf %342 : vector<2x32xf32> to vector<2x32xbf16>
    %cst_119 = arith.constant dense<0.000000e+00> : vector<2x128xf32>
    %377 = tpu.matmul %376, %3, %cst_119 {dimension_numbers = #tpu.dot_dimension_numbers<[1], [0], [0], [1], [0, 0, 1, 1], [], []>} : vector<2x32xbf16>, vector<32x128xbf16>, vector<2x128xf32> -> vector<2x128xf32>
    %378 = arith.addf %375, %377 : vector<2x128xf32>
    %379 = vector.extract_strided_slice %378 {offsets = [0, 0], sizes = [2, 96], strides = [1, 1]} : vector<2x128xf32> to vector<2x96xf32>
    %380 = arith.negf %379 : vector<2x96xf32>
    %381 = math.exp %380 : vector<2x96xf32>
    %cst_120 = arith.constant 1.000000e+00 : f32
    %382 = vector.broadcast %cst_120 : f32 to vector<2x96xf32>
    %383 = arith.addf %382, %381 : vector<2x96xf32>
    %384 = arith.divf %382, %383 : vector<2x96xf32>
    %385 = vector.extract_strided_slice %378 {offsets = [0, 96], sizes = [2, 32], strides = [1, 1]} : vector<2x128xf32> to vector<2x32xf32>
    %386 = math.tanh %385 : vector<2x32xf32>
    %387 = vector.extract_strided_slice %384 {offsets = [0, 0], sizes = [2, 32], strides = [1, 1]} : vector<2x96xf32> to vector<2x32xf32>
    %388 = vector.extract_strided_slice %384 {offsets = [0, 32], sizes = [2, 32], strides = [1, 1]} : vector<2x96xf32> to vector<2x32xf32>
    %389 = vector.extract_strided_slice %384 {offsets = [0, 64], sizes = [2, 32], strides = [1, 1]} : vector<2x96xf32> to vector<2x32xf32>
    %390 = arith.mulf %388, %340 : vector<2x32xf32>
    %391 = arith.mulf %387, %386 : vector<2x32xf32>
    %392 = arith.addf %390, %391 : vector<2x32xf32>
    %393 = math.tanh %392 : vector<2x32xf32>
    %394 = arith.mulf %389, %393 : vector<2x32xf32>
    %395 = arith.truncf %394 : vector<2x32xf32> to vector<2x32xbf16>
    %c7_121 = arith.constant 7 : index
    %c0_122 = arith.constant 0 : index
    %c0_123 = arith.constant 0 : index
    %396 = vector.load %arg5[%c7_121, %c0_122, %c0_123] : memref<8x2x32xbf16, #tpu.memory_space<vmem>>, vector<1x2x32xbf16>
    %397 = vector.shape_cast %396 : vector<1x2x32xbf16> to vector<2x32xbf16>
    %398 = vector.shape_cast %395 : vector<2x32xbf16> to vector<1x2x32xbf16>
    tpu.vector_store %arg5[%c7_121, %c0_122, %c0_123], %398 {strides = array<i32>} : memref<8x2x32xbf16, #tpu.memory_space<vmem>>, vector<1x2x32xbf16>,
    %c0_124 = arith.constant 0 : index
    %c0_125 = arith.constant 0 : index
    %c0_126 = arith.constant 0 : index
    %399 = vector.load %arg2[%c0_124, %c0_125, %c0_126] : memref<8x2x128xbf16, #tpu.memory_space<vmem>>, vector<1x2x128xbf16>
    %400 = vector.shape_cast %399 : vector<1x2x128xbf16> to vector<2x128xbf16>
    %401 = arith.extf %400 : vector<2x128xbf16> to vector<2x128xf32>
    %402 = arith.truncf %368 : vector<2x32xf32> to vector<2x32xbf16>
    %cst_127 = arith.constant dense<0.000000e+00> : vector<2x128xf32>
    %403 = tpu.matmul %402, %4, %cst_127 {dimension_numbers = #tpu.dot_dimension_numbers<[1], [0], [0], [1], [0, 0, 1, 1], [], []>} : vector<2x32xbf16>, vector<32x128xbf16>, vector<2x128xf32> -> vector<2x128xf32>
    %404 = arith.addf %401, %403 : vector<2x128xf32>
    %405 = vector.extract_strided_slice %404 {offsets = [0, 0], sizes = [2, 96], strides = [1, 1]} : vector<2x128xf32> to vector<2x96xf32>
    %406 = arith.negf %405 : vector<2x96xf32>
    %407 = math.exp %406 : vector<2x96xf32>
    %cst_128 = arith.constant 1.000000e+00 : f32
    %408 = vector.broadcast %cst_128 : f32 to vector<2x96xf32>
    %409 = arith.addf %408, %407 : vector<2x96xf32>
    %410 = arith.divf %408, %409 : vector<2x96xf32>
    %411 = vector.extract_strided_slice %404 {offsets = [0, 96], sizes = [2, 32], strides = [1, 1]} : vector<2x128xf32> to vector<2x32xf32>
    %412 = math.tanh %411 : vector<2x32xf32>
    %413 = vector.extract_strided_slice %410 {offsets = [0, 0], sizes = [2, 32], strides = [1, 1]} : vector<2x96xf32> to vector<2x32xf32>
    %414 = vector.extract_strided_slice %410 {offsets = [0, 32], sizes = [2, 32], strides = [1, 1]} : vector<2x96xf32> to vector<2x32xf32>
    %415 = vector.extract_strided_slice %410 {offsets = [0, 64], sizes = [2, 32], strides = [1, 1]} : vector<2x96xf32> to vector<2x32xf32>
    %416 = arith.mulf %414, %366 : vector<2x32xf32>
    %417 = arith.mulf %413, %412 : vector<2x32xf32>
    %418 = arith.addf %416, %417 : vector<2x32xf32>
    %419 = math.tanh %418 : vector<2x32xf32>
    %420 = arith.mulf %415, %419 : vector<2x32xf32>
    %421 = arith.truncf %420 : vector<2x32xf32> to vector<2x32xbf16>
    %c0_129 = arith.constant 0 : index
    %c0_130 = arith.constant 0 : index
    %c0_131 = arith.constant 0 : index
    %422 = vector.load %arg6[%c0_129, %c0_130, %c0_131] : memref<8x2x32xbf16, #tpu.memory_space<vmem>>, vector<1x2x32xbf16>
    %423 = vector.shape_cast %422 : vector<1x2x32xbf16> to vector<2x32xbf16>
    %424 = vector.shape_cast %421 : vector<2x32xbf16> to vector<1x2x32xbf16>
    tpu.vector_store %arg6[%c0_129, %c0_130, %c0_131], %424 {strides = array<i32>} : memref<8x2x32xbf16, #tpu.memory_space<vmem>>, vector<1x2x32xbf16>,
    %c0_132 = arith.constant 0 : index
    %c0_133 = arith.constant 0 : index
    %425 = vector.load %arg7[%c0_132, %c0_133] : memref<2x32xf32, #tpu.memory_space<vmem>>, vector<2x32xf32>
    tpu.vector_store %arg7[%c0_132, %c0_133], %394 {strides = array<i32>} : memref<2x32xf32, #tpu.memory_space<vmem>>, vector<2x32xf32>,
    %c0_134 = arith.constant 0 : index
    %c0_135 = arith.constant 0 : index
    %426 = vector.load %arg8[%c0_134, %c0_135] : memref<2x32xf32, #tpu.memory_space<vmem>>, vector<2x32xf32>
    tpu.vector_store %arg8[%c0_134, %c0_135], %392 {strides = array<i32>} : memref<2x32xf32, #tpu.memory_space<vmem>>, vector<2x32xf32>,
    %c0_136 = arith.constant 0 : index
    %c0_137 = arith.constant 0 : index
    %427 = vector.load %arg9[%c0_136, %c0_137] : memref<2x32xf32, #tpu.memory_space<vmem>>, vector<2x32xf32>
    tpu.vector_store %arg9[%c0_136, %c0_137], %420 {strides = array<i32>} : memref<2x32xf32, #tpu.memory_space<vmem>>, vector<2x32xf32>,
    %c0_138 = arith.constant 0 : index
    %c0_139 = arith.constant 0 : index
    %428 = vector.load %arg10[%c0_138, %c0_139] : memref<2x32xf32, #tpu.memory_space<vmem>>, vector<2x32xf32>
    tpu.vector_store %arg10[%c0_138, %c0_139], %418 {strides = array<i32>} : memref<2x32xf32, #tpu.memory_space<vmem>>, vector<2x32xf32>,
    return
  }
  func.func @transform_0(%arg0: i32) -> (i32, i32, i32) {
    %c0_i32 = arith.constant 0 : i32
    %c0_i32_0 = arith.constant 0 : i32
    %c0_i32_1 = arith.constant 0 : i32
    return %arg0, %c0_i32, %c0_i32_0 : i32, i32, i32
  }
  func.func @transform_1(%arg0: i32) -> (i32, i32, i32) {
    %c0_i32 = arith.constant 0 : i32
    %0 = arith.subi %c0_i32, %arg0 : i32
    %c0_i32_0 = arith.constant 0 : i32
    %c1_i32 = arith.constant 1 : i32
    %c0_i32_1 = arith.constant 0 : i32
    return %0, %c0_i32_0, %c1_i32 : i32, i32, i32
  }
  func.func @transform_2(%arg0: i32) -> (i32, i32) {
    %c0_i32 = arith.constant 0 : i32
    %c0_i32_0 = arith.constant 0 : i32
    %c0_i32_1 = arith.constant 0 : i32
    return %c0_i32, %c0_i32_0 : i32, i32
  }
  func.func @transform_3(%arg0: i32) -> (i32, i32) {
    %c0_i32 = arith.constant 0 : i32
    %c0_i32_0 = arith.constant 0 : i32
    %c0_i32_1 = arith.constant 0 : i32
    return %c0_i32, %c0_i32_0 : i32, i32
  }
  func.func @transform_4(%arg0: i32) -> (i32, i32, i32) {
    %c0_i32 = arith.constant 0 : i32
    %c0_i32_0 = arith.constant 0 : i32
    %c0_i32_1 = arith.constant 0 : i32
    return %arg0, %c0_i32, %c0_i32_0 : i32, i32, i32
  }
  func.func @transform_5(%arg0: i32) -> (i32, i32, i32) {
    %c0_i32 = arith.constant 0 : i32
    %0 = arith.subi %c0_i32, %arg0 : i32
    %c0_i32_0 = arith.constant 0 : i32
    %c0_i32_1 = arith.constant 0 : i32
    %c0_i32_2 = arith.constant 0 : i32
    return %0, %c0_i32_0, %c0_i32_1 : i32, i32, i32
  }
}

module attributes {stable_mosaic.version = 11 : i64} {
  func.func @_proj_kernel(%arg0: i32, %arg1: memref<16x32xbf16, #tpu.memory_space<vmem>>, %arg2: memref<16x32xbf16, #tpu.memory_space<vmem>>, %arg3: memref<32x128xbf16, #tpu.memory_space<vmem>>, %arg4: memref<32x128xbf16, #tpu.memory_space<vmem>>, %arg5: memref<1x128xf32, #tpu.memory_space<vmem>>, %arg6: memref<16x128xbf16, #tpu.memory_space<vmem>>) attributes {dimension_semantics = [#tpu.dimension_semantics<parallel>], iteration_bounds = array<i64: 1>, scalar_prefetch = 0 : i64, scratch_operands = 0 : i64, tpu.core_type = #tpu.core_type<tc>, window_params = [{transform_indices = @transform_0, window_bounds = array<i64: 16, 32>}, {transform_indices = @transform_1, window_bounds = array<i64: 16, 32>}, {pipeline_mode = #tpu.pipeline_mode<synchronous>, transform_indices = @transform_2, window_bounds = array<i64: 32, 128>}, {pipeline_mode = #tpu.pipeline_mode<synchronous>, transform_indices = @transform_3, window_bounds = array<i64: 32, 128>}, {pipeline_mode = #tpu.pipeline_mode<synchronous>, transform_indices = @transform_4, window_bounds = array<i64: 1, 128>}, {transform_indices = @transform_5, window_bounds = array<i64: 16, 128>}]} {
    %c0 = arith.constant 0 : index
    %c0_0 = arith.constant 0 : index
    %0 = vector.load %arg1[%c0, %c0_0] : memref<16x32xbf16, #tpu.memory_space<vmem>>, vector<16x32xbf16>
    %c0_1 = arith.constant 0 : index
    %c0_2 = arith.constant 0 : index
    %1 = vector.load %arg3[%c0_1, %c0_2] : memref<32x128xbf16, #tpu.memory_space<vmem>>, vector<32x128xbf16>
    %cst = arith.constant dense<0.000000e+00> : vector<16x128xf32>
    %2 = tpu.matmul %0, %1, %cst {dimension_numbers = #tpu.dot_dimension_numbers<[1], [0], [0], [1], [0, 0, 1, 1], [], []>} : vector<16x32xbf16>, vector<32x128xbf16>, vector<16x128xf32> -> vector<16x128xf32>
    %c0_3 = arith.constant 0 : index
    %c0_4 = arith.constant 0 : index
    %3 = vector.load %arg2[%c0_3, %c0_4] : memref<16x32xbf16, #tpu.memory_space<vmem>>, vector<16x32xbf16>
    %c0_5 = arith.constant 0 : index
    %c0_6 = arith.constant 0 : index
    %4 = vector.load %arg4[%c0_5, %c0_6] : memref<32x128xbf16, #tpu.memory_space<vmem>>, vector<32x128xbf16>
    %cst_7 = arith.constant dense<0.000000e+00> : vector<16x128xf32>
    %5 = tpu.matmul %3, %4, %cst_7 {dimension_numbers = #tpu.dot_dimension_numbers<[1], [0], [0], [1], [0, 0, 1, 1], [], []>} : vector<16x32xbf16>, vector<32x128xbf16>, vector<16x128xf32> -> vector<16x128xf32>
    %6 = arith.addf %2, %5 : vector<16x128xf32>
    %c0_8 = arith.constant 0 : index
    %c0_9 = arith.constant 0 : index
    %7 = vector.load %arg5[%c0_8, %c0_9] : memref<1x128xf32, #tpu.memory_space<vmem>>, vector<1x128xf32>
    %8 = vector.broadcast %7 : vector<1x128xf32> to vector<16x128xf32>
    %9 = arith.addf %6, %8 : vector<16x128xf32>
    %10 = arith.truncf %9 : vector<16x128xf32> to vector<16x128xbf16>
    %c0_10 = arith.constant 0 : index
    %c0_11 = arith.constant 0 : index
    %11 = vector.load %arg6[%c0_10, %c0_11] : memref<16x128xbf16, #tpu.memory_space<vmem>>, vector<16x128xbf16>
    tpu.vector_store %arg6[%c0_10, %c0_11], %10 {strides = array<i32>} : memref<16x128xbf16, #tpu.memory_space<vmem>>, vector<16x128xbf16>,
    return
  }
  func.func @transform_0(%arg0: i32) -> (i32, i32) {
    %c0_i32 = arith.constant 0 : i32
    %c0_i32_0 = arith.constant 0 : i32
    return %arg0, %c0_i32 : i32, i32
  }
  func.func @transform_1(%arg0: i32) -> (i32, i32) {
    %c0_i32 = arith.constant 0 : i32
    %c0_i32_0 = arith.constant 0 : i32
    return %arg0, %c0_i32 : i32, i32
  }
  func.func @transform_2(%arg0: i32) -> (i32, i32) {
    %c0_i32 = arith.constant 0 : i32
    %c0_i32_0 = arith.constant 0 : i32
    %c0_i32_1 = arith.constant 0 : i32
    return %c0_i32, %c0_i32_0 : i32, i32
  }
  func.func @transform_3(%arg0: i32) -> (i32, i32) {
    %c0_i32 = arith.constant 0 : i32
    %c0_i32_0 = arith.constant 0 : i32
    %c0_i32_1 = arith.constant 0 : i32
    return %c0_i32, %c0_i32_0 : i32, i32
  }
  func.func @transform_4(%arg0: i32) -> (i32, i32) {
    %c0_i32 = arith.constant 0 : i32
    %c0_i32_0 = arith.constant 0 : i32
    %c0_i32_1 = arith.constant 0 : i32
    return %c0_i32, %c0_i32_0 : i32, i32
  }
  func.func @transform_5(%arg0: i32) -> (i32, i32) {
    %c0_i32 = arith.constant 0 : i32
    %c0_i32_0 = arith.constant 0 : i32
    return %arg0, %c0_i32 : i32, i32
  }
}

module attributes {stable_mosaic.version = 11 : i64} {
  func.func @_lstm_heads_kernel(%arg0: i32, %arg1: memref<8x2x128xbf16, #tpu.memory_space<vmem>>, %arg2: memref<32x128xbf16, #tpu.memory_space<vmem>>, %arg3: memref<32x128xbf16, #tpu.memory_space<vmem>>, %arg4: memref<1x128xf32, #tpu.memory_space<vmem>>, %arg5: memref<8x2x128xf32, #tpu.memory_space<vmem>>, %arg6: memref<2x32xf32, #tpu.memory_space<vmem>>, %arg7: memref<2x32xf32, #tpu.memory_space<vmem>>) attributes {dimension_semantics = [#tpu.dimension_semantics<arbitrary>], iteration_bounds = array<i64: 1>, scalar_prefetch = 0 : i64, scratch_operands = 2 : i64, tpu.core_type = #tpu.core_type<tc>, window_params = [{transform_indices = @transform_0, window_bounds = array<i64: 8, 2, 128>}, {pipeline_mode = #tpu.pipeline_mode<synchronous>, transform_indices = @transform_1, window_bounds = array<i64: 32, 128>}, {pipeline_mode = #tpu.pipeline_mode<synchronous>, transform_indices = @transform_2, window_bounds = array<i64: 32, 128>}, {pipeline_mode = #tpu.pipeline_mode<synchronous>, transform_indices = @transform_3, window_bounds = array<i64: 1, 128>}, {transform_indices = @transform_4, window_bounds = array<i64: 8, 2, 128>}]} {
    %c0_i32 = arith.constant 0 : i32
    %0 = arith.cmpi eq, %arg0, %c0_i32 : i32
    %1 = arith.extui %0 : i1 to i32
    %c0_i32_0 = arith.constant 0 : i32
    %2 = arith.cmpi ne, %1, %c0_i32_0 : i32
    scf.if %2 {
      %cst_86 = arith.constant 0.000000e+00 : f32
      %282 = vector.broadcast %cst_86 : f32 to vector<2x32xf32>
      %c0_87 = arith.constant 0 : index
      %c0_88 = arith.constant 0 : index
      %283 = vector.load %arg6[%c0_87, %c0_88] : memref<2x32xf32, #tpu.memory_space<vmem>>, vector<2x32xf32>
      tpu.vector_store %arg6[%c0_87, %c0_88], %282 {strides = array<i32>} : memref<2x32xf32, #tpu.memory_space<vmem>>, vector<2x32xf32>,
      %cst_89 = arith.constant 0.000000e+00 : f32
      %284 = vector.broadcast %cst_89 : f32 to vector<2x32xf32>
      %c0_90 = arith.constant 0 : index
      %c0_91 = arith.constant 0 : index
      %285 = vector.load %arg7[%c0_90, %c0_91] : memref<2x32xf32, #tpu.memory_space<vmem>>, vector<2x32xf32>
      tpu.vector_store %arg7[%c0_90, %c0_91], %284 {strides = array<i32>} : memref<2x32xf32, #tpu.memory_space<vmem>>, vector<2x32xf32>,
    } else {
    }
    %c0 = arith.constant 0 : index
    %c0_1 = arith.constant 0 : index
    %3 = vector.load %arg2[%c0, %c0_1] : memref<32x128xbf16, #tpu.memory_space<vmem>>, vector<32x128xbf16>
    %c0_2 = arith.constant 0 : index
    %c0_3 = arith.constant 0 : index
    %4 = vector.load %arg3[%c0_2, %c0_3] : memref<32x128xbf16, #tpu.memory_space<vmem>>, vector<32x128xbf16>
    %c0_4 = arith.constant 0 : index
    %c0_5 = arith.constant 0 : index
    %5 = vector.load %arg4[%c0_4, %c0_5] : memref<1x128xf32, #tpu.memory_space<vmem>>, vector<1x128xf32>
    %c0_6 = arith.constant 0 : index
    %c0_7 = arith.constant 0 : index
    %6 = vector.load %arg6[%c0_6, %c0_7] : memref<2x32xf32, #tpu.memory_space<vmem>>, vector<2x32xf32>
    %c0_8 = arith.constant 0 : index
    %c0_9 = arith.constant 0 : index
    %7 = vector.load %arg7[%c0_8, %c0_9] : memref<2x32xf32, #tpu.memory_space<vmem>>, vector<2x32xf32>
    %c0_10 = arith.constant 0 : index
    %c0_11 = arith.constant 0 : index
    %c0_12 = arith.constant 0 : index
    %8 = vector.load %arg1[%c0_10, %c0_11, %c0_12] : memref<8x2x128xbf16, #tpu.memory_space<vmem>>, vector<1x2x128xbf16>
    %9 = vector.shape_cast %8 : vector<1x2x128xbf16> to vector<2x128xbf16>
    %10 = arith.extf %9 : vector<2x128xbf16> to vector<2x128xf32>
    %11 = arith.truncf %6 : vector<2x32xf32> to vector<2x32xbf16>
    %cst = arith.constant dense<0.000000e+00> : vector<2x128xf32>
    %12 = tpu.matmul %11, %3, %cst {dimension_numbers = #tpu.dot_dimension_numbers<[1], [0], [0], [1], [0, 0, 1, 1], [], []>} : vector<2x32xbf16>, vector<32x128xbf16>, vector<2x128xf32> -> vector<2x128xf32>
    %13 = arith.addf %10, %12 : vector<2x128xf32>
    %14 = vector.extract_strided_slice %13 {offsets = [0, 0], sizes = [2, 96], strides = [1, 1]} : vector<2x128xf32> to vector<2x96xf32>
    %15 = arith.negf %14 : vector<2x96xf32>
    %16 = math.exp %15 : vector<2x96xf32>
    %cst_13 = arith.constant 1.000000e+00 : f32
    %17 = vector.broadcast %cst_13 : f32 to vector<2x96xf32>
    %18 = arith.addf %17, %16 : vector<2x96xf32>
    %19 = arith.divf %17, %18 : vector<2x96xf32>
    %20 = vector.extract_strided_slice %13 {offsets = [0, 96], sizes = [2, 32], strides = [1, 1]} : vector<2x128xf32> to vector<2x32xf32>
    %21 = math.tanh %20 : vector<2x32xf32>
    %22 = vector.extract_strided_slice %19 {offsets = [0, 0], sizes = [2, 32], strides = [1, 1]} : vector<2x96xf32> to vector<2x32xf32>
    %23 = vector.extract_strided_slice %19 {offsets = [0, 32], sizes = [2, 32], strides = [1, 1]} : vector<2x96xf32> to vector<2x32xf32>
    %24 = vector.extract_strided_slice %19 {offsets = [0, 64], sizes = [2, 32], strides = [1, 1]} : vector<2x96xf32> to vector<2x32xf32>
    %25 = arith.mulf %23, %7 : vector<2x32xf32>
    %26 = arith.mulf %22, %21 : vector<2x32xf32>
    %27 = arith.addf %25, %26 : vector<2x32xf32>
    %28 = math.tanh %27 : vector<2x32xf32>
    %29 = arith.mulf %24, %28 : vector<2x32xf32>
    %30 = arith.truncf %29 : vector<2x32xf32> to vector<2x32xbf16>
    %cst_14 = arith.constant dense<0.000000e+00> : vector<2x128xf32>
    %31 = tpu.matmul %30, %4, %cst_14 {dimension_numbers = #tpu.dot_dimension_numbers<[1], [0], [0], [1], [0, 0, 1, 1], [], []>} : vector<2x32xbf16>, vector<32x128xbf16>, vector<2x128xf32> -> vector<2x128xf32>
    %32 = vector.broadcast %5 : vector<1x128xf32> to vector<2x128xf32>
    %33 = arith.addf %31, %32 : vector<2x128xf32>
    %34 = arith.negf %33 : vector<2x128xf32>
    %35 = math.exp %34 : vector<2x128xf32>
    %cst_15 = arith.constant 1.000000e+00 : f32
    %36 = vector.broadcast %cst_15 : f32 to vector<2x128xf32>
    %37 = arith.addf %36, %35 : vector<2x128xf32>
    %38 = arith.divf %36, %37 : vector<2x128xf32>
    %c0_16 = arith.constant 0 : index
    %c0_17 = arith.constant 0 : index
    %c0_18 = arith.constant 0 : index
    %39 = vector.load %arg5[%c0_16, %c0_17, %c0_18] : memref<8x2x128xf32, #tpu.memory_space<vmem>>, vector<1x2x128xf32>
    %40 = vector.shape_cast %39 : vector<1x2x128xf32> to vector<2x128xf32>
    %41 = vector.shape_cast %38 : vector<2x128xf32> to vector<1x2x128xf32>
    tpu.vector_store %arg5[%c0_16, %c0_17, %c0_18], %41 {strides = array<i32>} : memref<8x2x128xf32, #tpu.memory_space<vmem>>, vector<1x2x128xf32>,
    %c1 = arith.constant 1 : index
    %c0_19 = arith.constant 0 : index
    %c0_20 = arith.constant 0 : index
    %42 = vector.load %arg1[%c1, %c0_19, %c0_20] : memref<8x2x128xbf16, #tpu.memory_space<vmem>>, vector<1x2x128xbf16>
    %43 = vector.shape_cast %42 : vector<1x2x128xbf16> to vector<2x128xbf16>
    %44 = arith.extf %43 : vector<2x128xbf16> to vector<2x128xf32>
    %45 = arith.truncf %29 : vector<2x32xf32> to vector<2x32xbf16>
    %cst_21 = arith.constant dense<0.000000e+00> : vector<2x128xf32>
    %46 = tpu.matmul %45, %3, %cst_21 {dimension_numbers = #tpu.dot_dimension_numbers<[1], [0], [0], [1], [0, 0, 1, 1], [], []>} : vector<2x32xbf16>, vector<32x128xbf16>, vector<2x128xf32> -> vector<2x128xf32>
    %47 = arith.addf %44, %46 : vector<2x128xf32>
    %48 = vector.extract_strided_slice %47 {offsets = [0, 0], sizes = [2, 96], strides = [1, 1]} : vector<2x128xf32> to vector<2x96xf32>
    %49 = arith.negf %48 : vector<2x96xf32>
    %50 = math.exp %49 : vector<2x96xf32>
    %cst_22 = arith.constant 1.000000e+00 : f32
    %51 = vector.broadcast %cst_22 : f32 to vector<2x96xf32>
    %52 = arith.addf %51, %50 : vector<2x96xf32>
    %53 = arith.divf %51, %52 : vector<2x96xf32>
    %54 = vector.extract_strided_slice %47 {offsets = [0, 96], sizes = [2, 32], strides = [1, 1]} : vector<2x128xf32> to vector<2x32xf32>
    %55 = math.tanh %54 : vector<2x32xf32>
    %56 = vector.extract_strided_slice %53 {offsets = [0, 0], sizes = [2, 32], strides = [1, 1]} : vector<2x96xf32> to vector<2x32xf32>
    %57 = vector.extract_strided_slice %53 {offsets = [0, 32], sizes = [2, 32], strides = [1, 1]} : vector<2x96xf32> to vector<2x32xf32>
    %58 = vector.extract_strided_slice %53 {offsets = [0, 64], sizes = [2, 32], strides = [1, 1]} : vector<2x96xf32> to vector<2x32xf32>
    %59 = arith.mulf %57, %27 : vector<2x32xf32>
    %60 = arith.mulf %56, %55 : vector<2x32xf32>
    %61 = arith.addf %59, %60 : vector<2x32xf32>
    %62 = math.tanh %61 : vector<2x32xf32>
    %63 = arith.mulf %58, %62 : vector<2x32xf32>
    %64 = arith.truncf %63 : vector<2x32xf32> to vector<2x32xbf16>
    %cst_23 = arith.constant dense<0.000000e+00> : vector<2x128xf32>
    %65 = tpu.matmul %64, %4, %cst_23 {dimension_numbers = #tpu.dot_dimension_numbers<[1], [0], [0], [1], [0, 0, 1, 1], [], []>} : vector<2x32xbf16>, vector<32x128xbf16>, vector<2x128xf32> -> vector<2x128xf32>
    %66 = vector.broadcast %5 : vector<1x128xf32> to vector<2x128xf32>
    %67 = arith.addf %65, %66 : vector<2x128xf32>
    %68 = arith.negf %67 : vector<2x128xf32>
    %69 = math.exp %68 : vector<2x128xf32>
    %cst_24 = arith.constant 1.000000e+00 : f32
    %70 = vector.broadcast %cst_24 : f32 to vector<2x128xf32>
    %71 = arith.addf %70, %69 : vector<2x128xf32>
    %72 = arith.divf %70, %71 : vector<2x128xf32>
    %c1_25 = arith.constant 1 : index
    %c0_26 = arith.constant 0 : index
    %c0_27 = arith.constant 0 : index
    %73 = vector.load %arg5[%c1_25, %c0_26, %c0_27] : memref<8x2x128xf32, #tpu.memory_space<vmem>>, vector<1x2x128xf32>
    %74 = vector.shape_cast %73 : vector<1x2x128xf32> to vector<2x128xf32>
    %75 = vector.shape_cast %72 : vector<2x128xf32> to vector<1x2x128xf32>
    tpu.vector_store %arg5[%c1_25, %c0_26, %c0_27], %75 {strides = array<i32>} : memref<8x2x128xf32, #tpu.memory_space<vmem>>, vector<1x2x128xf32>,
    %c2 = arith.constant 2 : index
    %c0_28 = arith.constant 0 : index
    %c0_29 = arith.constant 0 : index
    %76 = vector.load %arg1[%c2, %c0_28, %c0_29] : memref<8x2x128xbf16, #tpu.memory_space<vmem>>, vector<1x2x128xbf16>
    %77 = vector.shape_cast %76 : vector<1x2x128xbf16> to vector<2x128xbf16>
    %78 = arith.extf %77 : vector<2x128xbf16> to vector<2x128xf32>
    %79 = arith.truncf %63 : vector<2x32xf32> to vector<2x32xbf16>
    %cst_30 = arith.constant dense<0.000000e+00> : vector<2x128xf32>
    %80 = tpu.matmul %79, %3, %cst_30 {dimension_numbers = #tpu.dot_dimension_numbers<[1], [0], [0], [1], [0, 0, 1, 1], [], []>} : vector<2x32xbf16>, vector<32x128xbf16>, vector<2x128xf32> -> vector<2x128xf32>
    %81 = arith.addf %78, %80 : vector<2x128xf32>
    %82 = vector.extract_strided_slice %81 {offsets = [0, 0], sizes = [2, 96], strides = [1, 1]} : vector<2x128xf32> to vector<2x96xf32>
    %83 = arith.negf %82 : vector<2x96xf32>
    %84 = math.exp %83 : vector<2x96xf32>
    %cst_31 = arith.constant 1.000000e+00 : f32
    %85 = vector.broadcast %cst_31 : f32 to vector<2x96xf32>
    %86 = arith.addf %85, %84 : vector<2x96xf32>
    %87 = arith.divf %85, %86 : vector<2x96xf32>
    %88 = vector.extract_strided_slice %81 {offsets = [0, 96], sizes = [2, 32], strides = [1, 1]} : vector<2x128xf32> to vector<2x32xf32>
    %89 = math.tanh %88 : vector<2x32xf32>
    %90 = vector.extract_strided_slice %87 {offsets = [0, 0], sizes = [2, 32], strides = [1, 1]} : vector<2x96xf32> to vector<2x32xf32>
    %91 = vector.extract_strided_slice %87 {offsets = [0, 32], sizes = [2, 32], strides = [1, 1]} : vector<2x96xf32> to vector<2x32xf32>
    %92 = vector.extract_strided_slice %87 {offsets = [0, 64], sizes = [2, 32], strides = [1, 1]} : vector<2x96xf32> to vector<2x32xf32>
    %93 = arith.mulf %91, %61 : vector<2x32xf32>
    %94 = arith.mulf %90, %89 : vector<2x32xf32>
    %95 = arith.addf %93, %94 : vector<2x32xf32>
    %96 = math.tanh %95 : vector<2x32xf32>
    %97 = arith.mulf %92, %96 : vector<2x32xf32>
    %98 = arith.truncf %97 : vector<2x32xf32> to vector<2x32xbf16>
    %cst_32 = arith.constant dense<0.000000e+00> : vector<2x128xf32>
    %99 = tpu.matmul %98, %4, %cst_32 {dimension_numbers = #tpu.dot_dimension_numbers<[1], [0], [0], [1], [0, 0, 1, 1], [], []>} : vector<2x32xbf16>, vector<32x128xbf16>, vector<2x128xf32> -> vector<2x128xf32>
    %100 = vector.broadcast %5 : vector<1x128xf32> to vector<2x128xf32>
    %101 = arith.addf %99, %100 : vector<2x128xf32>
    %102 = arith.negf %101 : vector<2x128xf32>
    %103 = math.exp %102 : vector<2x128xf32>
    %cst_33 = arith.constant 1.000000e+00 : f32
    %104 = vector.broadcast %cst_33 : f32 to vector<2x128xf32>
    %105 = arith.addf %104, %103 : vector<2x128xf32>
    %106 = arith.divf %104, %105 : vector<2x128xf32>
    %c2_34 = arith.constant 2 : index
    %c0_35 = arith.constant 0 : index
    %c0_36 = arith.constant 0 : index
    %107 = vector.load %arg5[%c2_34, %c0_35, %c0_36] : memref<8x2x128xf32, #tpu.memory_space<vmem>>, vector<1x2x128xf32>
    %108 = vector.shape_cast %107 : vector<1x2x128xf32> to vector<2x128xf32>
    %109 = vector.shape_cast %106 : vector<2x128xf32> to vector<1x2x128xf32>
    tpu.vector_store %arg5[%c2_34, %c0_35, %c0_36], %109 {strides = array<i32>} : memref<8x2x128xf32, #tpu.memory_space<vmem>>, vector<1x2x128xf32>,
    %c3 = arith.constant 3 : index
    %c0_37 = arith.constant 0 : index
    %c0_38 = arith.constant 0 : index
    %110 = vector.load %arg1[%c3, %c0_37, %c0_38] : memref<8x2x128xbf16, #tpu.memory_space<vmem>>, vector<1x2x128xbf16>
    %111 = vector.shape_cast %110 : vector<1x2x128xbf16> to vector<2x128xbf16>
    %112 = arith.extf %111 : vector<2x128xbf16> to vector<2x128xf32>
    %113 = arith.truncf %97 : vector<2x32xf32> to vector<2x32xbf16>
    %cst_39 = arith.constant dense<0.000000e+00> : vector<2x128xf32>
    %114 = tpu.matmul %113, %3, %cst_39 {dimension_numbers = #tpu.dot_dimension_numbers<[1], [0], [0], [1], [0, 0, 1, 1], [], []>} : vector<2x32xbf16>, vector<32x128xbf16>, vector<2x128xf32> -> vector<2x128xf32>
    %115 = arith.addf %112, %114 : vector<2x128xf32>
    %116 = vector.extract_strided_slice %115 {offsets = [0, 0], sizes = [2, 96], strides = [1, 1]} : vector<2x128xf32> to vector<2x96xf32>
    %117 = arith.negf %116 : vector<2x96xf32>
    %118 = math.exp %117 : vector<2x96xf32>
    %cst_40 = arith.constant 1.000000e+00 : f32
    %119 = vector.broadcast %cst_40 : f32 to vector<2x96xf32>
    %120 = arith.addf %119, %118 : vector<2x96xf32>
    %121 = arith.divf %119, %120 : vector<2x96xf32>
    %122 = vector.extract_strided_slice %115 {offsets = [0, 96], sizes = [2, 32], strides = [1, 1]} : vector<2x128xf32> to vector<2x32xf32>
    %123 = math.tanh %122 : vector<2x32xf32>
    %124 = vector.extract_strided_slice %121 {offsets = [0, 0], sizes = [2, 32], strides = [1, 1]} : vector<2x96xf32> to vector<2x32xf32>
    %125 = vector.extract_strided_slice %121 {offsets = [0, 32], sizes = [2, 32], strides = [1, 1]} : vector<2x96xf32> to vector<2x32xf32>
    %126 = vector.extract_strided_slice %121 {offsets = [0, 64], sizes = [2, 32], strides = [1, 1]} : vector<2x96xf32> to vector<2x32xf32>
    %127 = arith.mulf %125, %95 : vector<2x32xf32>
    %128 = arith.mulf %124, %123 : vector<2x32xf32>
    %129 = arith.addf %127, %128 : vector<2x32xf32>
    %130 = math.tanh %129 : vector<2x32xf32>
    %131 = arith.mulf %126, %130 : vector<2x32xf32>
    %132 = arith.truncf %131 : vector<2x32xf32> to vector<2x32xbf16>
    %cst_41 = arith.constant dense<0.000000e+00> : vector<2x128xf32>
    %133 = tpu.matmul %132, %4, %cst_41 {dimension_numbers = #tpu.dot_dimension_numbers<[1], [0], [0], [1], [0, 0, 1, 1], [], []>} : vector<2x32xbf16>, vector<32x128xbf16>, vector<2x128xf32> -> vector<2x128xf32>
    %134 = vector.broadcast %5 : vector<1x128xf32> to vector<2x128xf32>
    %135 = arith.addf %133, %134 : vector<2x128xf32>
    %136 = arith.negf %135 : vector<2x128xf32>
    %137 = math.exp %136 : vector<2x128xf32>
    %cst_42 = arith.constant 1.000000e+00 : f32
    %138 = vector.broadcast %cst_42 : f32 to vector<2x128xf32>
    %139 = arith.addf %138, %137 : vector<2x128xf32>
    %140 = arith.divf %138, %139 : vector<2x128xf32>
    %c3_43 = arith.constant 3 : index
    %c0_44 = arith.constant 0 : index
    %c0_45 = arith.constant 0 : index
    %141 = vector.load %arg5[%c3_43, %c0_44, %c0_45] : memref<8x2x128xf32, #tpu.memory_space<vmem>>, vector<1x2x128xf32>
    %142 = vector.shape_cast %141 : vector<1x2x128xf32> to vector<2x128xf32>
    %143 = vector.shape_cast %140 : vector<2x128xf32> to vector<1x2x128xf32>
    tpu.vector_store %arg5[%c3_43, %c0_44, %c0_45], %143 {strides = array<i32>} : memref<8x2x128xf32, #tpu.memory_space<vmem>>, vector<1x2x128xf32>,
    %c4 = arith.constant 4 : index
    %c0_46 = arith.constant 0 : index
    %c0_47 = arith.constant 0 : index
    %144 = vector.load %arg1[%c4, %c0_46, %c0_47] : memref<8x2x128xbf16, #tpu.memory_space<vmem>>, vector<1x2x128xbf16>
    %145 = vector.shape_cast %144 : vector<1x2x128xbf16> to vector<2x128xbf16>
    %146 = arith.extf %145 : vector<2x128xbf16> to vector<2x128xf32>
    %147 = arith.truncf %131 : vector<2x32xf32> to vector<2x32xbf16>
    %cst_48 = arith.constant dense<0.000000e+00> : vector<2x128xf32>
    %148 = tpu.matmul %147, %3, %cst_48 {dimension_numbers = #tpu.dot_dimension_numbers<[1], [0], [0], [1], [0, 0, 1, 1], [], []>} : vector<2x32xbf16>, vector<32x128xbf16>, vector<2x128xf32> -> vector<2x128xf32>
    %149 = arith.addf %146, %148 : vector<2x128xf32>
    %150 = vector.extract_strided_slice %149 {offsets = [0, 0], sizes = [2, 96], strides = [1, 1]} : vector<2x128xf32> to vector<2x96xf32>
    %151 = arith.negf %150 : vector<2x96xf32>
    %152 = math.exp %151 : vector<2x96xf32>
    %cst_49 = arith.constant 1.000000e+00 : f32
    %153 = vector.broadcast %cst_49 : f32 to vector<2x96xf32>
    %154 = arith.addf %153, %152 : vector<2x96xf32>
    %155 = arith.divf %153, %154 : vector<2x96xf32>
    %156 = vector.extract_strided_slice %149 {offsets = [0, 96], sizes = [2, 32], strides = [1, 1]} : vector<2x128xf32> to vector<2x32xf32>
    %157 = math.tanh %156 : vector<2x32xf32>
    %158 = vector.extract_strided_slice %155 {offsets = [0, 0], sizes = [2, 32], strides = [1, 1]} : vector<2x96xf32> to vector<2x32xf32>
    %159 = vector.extract_strided_slice %155 {offsets = [0, 32], sizes = [2, 32], strides = [1, 1]} : vector<2x96xf32> to vector<2x32xf32>
    %160 = vector.extract_strided_slice %155 {offsets = [0, 64], sizes = [2, 32], strides = [1, 1]} : vector<2x96xf32> to vector<2x32xf32>
    %161 = arith.mulf %159, %129 : vector<2x32xf32>
    %162 = arith.mulf %158, %157 : vector<2x32xf32>
    %163 = arith.addf %161, %162 : vector<2x32xf32>
    %164 = math.tanh %163 : vector<2x32xf32>
    %165 = arith.mulf %160, %164 : vector<2x32xf32>
    %166 = arith.truncf %165 : vector<2x32xf32> to vector<2x32xbf16>
    %cst_50 = arith.constant dense<0.000000e+00> : vector<2x128xf32>
    %167 = tpu.matmul %166, %4, %cst_50 {dimension_numbers = #tpu.dot_dimension_numbers<[1], [0], [0], [1], [0, 0, 1, 1], [], []>} : vector<2x32xbf16>, vector<32x128xbf16>, vector<2x128xf32> -> vector<2x128xf32>
    %168 = vector.broadcast %5 : vector<1x128xf32> to vector<2x128xf32>
    %169 = arith.addf %167, %168 : vector<2x128xf32>
    %170 = arith.negf %169 : vector<2x128xf32>
    %171 = math.exp %170 : vector<2x128xf32>
    %cst_51 = arith.constant 1.000000e+00 : f32
    %172 = vector.broadcast %cst_51 : f32 to vector<2x128xf32>
    %173 = arith.addf %172, %171 : vector<2x128xf32>
    %174 = arith.divf %172, %173 : vector<2x128xf32>
    %c4_52 = arith.constant 4 : index
    %c0_53 = arith.constant 0 : index
    %c0_54 = arith.constant 0 : index
    %175 = vector.load %arg5[%c4_52, %c0_53, %c0_54] : memref<8x2x128xf32, #tpu.memory_space<vmem>>, vector<1x2x128xf32>
    %176 = vector.shape_cast %175 : vector<1x2x128xf32> to vector<2x128xf32>
    %177 = vector.shape_cast %174 : vector<2x128xf32> to vector<1x2x128xf32>
    tpu.vector_store %arg5[%c4_52, %c0_53, %c0_54], %177 {strides = array<i32>} : memref<8x2x128xf32, #tpu.memory_space<vmem>>, vector<1x2x128xf32>,
    %c5 = arith.constant 5 : index
    %c0_55 = arith.constant 0 : index
    %c0_56 = arith.constant 0 : index
    %178 = vector.load %arg1[%c5, %c0_55, %c0_56] : memref<8x2x128xbf16, #tpu.memory_space<vmem>>, vector<1x2x128xbf16>
    %179 = vector.shape_cast %178 : vector<1x2x128xbf16> to vector<2x128xbf16>
    %180 = arith.extf %179 : vector<2x128xbf16> to vector<2x128xf32>
    %181 = arith.truncf %165 : vector<2x32xf32> to vector<2x32xbf16>
    %cst_57 = arith.constant dense<0.000000e+00> : vector<2x128xf32>
    %182 = tpu.matmul %181, %3, %cst_57 {dimension_numbers = #tpu.dot_dimension_numbers<[1], [0], [0], [1], [0, 0, 1, 1], [], []>} : vector<2x32xbf16>, vector<32x128xbf16>, vector<2x128xf32> -> vector<2x128xf32>
    %183 = arith.addf %180, %182 : vector<2x128xf32>
    %184 = vector.extract_strided_slice %183 {offsets = [0, 0], sizes = [2, 96], strides = [1, 1]} : vector<2x128xf32> to vector<2x96xf32>
    %185 = arith.negf %184 : vector<2x96xf32>
    %186 = math.exp %185 : vector<2x96xf32>
    %cst_58 = arith.constant 1.000000e+00 : f32
    %187 = vector.broadcast %cst_58 : f32 to vector<2x96xf32>
    %188 = arith.addf %187, %186 : vector<2x96xf32>
    %189 = arith.divf %187, %188 : vector<2x96xf32>
    %190 = vector.extract_strided_slice %183 {offsets = [0, 96], sizes = [2, 32], strides = [1, 1]} : vector<2x128xf32> to vector<2x32xf32>
    %191 = math.tanh %190 : vector<2x32xf32>
    %192 = vector.extract_strided_slice %189 {offsets = [0, 0], sizes = [2, 32], strides = [1, 1]} : vector<2x96xf32> to vector<2x32xf32>
    %193 = vector.extract_strided_slice %189 {offsets = [0, 32], sizes = [2, 32], strides = [1, 1]} : vector<2x96xf32> to vector<2x32xf32>
    %194 = vector.extract_strided_slice %189 {offsets = [0, 64], sizes = [2, 32], strides = [1, 1]} : vector<2x96xf32> to vector<2x32xf32>
    %195 = arith.mulf %193, %163 : vector<2x32xf32>
    %196 = arith.mulf %192, %191 : vector<2x32xf32>
    %197 = arith.addf %195, %196 : vector<2x32xf32>
    %198 = math.tanh %197 : vector<2x32xf32>
    %199 = arith.mulf %194, %198 : vector<2x32xf32>
    %200 = arith.truncf %199 : vector<2x32xf32> to vector<2x32xbf16>
    %cst_59 = arith.constant dense<0.000000e+00> : vector<2x128xf32>
    %201 = tpu.matmul %200, %4, %cst_59 {dimension_numbers = #tpu.dot_dimension_numbers<[1], [0], [0], [1], [0, 0, 1, 1], [], []>} : vector<2x32xbf16>, vector<32x128xbf16>, vector<2x128xf32> -> vector<2x128xf32>
    %202 = vector.broadcast %5 : vector<1x128xf32> to vector<2x128xf32>
    %203 = arith.addf %201, %202 : vector<2x128xf32>
    %204 = arith.negf %203 : vector<2x128xf32>
    %205 = math.exp %204 : vector<2x128xf32>
    %cst_60 = arith.constant 1.000000e+00 : f32
    %206 = vector.broadcast %cst_60 : f32 to vector<2x128xf32>
    %207 = arith.addf %206, %205 : vector<2x128xf32>
    %208 = arith.divf %206, %207 : vector<2x128xf32>
    %c5_61 = arith.constant 5 : index
    %c0_62 = arith.constant 0 : index
    %c0_63 = arith.constant 0 : index
    %209 = vector.load %arg5[%c5_61, %c0_62, %c0_63] : memref<8x2x128xf32, #tpu.memory_space<vmem>>, vector<1x2x128xf32>
    %210 = vector.shape_cast %209 : vector<1x2x128xf32> to vector<2x128xf32>
    %211 = vector.shape_cast %208 : vector<2x128xf32> to vector<1x2x128xf32>
    tpu.vector_store %arg5[%c5_61, %c0_62, %c0_63], %211 {strides = array<i32>} : memref<8x2x128xf32, #tpu.memory_space<vmem>>, vector<1x2x128xf32>,
    %c6 = arith.constant 6 : index
    %c0_64 = arith.constant 0 : index
    %c0_65 = arith.constant 0 : index
    %212 = vector.load %arg1[%c6, %c0_64, %c0_65] : memref<8x2x128xbf16, #tpu.memory_space<vmem>>, vector<1x2x128xbf16>
    %213 = vector.shape_cast %212 : vector<1x2x128xbf16> to vector<2x128xbf16>
    %214 = arith.extf %213 : vector<2x128xbf16> to vector<2x128xf32>
    %215 = arith.truncf %199 : vector<2x32xf32> to vector<2x32xbf16>
    %cst_66 = arith.constant dense<0.000000e+00> : vector<2x128xf32>
    %216 = tpu.matmul %215, %3, %cst_66 {dimension_numbers = #tpu.dot_dimension_numbers<[1], [0], [0], [1], [0, 0, 1, 1], [], []>} : vector<2x32xbf16>, vector<32x128xbf16>, vector<2x128xf32> -> vector<2x128xf32>
    %217 = arith.addf %214, %216 : vector<2x128xf32>
    %218 = vector.extract_strided_slice %217 {offsets = [0, 0], sizes = [2, 96], strides = [1, 1]} : vector<2x128xf32> to vector<2x96xf32>
    %219 = arith.negf %218 : vector<2x96xf32>
    %220 = math.exp %219 : vector<2x96xf32>
    %cst_67 = arith.constant 1.000000e+00 : f32
    %221 = vector.broadcast %cst_67 : f32 to vector<2x96xf32>
    %222 = arith.addf %221, %220 : vector<2x96xf32>
    %223 = arith.divf %221, %222 : vector<2x96xf32>
    %224 = vector.extract_strided_slice %217 {offsets = [0, 96], sizes = [2, 32], strides = [1, 1]} : vector<2x128xf32> to vector<2x32xf32>
    %225 = math.tanh %224 : vector<2x32xf32>
    %226 = vector.extract_strided_slice %223 {offsets = [0, 0], sizes = [2, 32], strides = [1, 1]} : vector<2x96xf32> to vector<2x32xf32>
    %227 = vector.extract_strided_slice %223 {offsets = [0, 32], sizes = [2, 32], strides = [1, 1]} : vector<2x96xf32> to vector<2x32xf32>
    %228 = vector.extract_strided_slice %223 {offsets = [0, 64], sizes = [2, 32], strides = [1, 1]} : vector<2x96xf32> to vector<2x32xf32>
    %229 = arith.mulf %227, %197 : vector<2x32xf32>
    %230 = arith.mulf %226, %225 : vector<2x32xf32>
    %231 = arith.addf %229, %230 : vector<2x32xf32>
    %232 = math.tanh %231 : vector<2x32xf32>
    %233 = arith.mulf %228, %232 : vector<2x32xf32>
    %234 = arith.truncf %233 : vector<2x32xf32> to vector<2x32xbf16>
    %cst_68 = arith.constant dense<0.000000e+00> : vector<2x128xf32>
    %235 = tpu.matmul %234, %4, %cst_68 {dimension_numbers = #tpu.dot_dimension_numbers<[1], [0], [0], [1], [0, 0, 1, 1], [], []>} : vector<2x32xbf16>, vector<32x128xbf16>, vector<2x128xf32> -> vector<2x128xf32>
    %236 = vector.broadcast %5 : vector<1x128xf32> to vector<2x128xf32>
    %237 = arith.addf %235, %236 : vector<2x128xf32>
    %238 = arith.negf %237 : vector<2x128xf32>
    %239 = math.exp %238 : vector<2x128xf32>
    %cst_69 = arith.constant 1.000000e+00 : f32
    %240 = vector.broadcast %cst_69 : f32 to vector<2x128xf32>
    %241 = arith.addf %240, %239 : vector<2x128xf32>
    %242 = arith.divf %240, %241 : vector<2x128xf32>
    %c6_70 = arith.constant 6 : index
    %c0_71 = arith.constant 0 : index
    %c0_72 = arith.constant 0 : index
    %243 = vector.load %arg5[%c6_70, %c0_71, %c0_72] : memref<8x2x128xf32, #tpu.memory_space<vmem>>, vector<1x2x128xf32>
    %244 = vector.shape_cast %243 : vector<1x2x128xf32> to vector<2x128xf32>
    %245 = vector.shape_cast %242 : vector<2x128xf32> to vector<1x2x128xf32>
    tpu.vector_store %arg5[%c6_70, %c0_71, %c0_72], %245 {strides = array<i32>} : memref<8x2x128xf32, #tpu.memory_space<vmem>>, vector<1x2x128xf32>,
    %c7 = arith.constant 7 : index
    %c0_73 = arith.constant 0 : index
    %c0_74 = arith.constant 0 : index
    %246 = vector.load %arg1[%c7, %c0_73, %c0_74] : memref<8x2x128xbf16, #tpu.memory_space<vmem>>, vector<1x2x128xbf16>
    %247 = vector.shape_cast %246 : vector<1x2x128xbf16> to vector<2x128xbf16>
    %248 = arith.extf %247 : vector<2x128xbf16> to vector<2x128xf32>
    %249 = arith.truncf %233 : vector<2x32xf32> to vector<2x32xbf16>
    %cst_75 = arith.constant dense<0.000000e+00> : vector<2x128xf32>
    %250 = tpu.matmul %249, %3, %cst_75 {dimension_numbers = #tpu.dot_dimension_numbers<[1], [0], [0], [1], [0, 0, 1, 1], [], []>} : vector<2x32xbf16>, vector<32x128xbf16>, vector<2x128xf32> -> vector<2x128xf32>
    %251 = arith.addf %248, %250 : vector<2x128xf32>
    %252 = vector.extract_strided_slice %251 {offsets = [0, 0], sizes = [2, 96], strides = [1, 1]} : vector<2x128xf32> to vector<2x96xf32>
    %253 = arith.negf %252 : vector<2x96xf32>
    %254 = math.exp %253 : vector<2x96xf32>
    %cst_76 = arith.constant 1.000000e+00 : f32
    %255 = vector.broadcast %cst_76 : f32 to vector<2x96xf32>
    %256 = arith.addf %255, %254 : vector<2x96xf32>
    %257 = arith.divf %255, %256 : vector<2x96xf32>
    %258 = vector.extract_strided_slice %251 {offsets = [0, 96], sizes = [2, 32], strides = [1, 1]} : vector<2x128xf32> to vector<2x32xf32>
    %259 = math.tanh %258 : vector<2x32xf32>
    %260 = vector.extract_strided_slice %257 {offsets = [0, 0], sizes = [2, 32], strides = [1, 1]} : vector<2x96xf32> to vector<2x32xf32>
    %261 = vector.extract_strided_slice %257 {offsets = [0, 32], sizes = [2, 32], strides = [1, 1]} : vector<2x96xf32> to vector<2x32xf32>
    %262 = vector.extract_strided_slice %257 {offsets = [0, 64], sizes = [2, 32], strides = [1, 1]} : vector<2x96xf32> to vector<2x32xf32>
    %263 = arith.mulf %261, %231 : vector<2x32xf32>
    %264 = arith.mulf %260, %259 : vector<2x32xf32>
    %265 = arith.addf %263, %264 : vector<2x32xf32>
    %266 = math.tanh %265 : vector<2x32xf32>
    %267 = arith.mulf %262, %266 : vector<2x32xf32>
    %268 = arith.truncf %267 : vector<2x32xf32> to vector<2x32xbf16>
    %cst_77 = arith.constant dense<0.000000e+00> : vector<2x128xf32>
    %269 = tpu.matmul %268, %4, %cst_77 {dimension_numbers = #tpu.dot_dimension_numbers<[1], [0], [0], [1], [0, 0, 1, 1], [], []>} : vector<2x32xbf16>, vector<32x128xbf16>, vector<2x128xf32> -> vector<2x128xf32>
    %270 = vector.broadcast %5 : vector<1x128xf32> to vector<2x128xf32>
    %271 = arith.addf %269, %270 : vector<2x128xf32>
    %272 = arith.negf %271 : vector<2x128xf32>
    %273 = math.exp %272 : vector<2x128xf32>
    %cst_78 = arith.constant 1.000000e+00 : f32
    %274 = vector.broadcast %cst_78 : f32 to vector<2x128xf32>
    %275 = arith.addf %274, %273 : vector<2x128xf32>
    %276 = arith.divf %274, %275 : vector<2x128xf32>
    %c7_79 = arith.constant 7 : index
    %c0_80 = arith.constant 0 : index
    %c0_81 = arith.constant 0 : index
    %277 = vector.load %arg5[%c7_79, %c0_80, %c0_81] : memref<8x2x128xf32, #tpu.memory_space<vmem>>, vector<1x2x128xf32>
    %278 = vector.shape_cast %277 : vector<1x2x128xf32> to vector<2x128xf32>
    %279 = vector.shape_cast %276 : vector<2x128xf32> to vector<1x2x128xf32>
    tpu.vector_store %arg5[%c7_79, %c0_80, %c0_81], %279 {strides = array<i32>} : memref<8x2x128xf32, #tpu.memory_space<vmem>>, vector<1x2x128xf32>,
    %c0_82 = arith.constant 0 : index
    %c0_83 = arith.constant 0 : index
    %280 = vector.load %arg6[%c0_82, %c0_83] : memref<2x32xf32, #tpu.memory_space<vmem>>, vector<2x32xf32>
    tpu.vector_store %arg6[%c0_82, %c0_83], %267 {strides = array<i32>} : memref<2x32xf32, #tpu.memory_space<vmem>>, vector<2x32xf32>,
    %c0_84 = arith.constant 0 : index
    %c0_85 = arith.constant 0 : index
    %281 = vector.load %arg7[%c0_84, %c0_85] : memref<2x32xf32, #tpu.memory_space<vmem>>, vector<2x32xf32>
    tpu.vector_store %arg7[%c0_84, %c0_85], %265 {strides = array<i32>} : memref<2x32xf32, #tpu.memory_space<vmem>>, vector<2x32xf32>,
    return
  }
  func.func @transform_0(%arg0: i32) -> (i32, i32, i32) {
    %c0_i32 = arith.constant 0 : i32
    %c0_i32_0 = arith.constant 0 : i32
    %c0_i32_1 = arith.constant 0 : i32
    return %arg0, %c0_i32, %c0_i32_0 : i32, i32, i32
  }
  func.func @transform_1(%arg0: i32) -> (i32, i32) {
    %c0_i32 = arith.constant 0 : i32
    %c0_i32_0 = arith.constant 0 : i32
    %c0_i32_1 = arith.constant 0 : i32
    return %c0_i32, %c0_i32_0 : i32, i32
  }
  func.func @transform_2(%arg0: i32) -> (i32, i32) {
    %c0_i32 = arith.constant 0 : i32
    %c0_i32_0 = arith.constant 0 : i32
    %c0_i32_1 = arith.constant 0 : i32
    return %c0_i32, %c0_i32_0 : i32, i32
  }
  func.func @transform_3(%arg0: i32) -> (i32, i32) {
    %c0_i32 = arith.constant 0 : i32
    %c0_i32_0 = arith.constant 0 : i32
    %c0_i32_1 = arith.constant 0 : i32
    return %c0_i32, %c0_i32_0 : i32, i32
  }
  func.func @transform_4(%arg0: i32) -> (i32, i32, i32) {
    %c0_i32 = arith.constant 0 : i32
    %c0_i32_0 = arith.constant 0 : i32
    %c0_i32_1 = arith.constant 0 : i32
    return %arg0, %c0_i32, %c0_i32_0 : i32, i32, i32
  }
}

</mosaic_0001>

<llo_original>
// kernel: music_lstm_forward.6
$region0: #{music_lstm_forward.6}
  #allocation0 [shape = 'u32[]', space=smem, size = 0x4, offset = 0x4, fixed_abs, tag = 'smem constant byte address 0x4 - core index']
  #allocation1 [shape = 'u32[144,128]{1,0:T(1,128)}', space=vmem, size = 0x12000, scoped, tag = 'internal scratch']
  %s0 = inlined_call_operand.vmem [shape: bf16[16,16], index: 0, kind: input, shape index: {}]
  %s1 = inlined_call_operand.vmem [shape: bf16[16,256], index: 1, kind: input, shape index: {}]
  %s2 = inlined_call_operand.vmem [shape: f32[1,256], index: 2, kind: input, shape index: {}]
  %s3 = inlined_call_operand.vmem [shape: bf16[16,256], index: 3, kind: output, shape index: {}]
  %s4 = sld [smem:[#allocation0]]
  $region22: #{music_lstm_forward.6} parent=0
    _
  %s6 = ssub.s32 1, %s4
  %s7 = scalar_select 0, %s6, %s4
  // Predicated region
  $region2: #{music_lstm_forward.6} parent=0 // pred_check
    _
  $region3: #{music_lstm_forward.6} parent=0 // pred_check_branch
    %9 = sbr.rel (0) target = $region5
  $region4: #{music_lstm_forward.6} parent=0 // pred_region
    _
  $region5: #{music_lstm_forward.6} parent=0 // pred_fallthru
    _
  // Predicated region
  $region6: #{music_lstm_forward.6} parent=0 // pred_check
    _
  $region7: #{music_lstm_forward.6} parent=0 // pred_check_branch
    %11 = sbr.rel (0) target = $region9
  $region8: #{music_lstm_forward.6} parent=0 // pred_region
    _
  $region9: #{music_lstm_forward.6} parent=0 // pred_fallthru
    _
  // Predicated region
  $region10: #{music_lstm_forward.6} parent=0 // pred_check
    _
  $region11: #{music_lstm_forward.6} parent=0 // pred_check_branch
    %13 = sbr.rel (0) target = $region13
  $region12: #{music_lstm_forward.6} parent=0 // pred_region
    _
  $region13: #{music_lstm_forward.6} parent=0 // pred_fallthru
    _
  %v15 = vld [vmem:[%s0] sm:$0xf]
  %v16 = vld [vmem:[%s0 + $0x4] sm:$0xf]
  %v17 = vld [vmem:[%s1] sm:$0xff]
  %v18 = vld [vmem:[%s1 + $0x8] sm:$0xff]
  %v19 = vld [vmem:[%s2] sm:$0x3]
  %v21 = vlaneseq
  %v22 = vshrl.u32 %v21, 7
  %v23 = vsub.s32 0, %v22
  %v24 = vrot.slane %v19, %v23
  %v25 = vlaneseq
  %v26 = vshrl.u32 %v25, 7
  %v27 = vsub.s32 1, %v26
  %v28 = vrot.slane %v19, %v27
  %v33 = vunpack.c.l.b16 %v15
  %v34 = vunpack.c.l.b16 %v16
  %v35 = vpack.c.b16 %v34, %v33
  %v38 = vunpack.c.l.b16 %v17
  %v39 = vunpack.c.h.b16 %v17
  %v40 = vunpack.c.l.b16 %v18
  %v41 = vunpack.c.h.b16 %v18
  %v42 = vpack.c.b16 %v40, %v38
  %v43 = vpack.c.b16 %v41, %v39
  %vm46 = vcmask 130048
  %v48 = vsel %vm46, %v35, 0
  %50 = vmatprep.subr.bf16.mxu0 %v43
  %51 = vmatpush1.bf16.msra.mxu0 %v42
  %52 = vmatprep.subr.bf16.mxu0 0
  %53 = vmatpush1.bf16.msra.mxu0 0
  %54 = vmatprep.subr.bf16.mxu0 0
  %55 = vmatpush1.bf16.msra.mxu0 0
  %56 = vmatprep.subr.bf16.mxu0 0
  %57 = vmatpush1.bf16.msra.mxu0 0
  %58 = vmatprep.subr.bf16.mxu0 0
  %59 = vmatpush1.bf16.msra.mxu0 0
  %60 = vmatprep.subr.bf16.mxu0 0
  %61 = vmatpush1.bf16.msra.mxu0 0
  %62 = vmatprep.subr.bf16.mxu0 0
  %63 = vmatpush1.bf16.msra.mxu0 0
  %64 = vmatprep.subr.bf16.mxu0 0
  %65 = vmatpush1.bf16.msra.mxu0 0
  %66 = vmatprep.subr.bf16.mxu0 0
  %67 = vmatpush1.bf16.msra.mxu0 0
  %68 = vmatprep.subr.bf16.mxu0 0
  %69 = vmatpush1.bf16.msra.mxu0 0
  %70 = vmatprep.subr.bf16.mxu0 0
  %71 = vmatpush1.bf16.msra.mxu0 0
  %72 = vmatprep.subr.bf16.mxu0 0
  %73 = vmatpush1.bf16.msra.mxu0 0
  %74 = vmatprep.subr.bf16.mxu0 0
  %75 = vmatpush1.bf16.msra.mxu0 0
  %76 = vmatprep.subr.bf16.mxu0 0
  %77 = vmatpush1.bf16.msra.mxu0 0
  %78 = vmatprep.subr.bf16.mxu0 0
  %79 = vmatpush1.bf16.msra.mxu0 0
  %80 = vmatprep.subr.bf16.mxu0 0
  %81 = vmatpush1.bf16.msra.mxu0 0
  %82 = vmatprep.mubr.bf16.mxu0 0
  %83 = vmatmul.mubr.bf16.gmra.mrb[0].mxu0 %v48
  %v84 = vpop.f32.mrb[0].mxu0
  %v85 = vadd.f32 %v24, %v84
  %v86 = vpop.f32.mrb[0].mxu0
  %v87 = vadd.f32 %v28, %v86
  %v88 = vpop.f32.mrb[0].mxu0
  %v89 = vadd.f32 %v24, %v88
  %v90 = vpop.f32.mrb[0].mxu0
  %v91 = vadd.f32 %v28, %v90
  %92 = vdwg.mxu0
  %v93 = vpack.c.bf16 %v89, %v85
  %v94 = vpack.c.bf16 %v91, %v87
  %v97 = vunpack.c.l.b16 %v93
  %v98 = vunpack.c.l.b16 %v94
  %v99 = vunpack.c.h.b16 %v93
  %v100 = vunpack.c.h.b16 %v94
  %v101 = vpack.c.b16 %v98, %v97
  %v102 = vpack.c.b16 %v100, %v99
  %105 = vst [vmem:[%s3] sm:$0xff] %v101
  %106 = vst [vmem:[%s3 + $0x8] sm:$0xff] %v102
  // Predicated region
  $region14: #{music_lstm_forward.6} parent=0 // pred_check
    _
  $region15: #{music_lstm_forward.6} parent=0 // pred_check_branch
    %108 = sbr.rel (0) target = $region17
  $region16: #{music_lstm_forward.6} parent=0 // pred_region
    _
  $region17: #{music_lstm_forward.6} parent=0 // pred_fallthru
    _
  // Predicated region
  $region18: #{music_lstm_forward.6} parent=0 // pred_check
    _
  $region19: #{music_lstm_forward.6} parent=0 // pred_check_branch
    %110 = sbr.rel (0) target = $region21
  $region20: #{music_lstm_forward.6} parent=0 // pred_region
    _
  $region21: #{music_lstm_forward.6} parent=0 // pred_fallthru
    _

// kernel: music_lstm_forward.8
$region0: #{music_lstm_forward.8}
  #allocation0 [shape = 'u32[]', space=smem, size = 0x4, offset = 0x4, fixed_abs, tag = 'smem constant byte address 0x4 - core index']
  #allocation1 [shape = 'u32[144,128]{1,0:T(1,128)}', space=vmem, size = 0x12000, scoped, tag = 'internal scratch']
  %s0 = inlined_call_operand.vmem [shape: bf16[16,32], index: 0, kind: input, shape index: {}]
  %s1 = inlined_call_operand.vmem [shape: bf16[16,32], index: 1, kind: input, shape index: {}]
  %s2 = inlined_call_operand.vmem [shape: bf16[32,256], index: 2, kind: input, shape index: {}]
  %s3 = inlined_call_operand.vmem [shape: bf16[32,256], index: 3, kind: input, shape index: {}]
  %s4 = inlined_call_operand.vmem [shape: f32[1,256], index: 4, kind: input, shape index: {}]
  %s5 = inlined_call_operand.vmem [shape: bf16[16,256], index: 5, kind: output, shape index: {}]
  %s6 = sld [smem:[#allocation0]]
  $region30: #{music_lstm_forward.8} parent=0
    _
  %s8 = ssub.s32 1, %s6
  %s9 = scalar_select 0, %s8, %s6
  // Predicated region
  $region2: #{music_lstm_forward.8} parent=0 // pred_check
    _
  $region3: #{music_lstm_forward.8} parent=0 // pred_check_branch
    %11 = sbr.rel (0) target = $region5
  $region4: #{music_lstm_forward.8} parent=0 // pred_region
    _
  $region5: #{music_lstm_forward.8} parent=0 // pred_fallthru
    _
  // Predicated region
  $region6: #{music_lstm_forward.8} parent=0 // pred_check
    _
  $region7: #{music_lstm_forward.8} parent=0 // pred_check_branch
    %13 = sbr.rel (0) target = $region9
  $region8: #{music_lstm_forward.8} parent=0 // pred_region
    _
  $region9: #{music_lstm_forward.8} parent=0 // pred_fallthru
    _
  // Predicated region
  $region10: #{music_lstm_forward.8} parent=0 // pred_check
    _
  $region11: #{music_lstm_forward.8} parent=0 // pred_check_branch
    %15 = sbr.rel (0) target = $region13
  $region12: #{music_lstm_forward.8} parent=0 // pred_region
    _
  $region13: #{music_lstm_forward.8} parent=0 // pred_fallthru
    _
  // Predicated region
  $region14: #{music_lstm_forward.8} parent=0 // pred_check
    _
  $region15: #{music_lstm_forward.8} parent=0 // pred_check_branch
    %17 = sbr.rel (0) target = $region17
  $region16: #{music_lstm_forward.8} parent=0 // pred_region
    _
  $region17: #{music_lstm_forward.8} parent=0 // pred_fallthru
    _
  // Predicated region
  $region18: #{music_lstm_forward.8} parent=0 // pred_check
    _
  $region19: #{music_lstm_forward.8} parent=0 // pred_check_branch
    %19 = sbr.rel (0) target = $region21
  $region20: #{music_lstm_forward.8} parent=0 // pred_region
    _
  $region21: #{music_lstm_forward.8} parent=0 // pred_fallthru
    _
  %v21 = vld [vmem:[%s0] sm:$0xf]
  %v22 = vld [vmem:[%s0 + $0x4] sm:$0xf]
  %v23 = vld [vmem:[%s2] sm:$0xff]
  %v24 = vld [vmem:[%s2 + $0x8] sm:$0xff]
  %v25 = vld [vmem:[%s2 + $0x10] sm:$0xff]
  %v26 = vld [vmem:[%s2 + $0x18] sm:$0xff]
  %v27 = vld [vmem:[%s1] sm:$0xf]
  %v28 = vld [vmem:[%s1 + $0x4] sm:$0xf]
  %v29 = vld [vmem:[%s3] sm:$0xff]
  %v30 = vld [vmem:[%s3 + $0x8] sm:$0xff]
  %v31 = vld [vmem:[%s3 + $0x10] sm:$0xff]
  %v32 = vld [vmem:[%s3 + $0x18] sm:$0xff]
  %v35 = vunpack.c.l.b16 %v27
  %v36 = vunpack.c.l.b16 %v28
  %v37 = vpack.c.b16 %v36, %v35
  %v42 = vunpack.c.l.b16 %v29
  %v43 = vunpack.c.h.b16 %v29
  %v44 = vunpack.c.l.b16 %v30
  %v45 = vunpack.c.h.b16 %v30
  %v46 = vunpack.c.l.b16 %v31
  %v47 = vunpack.c.h.b16 %v31
  %v48 = vunpack.c.l.b16 %v32
  %v49 = vunpack.c.h.b16 %v32
  %v50 = vpack.c.b16 %v44, %v42
  %v51 = vpack.c.b16 %v45, %v43
  %v52 = vpack.c.b16 %v48, %v46
  %v53 = vpack.c.b16 %v49, %v47
  %vm58 = vcmask 261120
  %v60 = vsel %vm58, %v37, 0
  %62 = vmatprep.subr.bf16.mxu0 %v51
  %63 = vmatpush1.bf16.msra.mxu0 %v50
  %64 = vmatprep.subr.bf16.mxu0 %v53
  %65 = vmatpush1.bf16.msra.mxu0 %v52
  %66 = vmatprep.subr.bf16.mxu0 0
  %67 = vmatpush1.bf16.msra.mxu0 0
  %68 = vmatprep.subr.bf16.mxu0 0
  %69 = vmatpush1.bf16.msra.mxu0 0
  %70 = vmatprep.subr.bf16.mxu0 0
  %71 = vmatpush1.bf16.msra.mxu0 0
  %72 = vmatprep.subr.bf16.mxu0 0
  %73 = vmatpush1.bf16.msra.mxu0 0
  %74 = vmatprep.subr.bf16.mxu0 0
  %75 = vmatpush1.bf16.msra.mxu0 0
  %76 = vmatprep.subr.bf16.mxu0 0
  %77 = vmatpush1.bf16.msra.mxu0 0
  %78 = vmatprep.subr.bf16.mxu0 0
  %79 = vmatpush1.bf16.msra.mxu0 0
  %80 = vmatprep.subr.bf16.mxu0 0
  %81 = vmatpush1.bf16.msra.mxu0 0
  %82 = vmatprep.subr.bf16.mxu0 0
  %83 = vmatpush1.bf16.msra.mxu0 0
  %84 = vmatprep.subr.bf16.mxu0 0
  %85 = vmatpush1.bf16.msra.mxu0 0
  %86 = vmatprep.subr.bf16.mxu0 0
  %87 = vmatpush1.bf16.msra.mxu0 0
  %88 = vmatprep.subr.bf16.mxu0 0
  %89 = vmatpush1.bf16.msra.mxu0 0
  %90 = vmatprep.subr.bf16.mxu0 0
  %91 = vmatpush1.bf16.msra.mxu0 0
  %92 = vmatprep.subr.bf16.mxu0 0
  %93 = vmatpush1.bf16.msra.mxu0 0
  %94 = vmatprep.mubr.bf16.mxu0 0
  %95 = vmatmul.mubr.bf16.gmra.mrb[0].mxu0 %v60
  %v96 = vpop.f32.mrb[0].mxu0
  %v97 = vadd.f32 0.0, %v96
  %v98 = vpop.f32.mrb[0].mxu0
  %v99 = vadd.f32 0.0, %v98
  %v100 = vpop.f32.mrb[0].mxu0
  %v101 = vadd.f32 0.0, %v100
  %v102 = vpop.f32.mrb[0].mxu0
  %v103 = vadd.f32 0.0, %v102
  %104 = vdwg.mxu0
  %v107 = vunpack.c.l.b16 %v21
  %v108 = vunpack.c.l.b16 %v22
  %v109 = vpack.c.b16 %v108, %v107
  %v114 = vunpack.c.l.b16 %v23
  %v115 = vunpack.c.h.b16 %v23
  %v116 = vunpack.c.l.b16 %v24
  %v117 = vunpack.c.h.b16 %v24
  %v118 = vunpack.c.l.b16 %v25
  %v119 = vunpack.c.h.b16 %v25
  %v120 = vunpack.c.l.b16 %v26
  %v121 = vunpack.c.h.b16 %v26
  %v122 = vpack.c.b16 %v116, %v114
  %v123 = vpack.c.b16 %v117, %v115
  %v124 = vpack.c.b16 %v120, %v118
  %v125 = vpack.c.b16 %v121, %v119
  %v131 = vsel %vm58, %v109, 0
  %133 = vmatprep.subr.bf16.mxu0 %v123
  %134 = vmatpush1.bf16.msra.mxu0 %v122
  %135 = vmatprep.subr.bf16.mxu0 %v125
  %136 = vmatpush1.bf16.msra.mxu0 %v124
  %137 = vmatprep.subr.bf16.mxu0 0
  %138 = vmatpush1.bf16.msra.mxu0 0
  %139 = vmatprep.subr.bf16.mxu0 0
  %140 = vmatpush1.bf16.msra.mxu0 0
  %141 = vmatprep.subr.bf16.mxu0 0
  %142 = vmatpush1.bf16.msra.mxu0 0
  %143 = vmatprep.subr.bf16.mxu0 0
  %144 = vmatpush1.bf16.msra.mxu0 0
  %145 = vmatprep.subr.bf16.mxu0 0
  %146 = vmatpush1.bf16.msra.mxu0 0
  %147 = vmatprep.subr.bf16.mxu0 0
  %148 = vmatpush1.bf16.msra.mxu0 0
  %149 = vmatprep.subr.bf16.mxu0 0
  %150 = vmatpush1.bf16.msra.mxu0 0
  %151 = vmatprep.subr.bf16.mxu0 0
  %152 = vmatpush1.bf16.msra.mxu0 0
  %153 = vmatprep.subr.bf16.mxu0 0
  %154 = vmatpush1.bf16.msra.mxu0 0
  %155 = vmatprep.subr.bf16.mxu0 0
  %156 = vmatpush1.bf16.msra.mxu0 0
  %157 = vmatprep.subr.bf16.mxu0 0
  %158 = vmatpush1.bf16.msra.mxu0 0
  %159 = vmatprep.subr.bf16.mxu0 0
  %160 = vmatpush1.bf16.msra.mxu0 0
  %161 = vmatprep.subr.bf16.mxu0 0
  %162 = vmatpush1.bf16.msra.mxu0 0
  %163 = vmatprep.subr.bf16.mxu0 0
  %164 = vmatpush1.bf16.msra.mxu0 0
  %165 = vmatprep.mubr.bf16.mxu0 0
  %166 = vmatmul.mubr.bf16.gmra.mrb[0].mxu0 %v131
  %v167 = vpop.f32.mrb[0].mxu0
  %v168 = vadd.f32 %v97, %v167
  %v169 = vpop.f32.mrb[0].mxu0
  %v170 = vadd.f32 %v99, %v169
  %v171 = vpop.f32.mrb[0].mxu0
  %v172 = vadd.f32 %v101, %v171
  %v173 = vpop.f32.mrb[0].mxu0
  %v174 = vadd.f32 %v103, %v173
  %175 = vdwg.mxu0
  %v176 = vld [vmem:[%s4] sm:$0x3]
  %v178 = vlaneseq
  %v179 = vshrl.u32 %v178, 7
  %v180 = vsub.s32 0, %v179
  %v181 = vrot.slane %v176, %v180
  %v182 = vlaneseq
  %v183 = vshrl.u32 %v182, 7
  %v184 = vsub.s32 1, %v183
  %v185 = vrot.slane %v176, %v184
  %v188 = vadd.f32 %v168, %v181
  %v189 = vadd.f32 %v170, %v185
  %v190 = vadd.f32 %v172, %v181
  %v191 = vadd.f32 %v174, %v185
  %v192 = vpack.c.bf16 %v190, %v188
  %v193 = vpack.c.bf16 %v191, %v189
  %v196 = vunpack.c.l.b16 %v192
  %v197 = vunpack.c.l.b16 %v193
  %v198 = vunpack.c.h.b16 %v192
  %v199 = vunpack.c.h.b16 %v193
  %v200 = vpack.c.b16 %v197, %v196
  %v201 = vpack.c.b16 %v199, %v198
  %204 = vst [vmem:[%s5] sm:$0xff] %v200
  %205 = vst [vmem:[%s5 + $0x8] sm:$0xff] %v201
  // Predicated region
  $region22: #{music_lstm_forward.8} parent=0 // pred_check
    _
  $region23: #{music_lstm_forward.8} parent=0 // pred_check_branch
    %207 = sbr.rel (0) target = $region25
  $region24: #{music_lstm_forward.8} parent=0 // pred_region
    _
  $region25: #{music_lstm_forward.8} parent=0 // pred_fallthru
    _
  // Predicated region
  $region26: #{music_lstm_forward.8} parent=0 // pred_check
    _
  $region27: #{music_lstm_forward.8} parent=0 // pred_check_branch
    %209 = sbr.rel (0) target = $region29
  $region28: #{music_lstm_forward.8} parent=0 // pred_region
    _
  $region29: #{music_lstm_forward.8} parent=0 // pred_fallthru
    _

// kernel: music_lstm_forward.10
$region0: #{music_lstm_forward.10}
  #allocation0 [shape = 'u32[]', space=smem, size = 0x4, offset = 0x4, fixed_abs, tag = 'smem constant byte address 0x4 - core index']
  #allocation1 [shape = 'u32[144,128]{1,0:T(1,128)}', space=vmem, size = 0x12000, scoped, tag = 'internal scratch']
  %s0 = inlined_call_operand.vmem [shape: bf16[16,32], index: 0, kind: input, shape index: {}]
  %s1 = inlined_call_operand.vmem [shape: bf16[16,32], index: 1, kind: input, shape index: {}]
  %s2 = inlined_call_operand.vmem [shape: bf16[32,128], index: 2, kind: input, shape index: {}]
  %s3 = inlined_call_operand.vmem [shape: bf16[32,128], index: 3, kind: input, shape index: {}]
  %s4 = inlined_call_operand.vmem [shape: f32[1,128], index: 4, kind: input, shape index: {}]
  %s5 = inlined_call_operand.vmem [shape: bf16[16,128], index: 5, kind: output, shape index: {}]
  %s6 = sld [smem:[#allocation0]]
  $region30: #{music_lstm_forward.10} parent=0
    _
  %s8 = ssub.s32 1, %s6
  %s9 = scalar_select 0, %s8, %s6
  // Predicated region
  $region2: #{music_lstm_forward.10} parent=0 // pred_check
    _
  $region3: #{music_lstm_forward.10} parent=0 // pred_check_branch
    %11 = sbr.rel (0) target = $region5
  $region4: #{music_lstm_forward.10} parent=0 // pred_region
    _
  $region5: #{music_lstm_forward.10} parent=0 // pred_fallthru
    _
  // Predicated region
  $region6: #{music_lstm_forward.10} parent=0 // pred_check
    _
  $region7: #{music_lstm_forward.10} parent=0 // pred_check_branch
    %13 = sbr.rel (0) target = $region9
  $region8: #{music_lstm_forward.10} parent=0 // pred_region
    _
  $region9: #{music_lstm_forward.10} parent=0 // pred_fallthru
    _
  // Predicated region
  $region10: #{music_lstm_forward.10} parent=0 // pred_check
    _
  $region11: #{music_lstm_forward.10} parent=0 // pred_check_branch
    %15 = sbr.rel (0) target = $region13
  $region12: #{music_lstm_forward.10} parent=0 // pred_region
    _
  $region13: #{music_lstm_forward.10} parent=0 // pred_fallthru
    _
  // Predicated region
  $region14: #{music_lstm_forward.10} parent=0 // pred_check
    _
  $region15: #{music_lstm_forward.10} parent=0 // pred_check_branch
    %17 = sbr.rel (0) target = $region17
  $region16: #{music_lstm_forward.10} parent=0 // pred_region
    _
  $region17: #{music_lstm_forward.10} parent=0 // pred_fallthru
    _
  // Predicated region
  $region18: #{music_lstm_forward.10} parent=0 // pred_check
    _
  $region19: #{music_lstm_forward.10} parent=0 // pred_check_branch
    %19 = sbr.rel (0) target = $region21
  $region20: #{music_lstm_forward.10} parent=0 // pred_region
    _
  $region21: #{music_lstm_forward.10} parent=0 // pred_fallthru
    _
  %v21 = vld [vmem:[%s0] sm:$0xf]
  %v22 = vld [vmem:[%s0 + $0x4] sm:$0xf]
  %v23 = vld [vmem:[%s2] sm:$0xf]
  %v24 = vld [vmem:[%s2 + $0x4] sm:$0xf]
  %v25 = vld [vmem:[%s2 + $0x8] sm:$0xf]
  %v26 = vld [vmem:[%s2 + $0xc] sm:$0xf]
  %v27 = vld [vmem:[%s1] sm:$0xf]
  %v28 = vld [vmem:[%s1 + $0x4] sm:$0xf]
  %v29 = vld [vmem:[%s3] sm:$0xf]
  %v30 = vld [vmem:[%s3 + $0x4] sm:$0xf]
  %v31 = vld [vmem:[%s3 + $0x8] sm:$0xf]
  %v32 = vld [vmem:[%s3 + $0xc] sm:$0xf]
  %v35 = vunpack.c.l.b16 %v27
  %v36 = vunpack.c.l.b16 %v28
  %v37 = vpack.c.b16 %v36, %v35
  %v42 = vunpack.c.l.b16 %v29
  %v43 = vunpack.c.l.b16 %v30
  %v44 = vunpack.c.l.b16 %v31
  %v45 = vunpack.c.l.b16 %v32
  %v46 = vpack.c.b16 %v43, %v42
  %v47 = vpack.c.b16 %v45, %v44
  %vm50 = vcmask 261120
  %v52 = vsel %vm50, %v37, 0
  %54 = vmatprep.subr.bf16.mxu0 0
  %55 = vmatpush1.bf16.msra.mxu0 %v46
  %56 = vmatprep.subr.bf16.mxu0 0
  %57 = vmatpush1.bf16.msra.mxu0 %v47
  %58 = vmatprep.subr.bf16.mxu0 0
  %59 = vmatpush1.bf16.msra.mxu0 0
  %60 = vmatprep.subr.bf16.mxu0 0
  %61 = vmatpush1.bf16.msra.mxu0 0
  %62 = vmatprep.subr.bf16.mxu0 0
  %63 = vmatpush1.bf16.msra.mxu0 0
  %64 = vmatprep.subr.bf16.mxu0 0
  %65 = vmatpush1.bf16.msra.mxu0 0
  %66 = vmatprep.subr.bf16.mxu0 0
  %67 = vmatpush1.bf16.msra.mxu0 0
  %68 = vmatprep.subr.bf16.mxu0 0
  %69 = vmatpush1.bf16.msra.mxu0 0
  %70 = vmatprep.subr.bf16.mxu0 0
  %71 = vmatpush1.bf16.msra.mxu0 0
  %72 = vmatprep.subr.bf16.mxu0 0
  %73 = vmatpush1.bf16.msra.mxu0 0
  %74 = vmatprep.subr.bf16.mxu0 0
  %75 = vmatpush1.bf16.msra.mxu0 0
  %76 = vmatprep.subr.bf16.mxu0 0
  %77 = vmatpush1.bf16.msra.mxu0 0
  %78 = vmatprep.subr.bf16.mxu0 0
  %79 = vmatpush1.bf16.msra.mxu0 0
  %80 = vmatprep.subr.bf16.mxu0 0
  %81 = vmatpush1.bf16.msra.mxu0 0
  %82 = vmatprep.subr.bf16.mxu0 0
  %83 = vmatpush1.bf16.msra.mxu0 0
  %84 = vmatprep.subr.bf16.mxu0 0
  %85 = vmatpush1.bf16.msra.mxu0 0
  %86 = vmatprep.mubr.bf16.mxu0 0
  %87 = vmatmul.mubr.bf16.gmra.mrb[0].mxu0 %v52
  %v88 = vpop.f32.mrb[0].mxu0
  %v89 = vadd.f32 0.0, %v88
  %v90 = vpop.f32.mrb[0].mxu0
  %v91 = vpop.f32.mrb[0].mxu0
  %v92 = vadd.f32 0.0, %v91
  %v93 = vpop.f32.mrb[0].mxu0
  %94 = vdwg.mxu0
  %v97 = vunpack.c.l.b16 %v21
  %v98 = vunpack.c.l.b16 %v22
  %v99 = vpack.c.b16 %v98, %v97
  %v104 = vunpack.c.l.b16 %v23
  %v105 = vunpack.c.l.b16 %v24
  %v106 = vunpack.c.l.b16 %v25
  %v107 = vunpack.c.l.b16 %v26
  %v108 = vpack.c.b16 %v105, %v104
  %v109 = vpack.c.b16 %v107, %v106
  %v113 = vsel %vm50, %v99, 0
  %115 = vmatprep.subr.bf16.mxu0 0
  %116 = vmatpush1.bf16.msra.mxu0 %v108
  %117 = vmatprep.subr.bf16.mxu0 0
  %118 = vmatpush1.bf16.msra.mxu0 %v109
  %119 = vmatprep.subr.bf16.mxu0 0
  %120 = vmatpush1.bf16.msra.mxu0 0
  %121 = vmatprep.subr.bf16.mxu0 0
  %122 = vmatpush1.bf16.msra.mxu0 0
  %123 = vmatprep.subr.bf16.mxu0 0
  %124 = vmatpush1.bf16.msra.mxu0 0
  %125 = vmatprep.subr.bf16.mxu0 0
  %126 = vmatpush1.bf16.msra.mxu0 0
  %127 = vmatprep.subr.bf16.mxu0 0
  %128 = vmatpush1.bf16.msra.mxu0 0
  %129 = vmatprep.subr.bf16.mxu0 0
  %130 = vmatpush1.bf16.msra.mxu0 0
  %131 = vmatprep.subr.bf16.mxu0 0
  %132 = vmatpush1.bf16.msra.mxu0 0
  %133 = vmatprep.subr.bf16.mxu0 0
  %134 = vmatpush1.bf16.msra.mxu0 0
  %135 = vmatprep.subr.bf16.mxu0 0
  %136 = vmatpush1.bf16.msra.mxu0 0
  %137 = vmatprep.subr.bf16.mxu0 0
  %138 = vmatpush1.bf16.msra.mxu0 0
  %139 = vmatprep.subr.bf16.mxu0 0
  %140 = vmatpush1.bf16.msra.mxu0 0
  %141 = vmatprep.subr.bf16.mxu0 0
  %142 = vmatpush1.bf16.msra.mxu0 0
  %143 = vmatprep.subr.bf16.mxu0 0
  %144 = vmatpush1.bf16.msra.mxu0 0
  %145 = vmatprep.subr.bf16.mxu0 0
  %146 = vmatpush1.bf16.msra.mxu0 0
  %147 = vmatprep.mubr.bf16.mxu0 0
  %148 = vmatmul.mubr.bf16.gmra.mrb[0].mxu0 %v113
  %v149 = vpop.f32.mrb[0].mxu0
  %v150 = vadd.f32 %v89, %v149
  %v151 = vpop.f32.mrb[0].mxu0
  %v152 = vpop.f32.mrb[0].mxu0
  %v153 = vadd.f32 %v92, %v152
  %v154 = vpop.f32.mrb[0].mxu0
  %155 = vdwg.mxu0
  %v156 = vld [vmem:[%s4] sm:$0x1]
  %v158 = vlaneseq
  %v159 = vshrl.u32 %v158, 7
  %v160 = vsub.s32 0, %v159
  %v161 = vrot.slane %v156, %v160
  %v163 = vadd.f32 %v150, %v161
  %v164 = vadd.f32 %v153, %v161
  %v165 = vpack.c.bf16 %v164, %v163
  %v167 = vunpack.c.l.b16 %v165
  %v168 = vunpack.c.h.b16 %v165
  %v169 = vpack.c.b16 %v167, %v167
  %v170 = vpack.c.b16 %v168, %v168
  %173 = vst [vmem:[%s5] sm:$0xf] %v169
  %174 = vst [vmem:[%s5 + $0x4] sm:$0xf] %v170
  // Predicated region
  $region22: #{music_lstm_forward.10} parent=0 // pred_check
    _
  $region23: #{music_lstm_forward.10} parent=0 // pred_check_branch
    %176 = sbr.rel (0) target = $region25
  $region24: #{music_lstm_forward.10} parent=0 // pred_region
    _
  $region25: #{music_lstm_forward.10} parent=0 // pred_fallthru
    _
  // Predicated region
  $region26: #{music_lstm_forward.10} parent=0 // pred_check
    _
  $region27: #{music_lstm_forward.10} parent=0 // pred_check_branch
    %178 = sbr.rel (0) target = $region29
  $region28: #{music_lstm_forward.10} parent=0 // pred_region
    _
  $region29: #{music_lstm_forward.10} parent=0 // pred_fallthru
    _

// kernel: music_lstm_forward.11
$region0: #{music_lstm_forward.11}
  #allocation0 [shape = 'u32[]', space=smem, size = 0x4, offset = 0x4, fixed_abs, tag = 'smem constant byte address 0x4 - core index']
  #allocation1 [shape = 'u32[144,128]{1,0:T(1,128)}', space=vmem, size = 0x12000, scoped, tag = 'internal scratch']
  #allocation2 [shape = 'f32[2,32]{1,0:T(2,128)}', space=vmem, size = 0x400, scoped, tag = 'scratch operand']
  #allocation3 [shape = 'f32[2,32]{1,0:T(2,128)}', space=vmem, size = 0x400, scoped, tag = 'scratch operand']
  %s0 = inlined_call_operand.vmem [shape: bf16[8,2,128], index: 0, kind: input, shape index: {}]
  %s1 = inlined_call_operand.vmem [shape: bf16[32,128], index: 1, kind: input, shape index: {}]
  %s2 = inlined_call_operand.vmem [shape: bf16[32,128], index: 2, kind: input, shape index: {}]
  %s3 = inlined_call_operand.vmem [shape: f32[1,128], index: 3, kind: input, shape index: {}]
  %s4 = inlined_call_operand.vmem [shape: f32[8,2,128], index: 4, kind: output, shape index: {}]
  %s5 = sld [smem:[#allocation0]]
  $region30: #{music_lstm_forward.11} parent=0
    _
  %s7 = ssub.s32 1, %s5
  %s8 = scalar_select 0, %s7, %s5
  // Predicated region
  $region2: #{music_lstm_forward.11} parent=0 // pred_check
    _
  $region3: #{music_lstm_forward.11} parent=0 // pred_check_branch
    %10 = sbr.rel (0) target = $region5
  $region4: #{music_lstm_forward.11} parent=0 // pred_region
    _
  $region5: #{music_lstm_forward.11} parent=0 // pred_fallthru
    _
  // Predicated region
  $region6: #{music_lstm_forward.11} parent=0 // pred_check
    _
  $region7: #{music_lstm_forward.11} parent=0 // pred_check_branch
    %12 = sbr.rel (0) target = $region9
  $region8: #{music_lstm_forward.11} parent=0 // pred_region
    _
  $region9: #{music_lstm_forward.11} parent=0 // pred_fallthru
    _
  // Predicated region
  $region10: #{music_lstm_forward.11} parent=0 // pred_check
    _
  $region11: #{music_lstm_forward.11} parent=0 // pred_check_branch
    %14 = sbr.rel (0) target = $region13
  $region12: #{music_lstm_forward.11} parent=0 // pred_region
    _
  $region13: #{music_lstm_forward.11} parent=0 // pred_fallthru
    _
  // Predicated region
  $region14: #{music_lstm_forward.11} parent=0 // pred_check
    _
  $region15: #{music_lstm_forward.11} parent=0 // pred_check_branch
    %16 = sbr.rel (0) target = $region17
  $region16: #{music_lstm_forward.11} parent=0 // pred_region
    _
  $region17: #{music_lstm_forward.11} parent=0 // pred_fallthru
    _
  %p18 = scmp.eq.s32.totalorder 0, 0
  // Predicated region
  $region18: #{music_lstm_forward.11} parent=0 // pred_check
    %p19 = pneg %p18
  $region19: #{music_lstm_forward.11} parent=0 // pred_check_branch
    %21 = sbr.rel (%p19) target = $region21
  $region20: #{music_lstm_forward.11} parent=0 // pred_region
    %vm22 = vcmask 254976
    %23 = vst.msk [vmem:[#allocation2] sm:$0x3] %vm22, 0.0
    %24 = vst.msk [vmem:[#allocation3] sm:$0x3] %vm22, 0.0
  $region21: #{music_lstm_forward.11} parent=0 // pred_fallthru
    _
  %v25 = vld [vmem:[%s1] sm:$0xf]
  %v26 = vld [vmem:[%s1 + $0x4] sm:$0xf]
  %v27 = vld [vmem:[%s1 + $0x8] sm:$0xf]
  %v28 = vld [vmem:[%s1 + $0xc] sm:$0xf]
  %v29 = vld [vmem:[%s2] sm:$0xf]
  %v30 = vld [vmem:[%s2 + $0x4] sm:$0xf]
  %v31 = vld [vmem:[%s2 + $0x8] sm:$0xf]
  %v32 = vld [vmem:[%s2 + $0xc] sm:$0xf]
  %v33 = vld [vmem:[%s3] sm:$0x1]
  %v34 = vld [vmem:[#allocation2] sm:$0x3]
  %v35 = vld [vmem:[#allocation3] sm:$0x3]
  %v36 = vld [vmem:[%s0] sm:$0x1]
  %v37 = vunpack.c.l.bf16 %v36
  %v38 = vpack.c.bf16 %v34, %v34
  %v43 = vunpack.c.l.b16 %v25
  %v44 = vunpack.c.l.b16 %v26
  %v45 = vunpack.c.l.b16 %v27
  %v46 = vunpack.c.l.b16 %v28
  %v47 = vpack.c.b16 %v44, %v43
  %v48 = vpack.c.b16 %v46, %v45
  %vm51 = vcmask 261120
  %v53 = vsel %vm51, %v38, 0
  %55 = vmatprep.subr.bf16.mxu0 0
  %56 = vmatpush1.bf16.msra.mxu0 %v47
  %57 = vmatprep.subr.bf16.mxu0 0
  %58 = vmatpush1.bf16.msra.mxu0 %v48
  %59 = vmatprep.subr.bf16.mxu0 0
  %60 = vmatpush1.bf16.msra.mxu0 0
  %61 = vmatprep.subr.bf16.mxu0 0
  %62 = vmatpush1.bf16.msra.mxu0 0
  %63 = vmatprep.subr.bf16.mxu0 0
  %64 = vmatpush1.bf16.msra.mxu0 0
  %65 = vmatprep.subr.bf16.mxu0 0
  %66 = vmatpush1.bf16.msra.mxu0 0
  %67 = vmatprep.subr.bf16.mxu0 0
  %68 = vmatpush1.bf16.msra.mxu0 0
  %69 = vmatprep.subr.bf16.mxu0 0
  %70 = vmatpush1.bf16.msra.mxu0 0
  %71 = vmatprep.subr.bf16.mxu0 0
  %72 = vmatpush1.bf16.msra.mxu0 0
  %73 = vmatprep.subr.bf16.mxu0 0
  %74 = vmatpush1.bf16.msra.mxu0 0
  %75 = vmatprep.subr.bf16.mxu0 0
  %76 = vmatpush1.bf16.msra.mxu0 0
  %77 = vmatprep.subr.bf16.mxu0 0
  %78 = vmatpush1.bf16.msra.mxu0 0
  %79 = vmatprep.subr.bf16.mxu0 0
  %80 = vmatpush1.bf16.msra.mxu0 0
  %81 = vmatprep.subr.bf16.mxu0 0
  %82 = vmatpush1.bf16.msra.mxu0 0
  %83 = vmatprep.subr.bf16.mxu0 0
  %84 = vmatpush1.bf16.msra.mxu0 0
  %85 = vmatprep.subr.bf16.mxu0 0
  %86 = vmatpush1.bf16.msra.mxu0 0
  %87 = vmatprep.mubr.bf16.mxu0 0
  %88 = vmatmul.mubr.bf16.gmra.mrb[0].mxu0 %v53
  %v89 = vpop.f32.mrb[0].mxu0
  %v90 = vadd.f32 0.0, %v89
  %v91 = vpop.f32.mrb[0].mxu0
  %v92 = vpop.f32.mrb[0].mxu0
  %v93 = vpop.f32.mrb[0].mxu0
  %94 = vdwg.mxu0
  %v95 = vadd.f32 %v37, %v90
  %v96 = vxor.u32 %v95, 2147483648
  %v97 = vmul.f32 %v96, 1.442695
  %v98 = vpow.pop %v97
  %v99 = vadd.f32 %v98, 1.0
  %v100 = vrcp.pop %v99
  %v101 = vmul.f32 1.0, %v100
  %v102 = vtanh.pop %v95
  %v105 = vunpack.c.l.s4 1983009808
  %v106 = vunpack.c.0.s8 %v105
  %v107 = vlaneseq
  %v108 = vshrl.u32 %v107, 7
  %v109 = vsub.s32 %v106, %v108
  %v110 = vrot.slane %v35, %v109
  %111 = vrot.lane.b32.xlu0 %v110, 32
  %v112 = vpop.permute.xlu0 %111
  %v114 = vmul.f32 %v101, %v112
  %116 = vrot.lane.b32.xlu0 %v102, 32
  %v117 = vpop.permute.xlu0 %116
  %v119 = vmul.f32 %v101, %v117
  %121 = vrot.lane.b32.xlu0 %v119, 32
  %v122 = vpop.permute.xlu0 %121
  %v124 = vadd.f32 %v114, %v122
  %v125 = vtanh.pop %v124
  %127 = vrot.lane.b32.xlu0 %v125, 32
  %v128 = vpop.permute.xlu0 %127
  %v130 = vmul.f32 %v101, %v128
  %v131 = vpack.c.bf16 %v130, %v130
  %v133 = vlaneseq
  %v134 = vshrl.u32 %v133, 7
  %v135 = vsub.s32 0, %v134
  %v136 = vrot.slane %v33, %v135
  %139 = vrot.lane.b32.xlu0 %v131, 64
  %v140 = vpop.permute.xlu0 %139
  %v145 = vunpack.c.l.b16 %v29
  %v146 = vunpack.c.l.b16 %v30
  %v147 = vunpack.c.l.b16 %v31
  %v148 = vunpack.c.l.b16 %v32
  %v149 = vpack.c.b16 %v146, %v145
  %v150 = vpack.c.b16 %v148, %v147
  %v154 = vsel %vm51, %v140, 0
  %156 = vmatprep.subr.bf16.mxu0 0
  %157 = vmatpush1.bf16.msra.mxu0 %v149
  %158 = vmatprep.subr.bf16.mxu0 0
  %159 = vmatpush1.bf16.msra.mxu0 %v150
  %160 = vmatprep.subr.bf16.mxu0 0
  %161 = vmatpush1.bf16.msra.mxu0 0
  %162 = vmatprep.subr.bf16.mxu0 0
  %163 = vmatpush1.bf16.msra.mxu0 0
  %164 = vmatprep.subr.bf16.mxu0 0
  %165 = vmatpush1.bf16.msra.mxu0 0
  %166 = vmatprep.subr.bf16.mxu0 0
  %167 = vmatpush1.bf16.msra.mxu0 0
  %168 = vmatprep.subr.bf16.mxu0 0
  %169 = vmatpush1.bf16.msra.mxu0 0
  %170 = vmatprep.subr.bf16.mxu0 0
  %171 = vmatpush1.bf16.msra.mxu0 0
  %172 = vmatprep.subr.bf16.mxu0 0
  %173 = vmatpush1.bf16.msra.mxu0 0
  %174 = vmatprep.subr.bf16.mxu0 0
  %175 = vmatpush1.bf16.msra.mxu0 0
  %176 = vmatprep.subr.bf16.mxu0 0
  %177 = vmatpush1.bf16.msra.mxu0 0
  %178 = vmatprep.subr.bf16.mxu0 0
  %179 = vmatpush1.bf16.msra.mxu0 0
  %180 = vmatprep.subr.bf16.mxu0 0
  %181 = vmatpush1.bf16.msra.mxu0 0
  %182 = vmatprep.subr.bf16.mxu0 0
  %183 = vmatpush1.bf16.msra.mxu0 0
  %184 = vmatprep.subr.bf16.mxu0 0
  %185 = vmatpush1.bf16.msra.mxu0 0
  %186 = vmatprep.subr.bf16.mxu0 0
  %187 = vmatpush1.bf16.msra.mxu0 0
  %188 = vmatprep.mubr.bf16.mxu0 0
  %189 = vmatmul.mubr.bf16.gmra.mrb[0].mxu0 %v154
  %v190 = vpop.f32.mrb[0].mxu0
  %v191 = vadd.f32 %v136, %v190
  %v192 = vpop.f32.mrb[0].mxu0
  %v193 = vpop.f32.mrb[0].mxu0
  %v194 = vpop.f32.mrb[0].mxu0
  %195 = vdwg.mxu0
  %v196 = vxor.u32 %v191, 2147483648
  %v197 = vmul.f32 %v196, 1.442695
  %v198 = vpow.pop %v197
  %v199 = vadd.f32 %v198, 1.0
  %v200 = vrcp.pop %v199
  %v201 = vmul.f32 1.0, %v200
  %202 = vst [vmem:[%s4] sm:$0x3] %v201
  %s203 = scalar_lea.vmem %s0, 1
  %v204 = vld [vmem:[%s203] sm:$0x1]
  %v205 = vunpack.c.l.bf16 %v204
  %206 = vmatprep.subr.bf16.mxu0 0
  %207 = vmatpush1.bf16.msra.mxu0 %v47
  %208 = vmatprep.subr.bf16.mxu0 0
  %209 = vmatpush1.bf16.msra.mxu0 %v48
  %210 = vmatprep.subr.bf16.mxu0 0
  %211 = vmatpush1.bf16.msra.mxu0 0
  %212 = vmatprep.subr.bf16.mxu0 0
  %213 = vmatpush1.bf16.msra.mxu0 0
  %214 = vmatprep.subr.bf16.mxu0 0
  %215 = vmatpush1.bf16.msra.mxu0 0
  %216 = vmatprep.subr.bf16.mxu0 0
  %217 = vmatpush1.bf16.msra.mxu0 0
  %218 = vmatprep.subr.bf16.mxu0 0
  %219 = vmatpush1.bf16.msra.mxu0 0
  %220 = vmatprep.subr.bf16.mxu0 0
  %221 = vmatpush1.bf16.msra.mxu0 0
  %222 = vmatprep.subr.bf16.mxu0 0
  %223 = vmatpush1.bf16.msra.mxu0 0
  %224 = vmatprep.subr.bf16.mxu0 0
  %225 = vmatpush1.bf16.msra.mxu0 0
  %226 = vmatprep.subr.bf16.mxu0 0
  %227 = vmatpush1.bf16.msra.mxu0 0
  %228 = vmatprep.subr.bf16.mxu0 0
  %229 = vmatpush1.bf16.msra.mxu0 0
  %230 = vmatprep.subr.bf16.mxu0 0
  %231 = vmatpush1.bf16.msra.mxu0 0
  %232 = vmatprep.subr.bf16.mxu0 0
  %233 = vmatpush1.bf16.msra.mxu0 0
  %234 = vmatprep.subr.bf16.mxu0 0
  %235 = vmatpush1.bf16.msra.mxu0 0
  %236 = vmatprep.subr.bf16.mxu0 0
  %237 = vmatpush1.bf16.msra.mxu0 0
  %238 = vmatprep.mubr.bf16.mxu0 0
  %239 = vmatmul.mubr.bf16.gmra.mrb[0].mxu0 %v154
  %v240 = vpop.f32.mrb[0].mxu0
  %v241 = vadd.f32 0.0, %v240
  %v242 = vpop.f32.mrb[0].mxu0
  %v243 = vpop.f32.mrb[0].mxu0
  %v244 = vpop.f32.mrb[0].mxu0
  %245 = vdwg.mxu0
  %v246 = vadd.f32 %v205, %v241
  %v247 = vxor.u32 %v246, 2147483648
  %v248 = vmul.f32 %v247, 1.442695
  %v249 = vpow.pop %v248
  %v250 = vadd.f32 %v249, 1.0
  %v251 = vrcp.pop %v250
  %v252 = vmul.f32 1.0, %v251
  %v253 = vtanh.pop %v246
  %v254 = vmul.f32 %v252, %v124
  %256 = vrot.lane.b32.xlu0 %v253, 32
  %v257 = vpop.permute.xlu0 %256
  %v259 = vmul.f32 %v252, %v257
  %261 = vrot.lane.b32.xlu0 %v259, 32
  %v262 = vpop.permute.xlu0 %261
  %v264 = vadd.f32 %v254, %v262
  %v265 = vtanh.pop %v264
  %267 = vrot.lane.b32.xlu0 %v265, 32
  %v268 = vpop.permute.xlu0 %267
  %v270 = vmul.f32 %v252, %v268
  %v271 = vpack.c.bf16 %v270, %v270
  %273 = vrot.lane.b32.xlu0 %v271, 64
  %v274 = vpop.permute.xlu0 %273
  %v276 = vsel %vm51, %v274, 0
  %278 = vmatprep.subr.bf16.mxu0 0
  %279 = vmatpush1.bf16.msra.mxu0 %v149
  %280 = vmatprep.subr.bf16.mxu0 0
  %281 = vmatpush1.bf16.msra.mxu0 %v150
  %282 = vmatprep.subr.bf16.mxu0 0
  %283 = vmatpush1.bf16.msra.mxu0 0
  %284 = vmatprep.subr.bf16.mxu0 0
  %285 = vmatpush1.bf16.msra.mxu0 0
  %286 = vmatprep.subr.bf16.mxu0 0
  %287 = vmatpush1.bf16.msra.mxu0 0
  %288 = vmatprep.subr.bf16.mxu0 0
  %289 = vmatpush1.bf16.msra.mxu0 0
  %290 = vmatprep.subr.bf16.mxu0 0
  %291 = vmatpush1.bf16.msra.mxu0 0
  %292 = vmatprep.subr.bf16.mxu0 0
  %293 = vmatpush1.bf16.msra.mxu0 0
  %294 = vmatprep.subr.bf16.mxu0 0
  %295 = vmatpush1.bf16.msra.mxu0 0
  %296 = vmatprep.subr.bf16.mxu0 0
  %297 = vmatpush1.bf16.msra.mxu0 0
  %298 = vmatprep.subr.bf16.mxu0 0
  %299 = vmatpush1.bf16.msra.mxu0 0
  %300 = vmatprep.subr.bf16.mxu0 0
  %301 = vmatpush1.bf16.msra.mxu0 0
  %302 = vmatprep.subr.bf16.mxu0 0
  %303 = vmatpush1.bf16.msra.mxu0 0
  %304 = vmatprep.subr.bf16.mxu0 0
  %305 = vmatpush1.bf16.msra.mxu0 0
  %306 = vmatprep.subr.bf16.mxu0 0
  %307 = vmatpush1.bf16.msra.mxu0 0
  %308 = vmatprep.subr.bf16.mxu0 0
  %309 = vmatpush1.bf16.msra.mxu0 0
  %310 = vmatprep.mubr.bf16.mxu0 0
  %311 = vmatmul.mubr.bf16.gmra.mrb[0].mxu0 %v276
  %v312 = vpop.f32.mrb[0].mxu0
  %v313 = vadd.f32 %v136, %v312
  %v314 = vpop.f32.mrb[0].mxu0
  %v315 = vpop.f32.mrb[0].mxu0
  %v316 = vpop.f32.mrb[0].mxu0
  %317 = vdwg.mxu0
  %v318 = vxor.u32 %v313, 2147483648
  %v319 = vmul.f32 %v318, 1.442695
  %v320 = vpow.pop %v319
  %v321 = vadd.f32 %v320, 1.0
  %v322 = vrcp.pop %v321
  %v323 = vmul.f32 1.0, %v322
  %s324 = scalar_lea.vmem %s4, 2
  %325 = vst [vmem:[%s324] sm:$0x3] %v323
  %s326 = scalar_lea.vmem %s0, 2
  %v327 = vld [vmem:[%s326] sm:$0x1]
  %v328 = vunpack.c.l.bf16 %v327
  %329 = vmatprep.subr.bf16.mxu0 0
  %330 = vmatpush1.bf16.msra.mxu0 %v47
  %331 = vmatprep.subr.bf16.mxu0 0
  %332 = vmatpush1.bf16.msra.mxu0 %v48
  %333 = vmatprep.subr.bf16.mxu0 0
  %334 = vmatpush1.bf16.msra.mxu0 0
  %335 = vmatprep.subr.bf16.mxu0 0
  %336 = vmatpush1.bf16.msra.mxu0 0
  %337 = vmatprep.subr.bf16.mxu0 0
  %338 = vmatpush1.bf16.msra.mxu0 0
  %339 = vmatprep.subr.bf16.mxu0 0
  %340 = vmatpush1.bf16.msra.mxu0 0
  %341 = vmatprep.subr.bf16.mxu0 0
  %342 = vmatpush1.bf16.msra.mxu0 0
  %343 = vmatprep.subr.bf16.mxu0 0
  %344 = vmatpush1.bf16.msra.mxu0 0
  %345 = vmatprep.subr.bf16.mxu0 0
  %346 = vmatpush1.bf16.msra.mxu0 0
  %347 = vmatprep.subr.bf16.mxu0 0
  %348 = vmatpush1.bf16.msra.mxu0 0
  %349 = vmatprep.subr.bf16.mxu0 0
  %350 = vmatpush1.bf16.msra.mxu0 0
  %351 = vmatprep.subr.bf16.mxu0 0
  %352 = vmatpush1.bf16.msra.mxu0 0
  %353 = vmatprep.subr.bf16.mxu0 0
  %354 = vmatpush1.bf16.msra.mxu0 0
  %355 = vmatprep.subr.bf16.mxu0 0
  %356 = vmatpush1.bf16.msra.mxu0 0
  %357 = vmatprep.subr.bf16.mxu0 0
  %358 = vmatpush1.bf16.msra.mxu0 0
  %359 = vmatprep.subr.bf16.mxu0 0
  %360 = vmatpush1.bf16.msra.mxu0 0
  %361 = vmatprep.mubr.bf16.mxu0 0
  %362 = vmatmul.mubr.bf16.gmra.mrb[0].mxu0 %v276
  %v363 = vpop.f32.mrb[0].mxu0
  %v364 = vadd.f32 0.0, %v363
  %v365 = vpop.f32.mrb[0].mxu0
  %v366 = vpop.f32.mrb[0].mxu0
  %v367 = vpop.f32.mrb[0].mxu0
  %368 = vdwg.mxu0
  %v369 = vadd.f32 %v328, %v364
  %v370 = vxor.u32 %v369, 2147483648
  %v371 = vmul.f32 %v370, 1.442695
  %v372 = vpow.pop %v371
  %v373 = vadd.f32 %v372, 1.0
  %v374 = vrcp.pop %v373
  %v375 = vmul.f32 1.0, %v374
  %v376 = vtanh.pop %v369
  %v377 = vmul.f32 %v375, %v264
  %379 = vrot.lane.b32.xlu0 %v376, 32
  %v380 = vpop.permute.xlu0 %379
  %v382 = vmul.f32 %v375, %v380
  %384 = vrot.lane.b32.xlu0 %v382, 32
  %v385 = vpop.permute.xlu0 %384
  %v387 = vadd.f32 %v377, %v385
  %v388 = vtanh.pop %v387
  %390 = vrot.lane.b32.xlu0 %v388, 32
  %v391 = vpop.permute.xlu0 %390
  %v393 = vmul.f32 %v375, %v391
  %v394 = vpack.c.bf16 %v393, %v393
  %396 = vrot.lane.b32.xlu0 %v394, 64
  %v397 = vpop.permute.xlu0 %396
  %v399 = vsel %vm51, %v397, 0
  %401 = vmatprep.subr.bf16.mxu0 0
  %402 = vmatpush1.bf16.msra.mxu0 %v149
  %403 = vmatprep.subr.bf16.mxu0 0
  %404 = vmatpush1.bf16.msra.mxu0 %v150
  %405 = vmatprep.subr.bf16.mxu0 0
  %406 = vmatpush1.bf16.msra.mxu0 0
  %407 = vmatprep.subr.bf16.mxu0 0
  %408 = vmatpush1.bf16.msra.mxu0 0
  %409 = vmatprep.subr.bf16.mxu0 0
  %410 = vmatpush1.bf16.msra.mxu0 0
  %411 = vmatprep.subr.bf16.mxu0 0
  %412 = vmatpush1.bf16.msra.mxu0 0
  %413 = vmatprep.subr.bf16.mxu0 0
  %414 = vmatpush1.bf16.msra.mxu0 0
  %415 = vmatprep.subr.bf16.mxu0 0
  %416 = vmatpush1.bf16.msra.mxu0 0
  %417 = vmatprep.subr.bf16.mxu0 0
  %418 = vmatpush1.bf16.msra.mxu0 0
  %419 = vmatprep.subr.bf16.mxu0 0
  %420 = vmatpush1.bf16.msra.mxu0 0
  %421 = vmatprep.subr.bf16.mxu0 0
  %422 = vmatpush1.bf16.msra.mxu0 0
  %423 = vmatprep.subr.bf16.mxu0 0
  %424 = vmatpush1.bf16.msra.mxu0 0
  %425 = vmatprep.subr.bf16.mxu0 0
  %426 = vmatpush1.bf16.msra.mxu0 0
  %427 = vmatprep.subr.bf16.mxu0 0
  %428 = vmatpush1.bf16.msra.mxu0 0
  %429 = vmatprep.subr.bf16.mxu0 0
  %430 = vmatpush1.bf16.msra.mxu0 0
  %431 = vmatprep.subr.bf16.mxu0 0
  %432 = vmatpush1.bf16.msra.mxu0 0
  %433 = vmatprep.mubr.bf16.mxu0 0
  %434 = vmatmul.mubr.bf16.gmra.mrb[0].mxu0 %v399
  %v435 = vpop.f32.mrb[0].mxu0
  %v436 = vadd.f32 %v136, %v435
  %v437 = vpop.f32.mrb[0].mxu0
  %v438 = vpop.f32.mrb[0].mxu0
  %v439 = vpop.f32.mrb[0].mxu0
  %440 = vdwg.mxu0
  %v441 = vxor.u32 %v436, 2147483648
  %v442 = vmul.f32 %v441, 1.442695
  %v443 = vpow.pop %v442
  %v444 = vadd.f32 %v443, 1.0
  %v445 = vrcp.pop %v444
  %v446 = vmul.f32 1.0, %v445
  %s447 = scalar_lea.vmem %s4, 4
  %448 = vst [vmem:[%s447] sm:$0x3] %v446
  %s449 = scalar_lea.vmem %s0, 3
  %v450 = vld [vmem:[%s449] sm:$0x1]
  %v451 = vunpack.c.l.bf16 %v450
  %452 = vmatprep.subr.bf16.mxu0 0
  %453 = vmatpush1.bf16.msra.mxu0 %v47
  %454 = vmatprep.subr.bf16.mxu0 0
  %455 = vmatpush1.bf16.msra.mxu0 %v48
  %456 = vmatprep.subr.bf16.mxu0 0
  %457 = vmatpush1.bf16.msra.mxu0 0
  %458 = vmatprep.subr.bf16.mxu0 0
  %459 = vmatpush1.bf16.msra.mxu0 0
  %460 = vmatprep.subr.bf16.mxu0 0
  %461 = vmatpush1.bf16.msra.mxu0 0
  %462 = vmatprep.subr.bf16.mxu0 0
  %463 = vmatpush1.bf16.msra.mxu0 0
  %464 = vmatprep.subr.bf16.mxu0 0
  %465 = vmatpush1.bf16.msra.mxu0 0
  %466 = vmatprep.subr.bf16.mxu0 0
  %467 = vmatpush1.bf16.msra.mxu0 0
  %468 = vmatprep.subr.bf16.mxu0 0
  %469 = vmatpush1.bf16.msra.mxu0 0
  %470 = vmatprep.subr.bf16.mxu0 0
  %471 = vmatpush1.bf16.msra.mxu0 0
  %472 = vmatprep.subr.bf16.mxu0 0
  %473 = vmatpush1.bf16.msra.mxu0 0
  %474 = vmatprep.subr.bf16.mxu0 0
  %475 = vmatpush1.bf16.msra.mxu0 0
  %476 = vmatprep.subr.bf16.mxu0 0
  %477 = vmatpush1.bf16.msra.mxu0 0
  %478 = vmatprep.subr.bf16.mxu0 0
  %479 = vmatpush1.bf16.msra.mxu0 0
  %480 = vmatprep.subr.bf16.mxu0 0
  %481 = vmatpush1.bf16.msra.mxu0 0
  %482 = vmatprep.subr.bf16.mxu0 0
  %483 = vmatpush1.bf16.msra.mxu0 0
  %484 = vmatprep.mubr.bf16.mxu0 0
  %485 = vmatmul.mubr.bf16.gmra.mrb[0].mxu0 %v399
  %v486 = vpop.f32.mrb[0].mxu0
  %v487 = vadd.f32 0.0, %v486
  %v488 = vpop.f32.mrb[0].mxu0
  %v489 = vpop.f32.mrb[0].mxu0
  %v490 = vpop.f32.mrb[0].mxu0
  %491 = vdwg.mxu0
  %v492 = vadd.f32 %v451, %v487
  %v493 = vxor.u32 %v492, 2147483648
  %v494 = vmul.f32 %v493, 1.442695
  %v495 = vpow.pop %v494
  %v496 = vadd.f32 %v495, 1.0
  %v497 = vrcp.pop %v496
  %v498 = vmul.f32 1.0, %v497
  %v499 = vtanh.pop %v492
  %v500 = vmul.f32 %v498, %v387
  %502 = vrot.lane.b32.xlu0 %v499, 32
  %v503 = vpop.permute.xlu0 %502
  %v505 = vmul.f32 %v498, %v503
  %507 = vrot.lane.b32.xlu0 %v505, 32
  %v508 = vpop.permute.xlu0 %507
  %v510 = vadd.f32 %v500, %v508
  %v511 = vtanh.pop %v510
  %513 = vrot.lane.b32.xlu0 %v511, 32
  %v514 = vpop.permute.xlu0 %513
  %v516 = vmul.f32 %v498, %v514
  %v517 = vpack.c.bf16 %v516, %v516
  %519 = vrot.lane.b32.xlu0 %v517, 64
  %v520 = vpop.permute.xlu0 %519
  %v522 = vsel %vm51, %v520, 0
  %524 = vmatprep.subr.bf16.mxu0 0
  %525 = vmatpush1.bf16.msra.mxu0 %v149
  %526 = vmatprep.subr.bf16.mxu0 0
  %527 = vmatpush1.bf16.msra.mxu0 %v150
  %528 = vmatprep.subr.bf16.mxu0 0
  %529 = vmatpush1.bf16.msra.mxu0 0
  %530 = vmatprep.subr.bf16.mxu0 0
  %531 = vmatpush1.bf16.msra.mxu0 0
  %532 = vmatprep.subr.bf16.mxu0 0
  %533 = vmatpush1.bf16.msra.mxu0 0
  %534 = vmatprep.subr.bf16.mxu0 0
  %535 = vmatpush1.bf16.msra.mxu0 0
  %536 = vmatprep.subr.bf16.mxu0 0
  %537 = vmatpush1.bf16.msra.mxu0 0
  %538 = vmatprep.subr.bf16.mxu0 0
  %539 = vmatpush1.bf16.msra.mxu0 0
  %540 = vmatprep.subr.bf16.mxu0 0
  %541 = vmatpush1.bf16.msra.mxu0 0
  %542 = vmatprep.subr.bf16.mxu0 0
  %543 = vmatpush1.bf16.msra.mxu0 0
  %544 = vmatprep.subr.bf16.mxu0 0
  %545 = vmatpush1.bf16.msra.mxu0 0
  %546 = vmatprep.subr.bf16.mxu0 0
  %547 = vmatpush1.bf16.msra.mxu0 0
  %548 = vmatprep.subr.bf16.mxu0 0
  %549 = vmatpush1.bf16.msra.mxu0 0
  %550 = vmatprep.subr.bf16.mxu0 0
  %551 = vmatpush1.bf16.msra.mxu0 0
  %552 = vmatprep.subr.bf16.mxu0 0
  %553 = vmatpush1.bf16.msra.mxu0 0
  %554 = vmatprep.subr.bf16.mxu0 0
  %555 = vmatpush1.bf16.msra.mxu0 0
  %556 = vmatprep.mubr.bf16.mxu0 0
  %557 = vmatmul.mubr.bf16.gmra.mrb[0].mxu0 %v522
  %v558 = vpop.f32.mrb[0].mxu0
  %v559 = vadd.f32 %v136, %v558
  %v560 = vpop.f32.mrb[0].mxu0
  %v561 = vpop.f32.mrb[0].mxu0
  %v562 = vpop.f32.mrb[0].mxu0
  %563 = vdwg.mxu0
  %v564 = vxor.u32 %v559, 2147483648
  %v565 = vmul.f32 %v564, 1.442695
  %v566 = vpow.pop %v565
  %v567 = vadd.f32 %v566, 1.0
  %v568 = vrcp.pop %v567
  %v569 = vmul.f32 1.0, %v568
  %s570 = scalar_lea.vmem %s4, 6
  %571 = vst [vmem:[%s570] sm:$0x3] %v569
  %s572 = scalar_lea.vmem %s0, 4
  %v573 = vld [vmem:[%s572] sm:$0x1]
  %v574 = vunpack.c.l.bf16 %v573
  %575 = vmatprep.subr.bf16.mxu0 0
  %576 = vmatpush1.bf16.msra.mxu0 %v47
  %577 = vmatprep.subr.bf16.mxu0 0
  %578 = vmatpush1.bf16.msra.mxu0 %v48
  %579 = vmatprep.subr.bf16.mxu0 0
  %580 = vmatpush1.bf16.msra.mxu0 0
  %581 = vmatprep.subr.bf16.mxu0 0
  %582 = vmatpush1.bf16.msra.mxu0 0
  %583 = vmatprep.subr.bf16.mxu0 0
  %584 = vmatpush1.bf16.msra.mxu0 0
  %585 = vmatprep.subr.bf16.mxu0 0
  %586 = vmatpush1.bf16.msra.mxu0 0
  %587 = vmatprep.subr.bf16.mxu0 0
  %588 = vmatpush1.bf16.msra.mxu0 0
  %589 = vmatprep.subr.bf16.mxu0 0
  %590 = vmatpush1.bf16.msra.mxu0 0
  %591 = vmatprep.subr.bf16.mxu0 0
  %592 = vmatpush1.bf16.msra.mxu0 0
  %593 = vmatprep.subr.bf16.mxu0 0
  %594 = vmatpush1.bf16.msra.mxu0 0
  %595 = vmatprep.subr.bf16.mxu0 0
  %596 = vmatpush1.bf16.msra.mxu0 0
  %597 = vmatprep.subr.bf16.mxu0 0
  %598 = vmatpush1.bf16.msra.mxu0 0
  %599 = vmatprep.subr.bf16.mxu0 0
  %600 = vmatpush1.bf16.msra.mxu0 0
  %601 = vmatprep.subr.bf16.mxu0 0
  %602 = vmatpush1.bf16.msra.mxu0 0
  %603 = vmatprep.subr.bf16.mxu0 0
  %604 = vmatpush1.bf16.msra.mxu0 0
  %605 = vmatprep.subr.bf16.mxu0 0
  %606 = vmatpush1.bf16.msra.mxu0 0
  %607 = vmatprep.mubr.bf16.mxu0 0
  %608 = vmatmul.mubr.bf16.gmra.mrb[0].mxu0 %v522
  %v609 = vpop.f32.mrb[0].mxu0
  %v610 = vadd.f32 0.0, %v609
  %v611 = vpop.f32.mrb[0].mxu0
  %v612 = vpop.f32.mrb[0].mxu0
  %v613 = vpop.f32.mrb[0].mxu0
  %614 = vdwg.mxu0
  %v615 = vadd.f32 %v574, %v610
  %v616 = vxor.u32 %v615, 2147483648
  %v617 = vmul.f32 %v616, 1.442695
  %v618 = vpow.pop %v617
  %v619 = vadd.f32 %v618, 1.0
  %v620 = vrcp.pop %v619
  %v621 = vmul.f32 1.0, %v620
  %v622 = vtanh.pop %v615
  %v623 = vmul.f32 %v621, %v510
  %625 = vrot.lane.b32.xlu0 %v622, 32
  %v626 = vpop.permute.xlu0 %625
  %v628 = vmul.f32 %v621, %v626
  %630 = vrot.lane.b32.xlu0 %v628, 32
  %v631 = vpop.permute.xlu0 %630
  %v633 = vadd.f32 %v623, %v631
  %v634 = vtanh.pop %v633
  %636 = vrot.lane.b32.xlu0 %v634, 32
  %v637 = vpop.permute.xlu0 %636
  %v639 = vmul.f32 %v621, %v637
  %v640 = vpack.c.bf16 %v639, %v639
  %642 = vrot.lane.b32.xlu0 %v640, 64
  %v643 = vpop.permute.xlu0 %642
  %v645 = vsel %vm51, %v643, 0
  %647 = vmatprep.subr.bf16.mxu0 0
  %648 = vmatpush1.bf16.msra.mxu0 %v149
  %649 = vmatprep.subr.bf16.mxu0 0
  %650 = vmatpush1.bf16.msra.mxu0 %v150
  %651 = vmatprep.subr.bf16.mxu0 0
  %652 = vmatpush1.bf16.msra.mxu0 0
  %653 = vmatprep.subr.bf16.mxu0 0
  %654 = vmatpush1.bf16.msra.mxu0 0
  %655 = vmatprep.subr.bf16.mxu0 0
  %656 = vmatpush1.bf16.msra.mxu0 0
  %657 = vmatprep.subr.bf16.mxu0 0
  %658 = vmatpush1.bf16.msra.mxu0 0
  %659 = vmatprep.subr.bf16.mxu0 0
  %660 = vmatpush1.bf16.msra.mxu0 0
  %661 = vmatprep.subr.bf16.mxu0 0
  %662 = vmatpush1.bf16.msra.mxu0 0
  %663 = vmatprep.subr.bf16.mxu0 0
  %664 = vmatpush1.bf16.msra.mxu0 0
  %665 = vmatprep.subr.bf16.mxu0 0
  %666 = vmatpush1.bf16.msra.mxu0 0
  %667 = vmatprep.subr.bf16.mxu0 0
  %668 = vmatpush1.bf16.msra.mxu0 0
  %669 = vmatprep.subr.bf16.mxu0 0
  %670 = vmatpush1.bf16.msra.mxu0 0
  %671 = vmatprep.subr.bf16.mxu0 0
  %672 = vmatpush1.bf16.msra.mxu0 0
  %673 = vmatprep.subr.bf16.mxu0 0
  %674 = vmatpush1.bf16.msra.mxu0 0
  %675 = vmatprep.subr.bf16.mxu0 0
  %676 = vmatpush1.bf16.msra.mxu0 0
  %677 = vmatprep.subr.bf16.mxu0 0
  %678 = vmatpush1.bf16.msra.mxu0 0
  %679 = vmatprep.mubr.bf16.mxu0 0
  %680 = vmatmul.mubr.bf16.gmra.mrb[0].mxu0 %v645
  %v681 = vpop.f32.mrb[0].mxu0
  %v682 = vadd.f32 %v136, %v681
  %v683 = vpop.f32.mrb[0].mxu0
  %v684 = vpop.f32.mrb[0].mxu0
  %v685 = vpop.f32.mrb[0].mxu0
  %686 = vdwg.mxu0
  %v687 = vxor.u32 %v682, 2147483648
  %v688 = vmul.f32 %v687, 1.442695
  %v689 = vpow.pop %v688
  %v690 = vadd.f32 %v689, 1.0
  %v691 = vrcp.pop %v690
  %v692 = vmul.f32 1.0, %v691
  %s693 = scalar_lea.vmem %s4, 8
  %694 = vst [vmem:[%s693] sm:$0x3] %v692
  %s695 = scalar_lea.vmem %s0, 5
  %v696 = vld [vmem:[%s695] sm:$0x1]
  %v697 = vunpack.c.l.bf16 %v696
  %698 = vmatprep.subr.bf16.mxu0 0
  %699 = vmatpush1.bf16.msra.mxu0 %v47
  %700 = vmatprep.subr.bf16.mxu0 0
  %701 = vmatpush1.bf16.msra.mxu0 %v48
  %702 = vmatprep.subr.bf16.mxu0 0
  %703 = vmatpush1.bf16.msra.mxu0 0
  %704 = vmatprep.subr.bf16.mxu0 0
  %705 = vmatpush1.bf16.msra.mxu0 0
  %706 = vmatprep.subr.bf16.mxu0 0
  %707 = vmatpush1.bf16.msra.mxu0 0
  %708 = vmatprep.subr.bf16.mxu0 0
  %709 = vmatpush1.bf16.msra.mxu0 0
  %710 = vmatprep.subr.bf16.mxu0 0
  %711 = vmatpush1.bf16.msra.mxu0 0
  %712 = vmatprep.subr.bf16.mxu0 0
  %713 = vmatpush1.bf16.msra.mxu0 0
  %714 = vmatprep.subr.bf16.mxu0 0
  %715 = vmatpush1.bf16.msra.mxu0 0
  %716 = vmatprep.subr.bf16.mxu0 0
  %717 = vmatpush1.bf16.msra.mxu0 0
  %718 = vmatprep.subr.bf16.mxu0 0
  %719 = vmatpush1.bf16.msra.mxu0 0
  %720 = vmatprep.subr.bf16.mxu0 0
  %721 = vmatpush1.bf16.msra.mxu0 0
  %722 = vmatprep.subr.bf16.mxu0 0
  %723 = vmatpush1.bf16.msra.mxu0 0
  %724 = vmatprep.subr.bf16.mxu0 0
  %725 = vmatpush1.bf16.msra.mxu0 0
  %726 = vmatprep.subr.bf16.mxu0 0
  %727 = vmatpush1.bf16.msra.mxu0 0
  %728 = vmatprep.subr.bf16.mxu0 0
  %729 = vmatpush1.bf16.msra.mxu0 0
  %730 = vmatprep.mubr.bf16.mxu0 0
  %731 = vmatmul.mubr.bf16.gmra.mrb[0].mxu0 %v645
  %v732 = vpop.f32.mrb[0].mxu0
  %v733 = vadd.f32 0.0, %v732
  %v734 = vpop.f32.mrb[0].mxu0
  %v735 = vpop.f32.mrb[0].mxu0
  %v736 = vpop.f32.mrb[0].mxu0
  %737 = vdwg.mxu0
  %v738 = vadd.f32 %v697, %v733
  %v739 = vxor.u32 %v738, 2147483648
  %v740 = vmul.f32 %v739, 1.442695
  %v741 = vpow.pop %v740
  %v742 = vadd.f32 %v741, 1.0
  %v743 = vrcp.pop %v742
  %v744 = vmul.f32 1.0, %v743
  %v745 = vtanh.pop %v738
  %v746 = vmul.f32 %v744, %v633
  %748 = vrot.lane.b32.xlu0 %v745, 32
  %v749 = vpop.permute.xlu0 %748
  %v751 = vmul.f32 %v744, %v749
  %753 = vrot.lane.b32.xlu0 %v751, 32
  %v754 = vpop.permute.xlu0 %753
  %v756 = vadd.f32 %v746, %v754
  %v757 = vtanh.pop %v756
  %759 = vrot.lane.b32.xlu0 %v757, 32
  %v760 = vpop.permute.xlu0 %759
  %v762 = vmul.f32 %v744, %v760
  %v763 = vpack.c.bf16 %v762, %v762
  %765 = vrot.lane.b32.xlu0 %v763, 64
  %v766 = vpop.permute.xlu0 %765
  %v768 = vsel %vm51, %v766, 0
  %770 = vmatprep.subr.bf16.mxu0 0
  %771 = vmatpush1.bf16.msra.mxu0 %v149
  %772 = vmatprep.subr.bf16.mxu0 0
  %773 = vmatpush1.bf16.msra.mxu0 %v150
  %774 = vmatprep.subr.bf16.mxu0 0
  %775 = vmatpush1.bf16.msra.mxu0 0
  %776 = vmatprep.subr.bf16.mxu0 0
  %777 = vmatpush1.bf16.msra.mxu0 0
  %778 = vmatprep.subr.bf16.mxu0 0
  %779 = vmatpush1.bf16.msra.mxu0 0
  %780 = vmatprep.subr.bf16.mxu0 0
  %781 = vmatpush1.bf16.msra.mxu0 0
  %782 = vmatprep.subr.bf16.mxu0 0
  %783 = vmatpush1.bf16.msra.mxu0 0
  %784 = vmatprep.subr.bf16.mxu0 0
  %785 = vmatpush1.bf16.msra.mxu0 0
  %786 = vmatprep.subr.bf16.mxu0 0
  %787 = vmatpush1.bf16.msra.mxu0 0
  %788 = vmatprep.subr.bf16.mxu0 0
  %789 = vmatpush1.bf16.msra.mxu0 0
  %790 = vmatprep.subr.bf16.mxu0 0
  %791 = vmatpush1.bf16.msra.mxu0 0
  %792 = vmatprep.subr.bf16.mxu0 0
  %793 = vmatpush1.bf16.msra.mxu0 0
  %794 = vmatprep.subr.bf16.mxu0 0
  %795 = vmatpush1.bf16.msra.mxu0 0
  %796 = vmatprep.subr.bf16.mxu0 0
  %797 = vmatpush1.bf16.msra.mxu0 0
  %798 = vmatprep.subr.bf16.mxu0 0
  %799 = vmatpush1.bf16.msra.mxu0 0
  %800 = vmatprep.subr.bf16.mxu0 0
  %801 = vmatpush1.bf16.msra.mxu0 0
  %802 = vmatprep.mubr.bf16.mxu0 0
  %803 = vmatmul.mubr.bf16.gmra.mrb[0].mxu0 %v768
  %v804 = vpop.f32.mrb[0].mxu0
  %v805 = vadd.f32 %v136, %v804
  %v806 = vpop.f32.mrb[0].mxu0
  %v807 = vpop.f32.mrb[0].mxu0
  %v808 = vpop.f32.mrb[0].mxu0
  %809 = vdwg.mxu0
  %v810 = vxor.u32 %v805, 2147483648
  %v811 = vmul.f32 %v810, 1.442695
  %v812 = vpow.pop %v811
  %v813 = vadd.f32 %v812, 1.0
  %v814 = vrcp.pop %v813
  %v815 = vmul.f32 1.0, %v814
  %s816 = scalar_lea.vmem %s4, 10
  %817 = vst [vmem:[%s816] sm:$0x3] %v815
  %s818 = scalar_lea.vmem %s0, 6
  %v819 = vld [vmem:[%s818] sm:$0x1]
  %v820 = vunpack.c.l.bf16 %v819
  %821 = vmatprep.subr.bf16.mxu0 0
  %822 = vmatpush1.bf16.msra.mxu0 %v47
  %823 = vmatprep.subr.bf16.mxu0 0
  %824 = vmatpush1.bf16.msra.mxu0 %v48
  %825 = vmatprep.subr.bf16.mxu0 0
  %826 = vmatpush1.bf16.msra.mxu0 0
  %827 = vmatprep.subr.bf16.mxu0 0
  %828 = vmatpush1.bf16.msra.mxu0 0
  %829 = vmatprep.subr.bf16.mxu0 0
  %830 = vmatpush1.bf16.msra.mxu0 0
  %831 = vmatprep.subr.bf16.mxu0 0
  %832 = vmatpush1.bf16.msra.mxu0 0
  %833 = vmatprep.subr.bf16.mxu0 0
  %834 = vmatpush1.bf16.msra.mxu0 0
  %835 = vmatprep.subr.bf16.mxu0 0
  %836 = vmatpush1.bf16.msra.mxu0 0
  %837 = vmatprep.subr.bf16.mxu0 0
  %838 = vmatpush1.bf16.msra.mxu0 0
  %839 = vmatprep.subr.bf16.mxu0 0
  %840 = vmatpush1.bf16.msra.mxu0 0
  %841 = vmatprep.subr.bf16.mxu0 0
  %842 = vmatpush1.bf16.msra.mxu0 0
  %843 = vmatprep.subr.bf16.mxu0 0
  %844 = vmatpush1.bf16.msra.mxu0 0
  %845 = vmatprep.subr.bf16.mxu0 0
  %846 = vmatpush1.bf16.msra.mxu0 0
  %847 = vmatprep.subr.bf16.mxu0 0
  %848 = vmatpush1.bf16.msra.mxu0 0
  %849 = vmatprep.subr.bf16.mxu0 0
  %850 = vmatpush1.bf16.msra.mxu0 0
  %851 = vmatprep.subr.bf16.mxu0 0
  %852 = vmatpush1.bf16.msra.mxu0 0
  %853 = vmatprep.mubr.bf16.mxu0 0
  %854 = vmatmul.mubr.bf16.gmra.mrb[0].mxu0 %v768
  %v855 = vpop.f32.mrb[0].mxu0
  %v856 = vadd.f32 0.0, %v855
  %v857 = vpop.f32.mrb[0].mxu0
  %v858 = vpop.f32.mrb[0].mxu0
  %v859 = vpop.f32.mrb[0].mxu0
  %860 = vdwg.mxu0
  %v861 = vadd.f32 %v820, %v856
  %v862 = vxor.u32 %v861, 2147483648
  %v863 = vmul.f32 %v862, 1.442695
  %v864 = vpow.pop %v863
  %v865 = vadd.f32 %v864, 1.0
  %v866 = vrcp.pop %v865
  %v867 = vmul.f32 1.0, %v866
  %v868 = vtanh.pop %v861
  %v869 = vmul.f32 %v867, %v756
  %871 = vrot.lane.b32.xlu0 %v868, 32
  %v872 = vpop.permute.xlu0 %871
  %v874 = vmul.f32 %v867, %v872
  %876 = vrot.lane.b32.xlu0 %v874, 32
  %v877 = vpop.permute.xlu0 %876
  %v879 = vadd.f32 %v869, %v877
  %v880 = vtanh.pop %v879
  %882 = vrot.lane.b32.xlu0 %v880, 32
  %v883 = vpop.permute.xlu0 %882
  %v885 = vmul.f32 %v867, %v883
  %v886 = vpack.c.bf16 %v885, %v885
  %888 = vrot.lane.b32.xlu0 %v886, 64
  %v889 = vpop.permute.xlu0 %888
  %v891 = vsel %vm51, %v889, 0
  %893 = vmatprep.subr.bf16.mxu0 0
  %894 = vmatpush1.bf16.msra.mxu0 %v149
  %895 = vmatprep.subr.bf16.mxu0 0
  %896 = vmatpush1.bf16.msra.mxu0 %v150
  %897 = vmatprep.subr.bf16.mxu0 0
  %898 = vmatpush1.bf16.msra.mxu0 0
  %899 = vmatprep.subr.bf16.mxu0 0
  %900 = vmatpush1.bf16.msra.mxu0 0
  %901 = vmatprep.subr.bf16.mxu0 0
  %902 = vmatpush1.bf16.msra.mxu0 0
  %903 = vmatprep.subr.bf16.mxu0 0
  %904 = vmatpush1.bf16.msra.mxu0 0
  %905 = vmatprep.subr.bf16.mxu0 0
  %906 = vmatpush1.bf16.msra.mxu0 0
  %907 = vmatprep.subr.bf16.mxu0 0
  %908 = vmatpush1.bf16.msra.mxu0 0
  %909 = vmatprep.subr.bf16.mxu0 0
  %910 = vmatpush1.bf16.msra.mxu0 0
  %911 = vmatprep.subr.bf16.mxu0 0
  %912 = vmatpush1.bf16.msra.mxu0 0
  %913 = vmatprep.subr.bf16.mxu0 0
  %914 = vmatpush1.bf16.msra.mxu0 0
  %915 = vmatprep.subr.bf16.mxu0 0
  %916 = vmatpush1.bf16.msra.mxu0 0
  %917 = vmatprep.subr.bf16.mxu0 0
  %918 = vmatpush1.bf16.msra.mxu0 0
  %919 = vmatprep.subr.bf16.mxu0 0
  %920 = vmatpush1.bf16.msra.mxu0 0
  %921 = vmatprep.subr.bf16.mxu0 0
  %922 = vmatpush1.bf16.msra.mxu0 0
  %923 = vmatprep.subr.bf16.mxu0 0
  %924 = vmatpush1.bf16.msra.mxu0 0
  %925 = vmatprep.mubr.bf16.mxu0 0
  %926 = vmatmul.mubr.bf16.gmra.mrb[0].mxu0 %v891
  %v927 = vpop.f32.mrb[0].mxu0
  %v928 = vadd.f32 %v136, %v927
  %v929 = vpop.f32.mrb[0].mxu0
  %v930 = vpop.f32.mrb[0].mxu0
  %v931 = vpop.f32.mrb[0].mxu0
  %932 = vdwg.mxu0
  %v933 = vxor.u32 %v928, 2147483648
  %v934 = vmul.f32 %v933, 1.442695
  %v935 = vpow.pop %v934
  %v936 = vadd.f32 %v935, 1.0
  %v937 = vrcp.pop %v936
  %v938 = vmul.f32 1.0, %v937
  %s939 = scalar_lea.vmem %s4, 12
  %940 = vst [vmem:[%s939] sm:$0x3] %v938
  %s941 = scalar_lea.vmem %s0, 7
  %v942 = vld [vmem:[%s941] sm:$0x1]
  %v943 = vunpack.c.l.bf16 %v942
  %944 = vmatprep.subr.bf16.mxu0 0
  %945 = vmatpush1.bf16.msra.mxu0 %v47
  %946 = vmatprep.subr.bf16.mxu0 0
  %947 = vmatpush1.bf16.msra.mxu0 %v48
  %948 = vmatprep.subr.bf16.mxu0 0
  %949 = vmatpush1.bf16.msra.mxu0 0
  %950 = vmatprep.subr.bf16.mxu0 0
  %951 = vmatpush1.bf16.msra.mxu0 0
  %952 = vmatprep.subr.bf16.mxu0 0
  %953 = vmatpush1.bf16.msra.mxu0 0
  %954 = vmatprep.subr.bf16.mxu0 0
  %955 = vmatpush1.bf16.msra.mxu0 0
  %956 = vmatprep.subr.bf16.mxu0 0
  %957 = vmatpush1.bf16.msra.mxu0 0
  %958 = vmatprep.subr.bf16.mxu0 0
  %959 = vmatpush1.bf16.msra.mxu0 0
  %960 = vmatprep.subr.bf16.mxu0 0
  %961 = vmatpush1.bf16.msra.mxu0 0
  %962 = vmatprep.subr.bf16.mxu0 0
  %963 = vmatpush1.bf16.msra.mxu0 0
  %964 = vmatprep.subr.bf16.mxu0 0
  %965 = vmatpush1.bf16.msra.mxu0 0
  %966 = vmatprep.subr.bf16.mxu0 0
  %967 = vmatpush1.bf16.msra.mxu0 0
  %968 = vmatprep.subr.bf16.mxu0 0
  %969 = vmatpush1.bf16.msra.mxu0 0
  %970 = vmatprep.subr.bf16.mxu0 0
  %971 = vmatpush1.bf16.msra.mxu0 0
  %972 = vmatprep.subr.bf16.mxu0 0
  %973 = vmatpush1.bf16.msra.mxu0 0
  %974 = vmatprep.subr.bf16.mxu0 0
  %975 = vmatpush1.bf16.msra.mxu0 0
  %976 = vmatprep.mubr.bf16.mxu0 0
  %977 = vmatmul.mubr.bf16.gmra.mrb[0].mxu0 %v891
  %v978 = vpop.f32.mrb[0].mxu0
  %v979 = vadd.f32 0.0, %v978
  %v980 = vpop.f32.mrb[0].mxu0
  %v981 = vpop.f32.mrb[0].mxu0
  %v982 = vpop.f32.mrb[0].mxu0
  %983 = vdwg.mxu0
  %v984 = vadd.f32 %v943, %v979
  %v985 = vxor.u32 %v984, 2147483648
  %v986 = vmul.f32 %v985, 1.442695
  %v987 = vpow.pop %v986
  %v988 = vadd.f32 %v987, 1.0
  %v989 = vrcp.pop %v988
  %v990 = vmul.f32 1.0, %v989
  %v991 = vtanh.pop %v984
  %v992 = vmul.f32 %v990, %v879
  %994 = vrot.lane.b32.xlu0 %v991, 32
  %v995 = vpop.permute.xlu0 %994
  %v997 = vmul.f32 %v990, %v995
  %999 = vrot.lane.b32.xlu0 %v997, 32
  %v1000 = vpop.permute.xlu0 %999
  %v1002 = vadd.f32 %v992, %v1000
  %v1003 = vtanh.pop %v1002
  %1005 = vrot.lane.b32.xlu0 %v1003, 32
  %v1006 = vpop.permute.xlu0 %1005
  %v1008 = vmul.f32 %v990, %v1006
  %v1009 = vpack.c.bf16 %v1008, %v1008
  %1011 = vrot.lane.b32.xlu0 %v1009, 64
  %v1012 = vpop.permute.xlu0 %1011
  %v1014 = vsel %vm51, %v1012, 0
  %1016 = vmatprep.subr.bf16.mxu0 0
  %1017 = vmatpush1.bf16.msra.mxu0 %v149
  %1018 = vmatprep.subr.bf16.mxu0 0
  %1019 = vmatpush1.bf16.msra.mxu0 %v150
  %1020 = vmatprep.subr.bf16.mxu0 0
  %1021 = vmatpush1.bf16.msra.mxu0 0
  %1022 = vmatprep.subr.bf16.mxu0 0
  %1023 = vmatpush1.bf16.msra.mxu0 0
  %1024 = vmatprep.subr.bf16.mxu0 0
  %1025 = vmatpush1.bf16.msra.mxu0 0
  %1026 = vmatprep.subr.bf16.mxu0 0
  %1027 = vmatpush1.bf16.msra.mxu0 0
  %1028 = vmatprep.subr.bf16.mxu0 0
  %1029 = vmatpush1.bf16.msra.mxu0 0
  %1030 = vmatprep.subr.bf16.mxu0 0
  %1031 = vmatpush1.bf16.msra.mxu0 0
  %1032 = vmatprep.subr.bf16.mxu0 0
  %1033 = vmatpush1.bf16.msra.mxu0 0
  %1034 = vmatprep.subr.bf16.mxu0 0
  %1035 = vmatpush1.bf16.msra.mxu0 0
  %1036 = vmatprep.subr.bf16.mxu0 0
  %1037 = vmatpush1.bf16.msra.mxu0 0
  %1038 = vmatprep.subr.bf16.mxu0 0
  %1039 = vmatpush1.bf16.msra.mxu0 0
  %1040 = vmatprep.subr.bf16.mxu0 0
  %1041 = vmatpush1.bf16.msra.mxu0 0
  %1042 = vmatprep.subr.bf16.mxu0 0
  %1043 = vmatpush1.bf16.msra.mxu0 0
  %1044 = vmatprep.subr.bf16.mxu0 0
  %1045 = vmatpush1.bf16.msra.mxu0 0
  %1046 = vmatprep.subr.bf16.mxu0 0
  %1047 = vmatpush1.bf16.msra.mxu0 0
  %1048 = vmatprep.mubr.bf16.mxu0 0
  %1049 = vmatmul.mubr.bf16.gmra.mrb[0].mxu0 %v1014
  %v1050 = vpop.f32.mrb[0].mxu0
  %v1051 = vadd.f32 %v136, %v1050
  %v1052 = vpop.f32.mrb[0].mxu0
  %v1053 = vpop.f32.mrb[0].mxu0
  %v1054 = vpop.f32.mrb[0].mxu0
  %1055 = vdwg.mxu0
  %v1056 = vxor.u32 %v1051, 2147483648
  %v1057 = vmul.f32 %v1056, 1.442695
  %v1058 = vpow.pop %v1057
  %v1059 = vadd.f32 %v1058, 1.0
  %v1060 = vrcp.pop %v1059
  %v1061 = vmul.f32 1.0, %v1060
  %s1062 = scalar_lea.vmem %s4, 14
  %1063 = vst [vmem:[%s1062] sm:$0x3] %v1061
  %v1066 = vunpack.c.l.s4 1983009808
  %v1067 = vunpack.c.0.s8 %v1066
  %v1068 = vlaneseq
  %v1069 = vshrl.u32 %v1068, 7
  %v1070 = vsub.s32 %v1067, %v1069
  %v1071 = vrot.slane %v1008, %v1070
  %1072 = vrot.lane.b32.xlu0 %v1071, 64
  %v1073 = vpop.permute.xlu0 %1072
  %vm1075 = vcmask 254976
  %1076 = vst.msk [vmem:[#allocation2] sm:$0x3] %vm1075, %v1073
  %v1079 = vunpack.c.l.s4 1983009808
  %v1080 = vunpack.c.0.s8 %v1079
  %v1081 = vlaneseq
  %v1082 = vshrl.u32 %v1081, 7
  %v1083 = vsub.s32 %v1080, %v1082
  %v1084 = vrot.slane %v1002, %v1083
  %1085 = vrot.lane.b32.xlu0 %v1084, 96
  %v1086 = vpop.permute.xlu0 %1085
  %1088 = vst.msk [vmem:[#allocation3] sm:$0x3] %vm1075, %v1086
  // Predicated region
  $region22: #{music_lstm_forward.11} parent=0 // pred_check
    _
  $region23: #{music_lstm_forward.11} parent=0 // pred_check_branch
    %1090 = sbr.rel (0) target = $region25
  $region24: #{music_lstm_forward.11} parent=0 // pred_region
    _
  $region25: #{music_lstm_forward.11} parent=0 // pred_fallthru
    _
  // Predicated region
  $region26: #{music_lstm_forward.11} parent=0 // pred_check
    _
  $region27: #{music_lstm_forward.11} parent=0 // pred_check_branch
    %1092 = sbr.rel (0) target = $region29
  $region28: #{music_lstm_forward.11} parent=0 // pred_region
    _
  $region29: #{music_lstm_forward.11} parent=0 // pred_fallthru
    _

// kernel: music_lstm_forward.7
$region0: #{music_lstm_forward.7}
  #allocation0 [shape = 'u32[]', space=smem, size = 0x4, offset = 0x4, fixed_abs, tag = 'smem constant byte address 0x4 - core index']
  #allocation1 [shape = 'u32[144,128]{1,0:T(1,128)}', space=vmem, size = 0x12000, scoped, tag = 'internal scratch']
  #allocation2 [shape = 'f32[2,32]{1,0:T(2,128)}', space=vmem, size = 0x400, scoped, tag = 'scratch operand']
  #allocation3 [shape = 'f32[2,32]{1,0:T(2,128)}', space=vmem, size = 0x400, scoped, tag = 'scratch operand']
  #allocation4 [shape = 'f32[2,32]{1,0:T(2,128)}', space=vmem, size = 0x400, scoped, tag = 'scratch operand']
  #allocation5 [shape = 'f32[2,32]{1,0:T(2,128)}', space=vmem, size = 0x400, scoped, tag = 'scratch operand']
  %s0 = inlined_call_operand.vmem [shape: bf16[8,2,256], index: 0, kind: input, shape index: {}, may-alias: {0,1}]
  %s1 = inlined_call_operand.vmem [shape: bf16[8,2,256], index: 1, kind: input, shape index: {}, may-alias: {0,1}]
  %s2 = inlined_call_operand.vmem [shape: bf16[32,128], index: 2, kind: input, shape index: {}]
  %s3 = inlined_call_operand.vmem [shape: bf16[32,128], index: 3, kind: input, shape index: {}]
  %s4 = inlined_call_operand.vmem [shape: bf16[8,2,32], index: 4, kind: output, shape index: {0}]
  %s5 = inlined_call_operand.vmem [shape: bf16[8,2,32], index: 5, kind: output, shape index: {1}]
  %6 = xla_tuple %s4, %s5
  %s7 = sld [smem:[#allocation0]]
  $region120: #{music_lstm_forward.7} parent=0
    _
  %s9 = ssub.s32 1, %s7
  %s10 = scalar_select 0, %s9, %s7
  $region1: #{music_lstm_forward.7} parent=0
    #allocation6 [shape = 'u8[4096]{0}', space=vmem, size = 0x1000, scoped, tag = 'input window, operand 0, single buffered']
    #allocation7 [shape = 'u8[4096]{0}', space=vmem, size = 0x1000, scoped, tag = 'input window, operand 1, single buffered']
    // Predicated region
    $region2: #{music_lstm_forward.7} parent=1 // pred_check
      _
    $region3: #{music_lstm_forward.7} parent=1 // pred_check_branch
      %12 = sbr.rel (0) target = $region5
    $region4: #{music_lstm_forward.7} parent=1 // pred_region
      // Predicated region
      $region6: #{music_lstm_forward.7} parent=4 // pred_check
        _
      $region7: #{music_lstm_forward.7} parent=4 // pred_check_branch
        %14 = sbr.rel (0) target = $region9
      $region8: #{music_lstm_forward.7} parent=4 // pred_region
        // Predicated region
        $region10: #{music_lstm_forward.7} parent=8 // pred_check
          _
        $region11: #{music_lstm_forward.7} parent=8 // pred_check_branch
          %16 = sbr.rel target = $region13
        $region12: #{music_lstm_forward.7} parent=8 // pred_region
          // Predicated region
          $region25: #{music_lstm_forward.7} parent=12 // pred_check
            _
          $region26: #{music_lstm_forward.7} parent=12 // pred_check_branch
            %45 = sbr.rel (0) target = $region28
          $region27: #{music_lstm_forward.7} parent=12 // pred_region
            loop: start=0, step=1, limit=1
            $region29: #{music_lstm_forward.7} parent=27 // loop_pre_header
              _
            $region30: #{music_lstm_forward.7} parent=27 // loop_header
              %s47 = sphi 0, %s51
              %p48 = scmp.ge.s32.totalorder %s47, 1
              %s52 = sphi %s0, %s0
              %s53 = sphi [#allocation6], [#allocation6]
            $region31: #{music_lstm_forward.7} parent=27 // loop_header_branch
              %50 = sbr.rel (%p48) target = $region35
            $region32: #{music_lstm_forward.7} parent=27 // loop_body
              _
            $region33: #{music_lstm_forward.7} parent=27 // loop_footer
              %s51 = sadd.s32 1, %s47
            $region34: #{music_lstm_forward.7} parent=27 // loop_footer_branch
              %46 = sbr.rel target = $region30
            $region35: #{music_lstm_forward.7} parent=27 // loop_exit
              _
            loop: start=0, step=1, limit=1
            $region36: #{music_lstm_forward.7} parent=27 // loop_pre_header
              _
            $region37: #{music_lstm_forward.7} parent=27 // loop_header
              %s56 = sphi 0, %s60
              %p57 = scmp.ge.s32.totalorder %s56, 1
              %s61 = sphi %s0, %s0
              %s62 = sphi [#allocation6], [#allocation6]
            $region38: #{music_lstm_forward.7} parent=27 // loop_header_branch
              %59 = sbr.rel (%p57) target = $region42
            $region39: #{music_lstm_forward.7} parent=27 // loop_body
              %v63 = vld [vmem:[%s61] sm:$0x1]
              %64 = vst [vmem:[%s62] sm:$0x1] %v63
              %v65 = vld [vmem:[%s61 + $0x2] sm:$0x1]
              %66 = vst [vmem:[%s62 + $0x1] sm:$0x1] %v65
              %v67 = vld [vmem:[%s61 + $0x4] sm:$0x1]
              %68 = vst [vmem:[%s62 + $0x2] sm:$0x1] %v67
              %v69 = vld [vmem:[%s61 + $0x6] sm:$0x1]
              %70 = vst [vmem:[%s62 + $0x3] sm:$0x1] %v69
              %v71 = vld [vmem:[%s61 + $0x8] sm:$0x1]
              %72 = vst [vmem:[%s62 + $0x4] sm:$0x1] %v71
              %v73 = vld [vmem:[%s61 + $0xa] sm:$0x1]
              %74 = vst [vmem:[%s62 + $0x5] sm:$0x1] %v73
              %v75 = vld [vmem:[%s61 + $0xc] sm:$0x1]
              %76 = vst [vmem:[%s62 + $0x6] sm:$0x1] %v75
              %v77 = vld [vmem:[%s61 + $0xe] sm:$0x1]
              %78 = vst [vmem:[%s62 + $0x7] sm:$0x1] %v77
            $region40: #{music_lstm_forward.7} parent=27 // loop_footer
              %s60 = sadd.s32 1, %s56
            $region41: #{music_lstm_forward.7} parent=27 // loop_footer_branch
              %55 = sbr.rel target = $region37
            $region42: #{music_lstm_forward.7} parent=27 // loop_exit
              _
          $region28: #{music_lstm_forward.7} parent=12 // pred_fallthru
            _
        $region13: #{music_lstm_forward.7} parent=8 // pred_fallthru
          _
        // Predicated region
        $region14: #{music_lstm_forward.7} parent=8 // pred_check
          _
        $region15: #{music_lstm_forward.7} parent=8 // pred_check_branch
          %18 = sbr.rel (0) target = $region17
        $region16: #{music_lstm_forward.7} parent=8 // pred_region
          loop: start=0, step=1, limit=1
          $region18: #{music_lstm_forward.7} parent=16 // loop_pre_header
            _
          $region19: #{music_lstm_forward.7} parent=16 // loop_header
            %s21 = sphi 0, %s25
            %p22 = scmp.ge.s32.totalorder %s21, 1
            %s26 = sphi %s0, %s0
            %s27 = sphi [#allocation6], [#allocation6]
          $region20: #{music_lstm_forward.7} parent=16 // loop_header_branch
            %24 = sbr.rel (%p22) target = $region24
          $region21: #{music_lstm_forward.7} parent=16 // loop_body
            %v28 = vld [vmem:[%s26] sm:$0x1]
            %29 = vst [vmem:[%s27] sm:$0x1] %v28
            %v30 = vld [vmem:[%s26 + $0x2] sm:$0x1]
            %31 = vst [vmem:[%s27 + $0x1] sm:$0x1] %v30
            %v32 = vld [vmem:[%s26 + $0x4] sm:$0x1]
            %33 = vst [vmem:[%s27 + $0x2] sm:$0x1] %v32
            %v34 = vld [vmem:[%s26 + $0x6] sm:$0x1]
            %35 = vst [vmem:[%s27 + $0x3] sm:$0x1] %v34
            %v36 = vld [vmem:[%s26 + $0x8] sm:$0x1]
            %37 = vst [vmem:[%s27 + $0x4] sm:$0x1] %v36
            %v38 = vld [vmem:[%s26 + $0xa] sm:$0x1]
            %39 = vst [vmem:[%s27 + $0x5] sm:$0x1] %v38
            %v40 = vld [vmem:[%s26 + $0xc] sm:$0x1]
            %41 = vst [vmem:[%s27 + $0x6] sm:$0x1] %v40
            %v42 = vld [vmem:[%s26 + $0xe] sm:$0x1]
            %43 = vst [vmem:[%s27 + $0x7] sm:$0x1] %v42
          $region22: #{music_lstm_forward.7} parent=16 // loop_footer
            %s25 = sadd.s32 1, %s21
          $region23: #{music_lstm_forward.7} parent=16 // loop_footer_branch
            %20 = sbr.rel target = $region19
          $region24: #{music_lstm_forward.7} parent=16 // loop_exit
            _
        $region17: #{music_lstm_forward.7} parent=8 // pred_fallthru
          _
      $region9: #{music_lstm_forward.7} parent=4 // pred_fallthru
        _
      %79 = vnop
    $region5: #{music_lstm_forward.7} parent=1 // pred_fallthru
      _
    // Predicated region
    $region43: #{music_lstm_forward.7} parent=1 // pred_check
      _
    $region44: #{music_lstm_forward.7} parent=1 // pred_check_branch
      %81 = sbr.rel (0) target = $region46
    $region45: #{music_lstm_forward.7} parent=1 // pred_region
      %s82 = ssub.s32 0, 0
      %s83 = smul.u32 8, %s82
      %s84 = smul.addr %s83, 2
      %s85 = sadd.s32 1, %s84
      %s86 = scalar_lea.vmem %s1, %s85
      // Predicated region
      $region47: #{music_lstm_forward.7} parent=45 // pred_check
        _
      $region48: #{music_lstm_forward.7} parent=45 // pred_check_branch
        %88 = sbr.rel (0) target = $region50
      $region49: #{music_lstm_forward.7} parent=45 // pred_region
        // Predicated region
        $region51: #{music_lstm_forward.7} parent=49 // pred_check
          _
        $region52: #{music_lstm_forward.7} parent=49 // pred_check_branch
          %90 = sbr.rel target = $region54
        $region53: #{music_lstm_forward.7} parent=49 // pred_region
          // Predicated region
          $region66: #{music_lstm_forward.7} parent=53 // pred_check
            _
          $region67: #{music_lstm_forward.7} parent=53 // pred_check_branch
            %119 = sbr.rel (0) target = $region69
          $region68: #{music_lstm_forward.7} parent=53 // pred_region
            loop: start=0, step=1, limit=1
            $region70: #{music_lstm_forward.7} parent=68 // loop_pre_header
              _
            $region71: #{music_lstm_forward.7} parent=68 // loop_header
              %s121 = sphi 0, %s125
              %p122 = scmp.ge.s32.totalorder %s121, 1
              %s126 = sphi %s86, %s86
              %s127 = sphi [#allocation7], [#allocation7]
            $region72: #{music_lstm_forward.7} parent=68 // loop_header_branch
              %124 = sbr.rel (%p122) target = $region76
            $region73: #{music_lstm_forward.7} parent=68 // loop_body
              _
            $region74: #{music_lstm_forward.7} parent=68 // loop_footer
              %s125 = sadd.s32 1, %s121
            $region75: #{music_lstm_forward.7} parent=68 // loop_footer_branch
              %120 = sbr.rel target = $region71
            $region76: #{music_lstm_forward.7} parent=68 // loop_exit
              _
            loop: start=0, step=1, limit=1
            $region77: #{music_lstm_forward.7} parent=68 // loop_pre_header
              _
            $region78: #{music_lstm_forward.7} parent=68 // loop_header
              %s130 = sphi 0, %s134
              %p131 = scmp.ge.s32.totalorder %s130, 1
              %s135 = sphi %s86, %s86
              %s136 = sphi [#allocation7], [#allocation7]
            $region79: #{music_lstm_forward.7} parent=68 // loop_header_branch
              %133 = sbr.rel (%p131) target = $region83
            $region80: #{music_lstm_forward.7} parent=68 // loop_body
              %v137 = vld [vmem:[%s135] sm:$0x1]
              %138 = vst [vmem:[%s136] sm:$0x1] %v137
              %v139 = vld [vmem:[%s135 + $0x2] sm:$0x1]
              %140 = vst [vmem:[%s136 + $0x1] sm:$0x1] %v139
              %v141 = vld [vmem:[%s135 + $0x4] sm:$0x1]
              %142 = vst [vmem:[%s136 + $0x2] sm:$0x1] %v141
              %v143 = vld [vmem:[%s135 + $0x6] sm:$0x1]
              %144 = vst [vmem:[%s136 + $0x3] sm:$0x1] %v143
              %v145 = vld [vmem:[%s135 + $0x8] sm:$0x1]
              %146 = vst [vmem:[%s136 + $0x4] sm:$0x1] %v145
              %v147 = vld [vmem:[%s135 + $0xa] sm:$0x1]
              %148 = vst [vmem:[%s136 + $0x5] sm:$0x1] %v147
              %v149 = vld [vmem:[%s135 + $0xc] sm:$0x1]
              %150 = vst [vmem:[%s136 + $0x6] sm:$0x1] %v149
              %v151 = vld [vmem:[%s135 + $0xe] sm:$0x1]
              %152 = vst [vmem:[%s136 + $0x7] sm:$0x1] %v151
            $region81: #{music_lstm_forward.7} parent=68 // loop_footer
              %s134 = sadd.s32 1, %s130
            $region82: #{music_lstm_forward.7} parent=68 // loop_footer_branch
              %129 = sbr.rel target = $region78
            $region83: #{music_lstm_forward.7} parent=68 // loop_exit
              _
          $region69: #{music_lstm_forward.7} parent=53 // pred_fallthru
            _
        $region54: #{music_lstm_forward.7} parent=49 // pred_fallthru
          _
        // Predicated region
        $region55: #{music_lstm_forward.7} parent=49 // pred_check
          _
        $region56: #{music_lstm_forward.7} parent=49 // pred_check_branch
          %92 = sbr.rel (0) target = $region58
        $region57: #{music_lstm_forward.7} parent=49 // pred_region
          loop: start=0, step=1, limit=1
          $region59: #{music_lstm_forward.7} parent=57 // loop_pre_header
            _
          $region60: #{music_lstm_forward.7} parent=57 // loop_header
            %s95 = sphi 0, %s99
            %p96 = scmp.ge.s32.totalorder %s95, 1
            %s100 = sphi %s86, %s86
            %s101 = sphi [#allocation7], [#allocation7]
          $region61: #{music_lstm_forward.7} parent=57 // loop_header_branch
            %98 = sbr.rel (%p96) target = $region65
          $region62: #{music_lstm_forward.7} parent=57 // loop_body
            %v102 = vld [vmem:[%s100] sm:$0x1]
            %103 = vst [vmem:[%s101] sm:$0x1] %v102
            %v104 = vld [vmem:[%s100 + $0x2] sm:$0x1]
            %105 = vst [vmem:[%s101 + $0x1] sm:$0x1] %v104
            %v106 = vld [vmem:[%s100 + $0x4] sm:$0x1]
            %107 = vst [vmem:[%s101 + $0x2] sm:$0x1] %v106
            %v108 = vld [vmem:[%s100 + $0x6] sm:$0x1]
            %109 = vst [vmem:[%s101 + $0x3] sm:$0x1] %v108
            %v110 = vld [vmem:[%s100 + $0x8] sm:$0x1]
            %111 = vst [vmem:[%s101 + $0x4] sm:$0x1] %v110
            %v112 = vld [vmem:[%s100 + $0xa] sm:$0x1]
            %113 = vst [vmem:[%s101 + $0x5] sm:$0x1] %v112
            %v114 = vld [vmem:[%s100 + $0xc] sm:$0x1]
            %115 = vst [vmem:[%s101 + $0x6] sm:$0x1] %v114
            %v116 = vld [vmem:[%s100 + $0xe] sm:$0x1]
            %117 = vst [vmem:[%s101 + $0x7] sm:$0x1] %v116
          $region63: #{music_lstm_forward.7} parent=57 // loop_footer
            %s99 = sadd.s32 1, %s95
          $region64: #{music_lstm_forward.7} parent=57 // loop_footer_branch
            %94 = sbr.rel target = $region60
          $region65: #{music_lstm_forward.7} parent=57 // loop_exit
            _
        $region58: #{music_lstm_forward.7} parent=49 // pred_fallthru
          _
      $region50: #{music_lstm_forward.7} parent=45 // pred_fallthru
        _
      %153 = vnop
    $region46: #{music_lstm_forward.7} parent=1 // pred_fallthru
      _
    // Predicated region
    $region84: #{music_lstm_forward.7} parent=1 // pred_check
      _
    $region85: #{music_lstm_forward.7} parent=1 // pred_check_branch
      %155 = sbr.rel (0) target = $region87
    $region86: #{music_lstm_forward.7} parent=1 // pred_region
      _
    $region87: #{music_lstm_forward.7} parent=1 // pred_fallthru
      _
    // Predicated region
    $region88: #{music_lstm_forward.7} parent=1 // pred_check
      _
    $region89: #{music_lstm_forward.7} parent=1 // pred_check_branch
      %157 = sbr.rel (0) target = $region91
    $region90: #{music_lstm_forward.7} parent=1 // pred_region
      _
    $region91: #{music_lstm_forward.7} parent=1 // pred_fallthru
      _
    // Predicated region
    $region92: #{music_lstm_forward.7} parent=1 // pred_check
      _
    $region93: #{music_lstm_forward.7} parent=1 // pred_check_branch
      %159 = sbr.rel (0) target = $region95
    $region94: #{music_lstm_forward.7} parent=1 // pred_region
      _
    $region95: #{music_lstm_forward.7} parent=1 // pred_fallthru
      _
    // Predicated region
    $region96: #{music_lstm_forward.7} parent=1 // pred_check
      _
    $region97: #{music_lstm_forward.7} parent=1 // pred_check_branch
      %161 = sbr.rel (0) target = $region99
    $region98: #{music_lstm_forward.7} parent=1 // pred_region
      _
    $region99: #{music_lstm_forward.7} parent=1 // pred_fallthru
      _
    %s162 = ssub.s32 0, 0
    %s163 = smul.u32 8, %s162
    %p164 = scmp.lt.s32.totalorder %s163, 7
    %s165 = scalar_select %p164, %s163, 7
    %s166 = scalar_lea.vmem %s5, %s165
    %s167 = ssub.s32 0, 0
    %s168 = smul.u32 8, %s167
    %s169 = ssub.s32 0, 0
    %s170 = smul.u32 8, %s169
    %p171 = scmp.lt.s32.totalorder %s170, 7
    %s172 = scalar_select %p171, %s170, 7
    %s173 = scalar_lea.vmem %s5, %s172
    %s174 = ssub.s32 0, 0
    %s175 = smul.u32 8, %s174
    %p177 = scmp.eq.s32.totalorder 0, 0
    // Predicated region
    $region100: #{music_lstm_forward.7} parent=1 // pred_check
      %p178 = pneg %p177
    $region101: #{music_lstm_forward.7} parent=1 // pred_check_branch
      %180 = sbr.rel (%p178) target = $region103
    $region102: #{music_lstm_forward.7} parent=1 // pred_region
      %vm181 = vcmask 254976
      %182 = vst.msk [vmem:[#allocation2] sm:$0x3] %vm181, 0.0
      %183 = vst.msk [vmem:[#allocation3] sm:$0x3] %vm181, 0.0
      %184 = vst.msk [vmem:[#allocation4] sm:$0x3] %vm181, 0.0
      %185 = vst.msk [vmem:[#allocation5] sm:$0x3] %vm181, 0.0
    $region103: #{music_lstm_forward.7} parent=1 // pred_fallthru
      _
    %v186 = vld [vmem:[%s2] sm:$0xf]
    %v187 = vld [vmem:[%s2 + $0x4] sm:$0xf]
    %v188 = vld [vmem:[%s2 + $0x8] sm:$0xf]
    %v189 = vld [vmem:[%s2 + $0xc] sm:$0xf]
    %v190 = vld [vmem:[%s3] sm:$0xf]
    %v191 = vld [vmem:[%s3 + $0x4] sm:$0xf]
    %v192 = vld [vmem:[%s3 + $0x8] sm:$0xf]
    %v193 = vld [vmem:[%s3 + $0xc] sm:$0xf]
    %v194 = vld [vmem:[#allocation2] sm:$0x3]
    %v195 = vld [vmem:[#allocation3] sm:$0x3]
    %v196 = vld [vmem:[#allocation4] sm:$0x3]
    %v197 = vld [vmem:[#allocation5] sm:$0x3]
    %v198 = vld [vmem:[#allocation6] sm:$0x1]
    %v199 = vunpack.c.l.bf16 %v198
    %v200 = vpack.c.bf16 %v194, %v194
    %v205 = vunpack.c.l.b16 %v186
    %v206 = vunpack.c.l.b16 %v187
    %v207 = vunpack.c.l.b16 %v188
    %v208 = vunpack.c.l.b16 %v189
    %v209 = vpack.c.b16 %v206, %v205
    %v210 = vpack.c.b16 %v208, %v207
    %vm213 = vcmask 261120
    %v215 = vsel %vm213, %v200, 0
    %217 = vmatprep.subr.bf16.mxu0 0
    %218 = vmatpush1.bf16.msra.mxu0 %v209
    %219 = vmatprep.subr.bf16.mxu0 0
    %220 = vmatpush1.bf16.msra.mxu0 %v210
    %221 = vmatprep.subr.bf16.mxu0 0
    %222 = vmatpush1.bf16.msra.mxu0 0
    %223 = vmatprep.subr.bf16.mxu0 0
    %224 = vmatpush1.bf16.msra.mxu0 0
    %225 = vmatprep.subr.bf16.mxu0 0
    %226 = vmatpush1.bf16.msra.mxu0 0
    %227 = vmatprep.subr.bf16.mxu0 0
    %228 = vmatpush1.bf16.msra.mxu0 0
    %229 = vmatprep.subr.bf16.mxu0 0
    %230 = vmatpush1.bf16.msra.mxu0 0
    %231 = vmatprep.subr.bf16.mxu0 0
    %232 = vmatpush1.bf16.msra.mxu0 0
    %233 = vmatprep.subr.bf16.mxu0 0
    %234 = vmatpush1.bf16.msra.mxu0 0
    %235 = vmatprep.subr.bf16.mxu0 0
    %236 = vmatpush1.bf16.msra.mxu0 0
    %237 = vmatprep.subr.bf16.mxu0 0
    %238 = vmatpush1.bf16.msra.mxu0 0
    %239 = vmatprep.subr.bf16.mxu0 0
    %240 = vmatpush1.bf16.msra.mxu0 0
    %241 = vmatprep.subr.bf16.mxu0 0
    %242 = vmatpush1.bf16.msra.mxu0 0
    %243 = vmatprep.subr.bf16.mxu0 0
    %244 = vmatpush1.bf16.msra.mxu0 0
    %245 = vmatprep.subr.bf16.mxu0 0
    %246 = vmatpush1.bf16.msra.mxu0 0
    %247 = vmatprep.subr.bf16.mxu0 0
    %248 = vmatpush1.bf16.msra.mxu0 0
    %249 = vmatprep.mubr.bf16.mxu0 0
    %250 = vmatmul.mubr.bf16.gmra.mrb[0].mxu0 %v215
    %v251 = vpop.f32.mrb[0].mxu0
    %v252 = vadd.f32 0.0, %v251
    %v253 = vpop.f32.mrb[0].mxu0
    %v254 = vpop.f32.mrb[0].mxu0
    %v255 = vpop.f32.mrb[0].mxu0
    %256 = vdwg.mxu0
    %v257 = vadd.f32 %v199, %v252
    %v258 = vxor.u32 %v257, 2147483648
    %v259 = vmul.f32 %v258, 1.442695
    %v260 = vpow.pop %v259
    %v261 = vadd.f32 %v260, 1.0
    %v262 = vrcp.pop %v261
    %v263 = vmul.f32 1.0, %v262
    %v264 = vtanh.pop %v257
    %v267 = vunpack.c.l.s4 1983009808
    %v268 = vunpack.c.0.s8 %v267
    %v269 = vlaneseq
    %v270 = vshrl.u32 %v269, 7
    %v271 = vsub.s32 %v268, %v270
    %v272 = vrot.slane %v195, %v271
    %273 = vrot.lane.b32.xlu0 %v272, 32
    %v274 = vpop.permute.xlu0 %273
    %v276 = vmul.f32 %v263, %v274
    %278 = vrot.lane.b32.xlu0 %v264, 32
    %v279 = vpop.permute.xlu0 %278
    %v281 = vmul.f32 %v263, %v279
    %283 = vrot.lane.b32.xlu0 %v281, 32
    %v284 = vpop.permute.xlu0 %283
    %v286 = vadd.f32 %v276, %v284
    %v287 = vtanh.pop %v286
    %289 = vrot.lane.b32.xlu0 %v287, 32
    %v290 = vpop.permute.xlu0 %289
    %v292 = vmul.f32 %v263, %v290
    %v293 = vpack.c.bf16 %v292, %v292
    %v296 = vunpack.c.l.s4 1966171168
    %v297 = vunpack.c.0.s8 %v296
    %v298 = vlaneseq
    %v299 = vshrl.u32 %v298, 7
    %v300 = vsub.s32 %v297, %v299
    %v301 = vrot.slane %v293, %v300
    %v303 = vunpack.c.l.s4 1966171168
    %v304 = vunpack.c.0.s8 %v303
    %v305 = vlaneseq
    %v306 = vshrl.u32 %v305, 7
    %v307 = vsub.s32 %v304, %v306
    %v308 = vrot.slane %v301, %v307
    %309 = vrot.lane.b32.xlu0 %v308, 64
    %v310 = vpop.permute.xlu0 %309
    %vm312 = vcmask 253952
    %313 = vst.msk [vmem:[%s4] sm:$0x1] %vm312, %v310
    %s314 = scalar_lea.vmem [#allocation7], 7
    %v315 = vld [vmem:[%s314] sm:$0x1]
    %v316 = vunpack.c.l.bf16 %v315
    %v317 = vpack.c.bf16 %v196, %v196
    %v322 = vunpack.c.l.b16 %v190
    %v323 = vunpack.c.l.b16 %v191
    %v324 = vunpack.c.l.b16 %v192
    %v325 = vunpack.c.l.b16 %v193
    %v326 = vpack.c.b16 %v323, %v322
    %v327 = vpack.c.b16 %v325, %v324
    %v331 = vsel %vm213, %v317, 0
    %333 = vmatprep.subr.bf16.mxu0 0
    %334 = vmatpush1.bf16.msra.mxu0 %v326
    %335 = vmatprep.subr.bf16.mxu0 0
    %336 = vmatpush1.bf16.msra.mxu0 %v327
    %337 = vmatprep.subr.bf16.mxu0 0
    %338 = vmatpush1.bf16.msra.mxu0 0
    %339 = vmatprep.subr.bf16.mxu0 0
    %340 = vmatpush1.bf16.msra.mxu0 0
    %341 = vmatprep.subr.bf16.mxu0 0
    %342 = vmatpush1.bf16.msra.mxu0 0
    %343 = vmatprep.subr.bf16.mxu0 0
    %344 = vmatpush1.bf16.msra.mxu0 0
    %345 = vmatprep.subr.bf16.mxu0 0
    %346 = vmatpush1.bf16.msra.mxu0 0
    %347 = vmatprep.subr.bf16.mxu0 0
    %348 = vmatpush1.bf16.msra.mxu0 0
    %349 = vmatprep.subr.bf16.mxu0 0
    %350 = vmatpush1.bf16.msra.mxu0 0
    %351 = vmatprep.subr.bf16.mxu0 0
    %352 = vmatpush1.bf16.msra.mxu0 0
    %353 = vmatprep.subr.bf16.mxu0 0
    %354 = vmatpush1.bf16.msra.mxu0 0
    %355 = vmatprep.subr.bf16.mxu0 0
    %356 = vmatpush1.bf16.msra.mxu0 0
    %357 = vmatprep.subr.bf16.mxu0 0
    %358 = vmatpush1.bf16.msra.mxu0 0
    %359 = vmatprep.subr.bf16.mxu0 0
    %360 = vmatpush1.bf16.msra.mxu0 0
    %361 = vmatprep.subr.bf16.mxu0 0
    %362 = vmatpush1.bf16.msra.mxu0 0
    %363 = vmatprep.subr.bf16.mxu0 0
    %364 = vmatpush1.bf16.msra.mxu0 0
    %365 = vmatprep.mubr.bf16.mxu0 0
    %366 = vmatmul.mubr.bf16.gmra.mrb[0].mxu0 %v331
    %v367 = vpop.f32.mrb[0].mxu0
    %v368 = vadd.f32 0.0, %v367
    %v369 = vpop.f32.mrb[0].mxu0
    %v370 = vpop.f32.mrb[0].mxu0
    %v371 = vpop.f32.mrb[0].mxu0
    %372 = vdwg.mxu0
    %v373 = vadd.f32 %v316, %v368
    %v374 = vxor.u32 %v373, 2147483648
    %v375 = vmul.f32 %v374, 1.442695
    %v376 = vpow.pop %v375
    %v377 = vadd.f32 %v376, 1.0
    %v378 = vrcp.pop %v377
    %v379 = vmul.f32 1.0, %v378
    %v380 = vtanh.pop %v373
    %v383 = vunpack.c.l.s4 1983009808
    %v384 = vunpack.c.0.s8 %v383
    %v385 = vlaneseq
    %v386 = vshrl.u32 %v385, 7
    %v387 = vsub.s32 %v384, %v386
    %v388 = vrot.slane %v197, %v387
    %389 = vrot.lane.b32.xlu0 %v388, 32
    %v390 = vpop.permute.xlu0 %389
    %v392 = vmul.f32 %v379, %v390
    %394 = vrot.lane.b32.xlu0 %v380, 32
    %v395 = vpop.permute.xlu0 %394
    %v397 = vmul.f32 %v379, %v395
    %399 = vrot.lane.b32.xlu0 %v397, 32
    %v400 = vpop.permute.xlu0 %399
    %v402 = vadd.f32 %v392, %v400
    %v403 = vtanh.pop %v402
    %405 = vrot.lane.b32.xlu0 %v403, 32
    %v406 = vpop.permute.xlu0 %405
    %v408 = vmul.f32 %v379, %v406
    %v409 = vpack.c.bf16 %v408, %v408
    %v412 = vunpack.c.l.s4 1966171168
    %v413 = vunpack.c.0.s8 %v412
    %v414 = vlaneseq
    %v415 = vshrl.u32 %v414, 7
    %v416 = vsub.s32 %v413, %v415
    %v417 = vrot.slane %v409, %v416
    %v419 = vunpack.c.l.s4 1966171168
    %v420 = vunpack.c.0.s8 %v419
    %v421 = vlaneseq
    %v422 = vshrl.u32 %v421, 7
    %v423 = vsub.s32 %v420, %v422
    %v424 = vrot.slane %v417, %v423
    %425 = vrot.lane.b32.xlu0 %v424, 64
    %v426 = vpop.permute.xlu0 %425
    %s428 = scalar_lea.vmem %s173, 7
    %429 = vst.msk [vmem:[%s428] sm:$0x1] %vm312, %v426
    %s430 = scalar_lea.vmem [#allocation6], 1
    %v431 = vld [vmem:[%s430] sm:$0x1]
    %v432 = vunpack.c.l.bf16 %v431
    %433 = vrot.lane.b32.xlu0 %v293, 64
    %v434 = vpop.permute.xlu0 %433
    %v436 = vsel %vm213, %v434, 0
    %438 = vmatprep.subr.bf16.mxu0 0
    %439 = vmatpush1.bf16.msra.mxu0 %v209
    %440 = vmatprep.subr.bf16.mxu0 0
    %441 = vmatpush1.bf16.msra.mxu0 %v210
    %442 = vmatprep.subr.bf16.mxu0 0
    %443 = vmatpush1.bf16.msra.mxu0 0
    %444 = vmatprep.subr.bf16.mxu0 0
    %445 = vmatpush1.bf16.msra.mxu0 0
    %446 = vmatprep.subr.bf16.mxu0 0
    %447 = vmatpush1.bf16.msra.mxu0 0
    %448 = vmatprep.subr.bf16.mxu0 0
    %449 = vmatpush1.bf16.msra.mxu0 0
    %450 = vmatprep.subr.bf16.mxu0 0
    %451 = vmatpush1.bf16.msra.mxu0 0
    %452 = vmatprep.subr.bf16.mxu0 0
    %453 = vmatpush1.bf16.msra.mxu0 0
    %454 = vmatprep.subr.bf16.mxu0 0
    %455 = vmatpush1.bf16.msra.mxu0 0
    %456 = vmatprep.subr.bf16.mxu0 0
    %457 = vmatpush1.bf16.msra.mxu0 0
    %458 = vmatprep.subr.bf16.mxu0 0
    %459 = vmatpush1.bf16.msra.mxu0 0
    %460 = vmatprep.subr.bf16.mxu0 0
    %461 = vmatpush1.bf16.msra.mxu0 0
    %462 = vmatprep.subr.bf16.mxu0 0
    %463 = vmatpush1.bf16.msra.mxu0 0
    %464 = vmatprep.subr.bf16.mxu0 0
    %465 = vmatpush1.bf16.msra.mxu0 0
    %466 = vmatprep.subr.bf16.mxu0 0
    %467 = vmatpush1.bf16.msra.mxu0 0
    %468 = vmatprep.subr.bf16.mxu0 0
    %469 = vmatpush1.bf16.msra.mxu0 0
    %470 = vmatprep.mubr.bf16.mxu0 0
    %471 = vmatmul.mubr.bf16.gmra.mrb[0].mxu0 %v436
    %v472 = vpop.f32.mrb[0].mxu0
    %v473 = vadd.f32 0.0, %v472
    %v474 = vpop.f32.mrb[0].mxu0
    %v475 = vpop.f32.mrb[0].mxu0
    %v476 = vpop.f32.mrb[0].mxu0
    %477 = vdwg.mxu0
    %v478 = vadd.f32 %v432, %v473
    %v479 = vxor.u32 %v478, 2147483648
    %v480 = vmul.f32 %v479, 1.442695
    %v481 = vpow.pop %v480
    %v482 = vadd.f32 %v481, 1.0
    %v483 = vrcp.pop %v482
    %v484 = vmul.f32 1.0, %v483
    %v485 = vtanh.pop %v478
    %v486 = vmul.f32 %v484, %v286
    %488 = vrot.lane.b32.xlu0 %v485, 32
    %v489 = vpop.permute.xlu0 %488
    %v491 = vmul.f32 %v484, %v489
    %493 = vrot.lane.b32.xlu0 %v491, 32
    %v494 = vpop.permute.xlu0 %493
    %v496 = vadd.f32 %v486, %v494
    %v497 = vtanh.pop %v496
    %499 = vrot.lane.b32.xlu0 %v497, 32
    %v500 = vpop.permute.xlu0 %499
    %v502 = vmul.f32 %v484, %v500
    %v503 = vpack.c.bf16 %v502, %v502
    %v506 = vunpack.c.l.s4 1966171168
    %v507 = vunpack.c.0.s8 %v506
    %v508 = vlaneseq
    %v509 = vshrl.u32 %v508, 7
    %v510 = vsub.s32 %v507, %v509
    %v511 = vrot.slane %v503, %v510
    %v513 = vunpack.c.l.s4 1966171168
    %v514 = vunpack.c.0.s8 %v513
    %v515 = vlaneseq
    %v516 = vshrl.u32 %v515, 7
    %v517 = vsub.s32 %v514, %v516
    %v518 = vrot.slane %v511, %v517
    %519 = vrot.lane.b32.xlu0 %v518, 64
    %v520 = vpop.permute.xlu0 %519
    %s522 = scalar_lea.vmem %s4, 1
    %523 = vst.msk [vmem:[%s522] sm:$0x1] %vm312, %v520
    %s524 = scalar_lea.vmem [#allocation7], 6
    %v525 = vld [vmem:[%s524] sm:$0x1]
    %v526 = vunpack.c.l.bf16 %v525
    %527 = vrot.lane.b32.xlu0 %v409, 64
    %v528 = vpop.permute.xlu0 %527
    %v530 = vsel %vm213, %v528, 0
    %532 = vmatprep.subr.bf16.mxu0 0
    %533 = vmatpush1.bf16.msra.mxu0 %v326
    %534 = vmatprep.subr.bf16.mxu0 0
    %535 = vmatpush1.bf16.msra.mxu0 %v327
    %536 = vmatprep.subr.bf16.mxu0 0
    %537 = vmatpush1.bf16.msra.mxu0 0
    %538 = vmatprep.subr.bf16.mxu0 0
    %539 = vmatpush1.bf16.msra.mxu0 0
    %540 = vmatprep.subr.bf16.mxu0 0
    %541 = vmatpush1.bf16.msra.mxu0 0
    %542 = vmatprep.subr.bf16.mxu0 0
    %543 = vmatpush1.bf16.msra.mxu0 0
    %544 = vmatprep.subr.bf16.mxu0 0
    %545 = vmatpush1.bf16.msra.mxu0 0
    %546 = vmatprep.subr.bf16.mxu0 0
    %547 = vmatpush1.bf16.msra.mxu0 0
    %548 = vmatprep.subr.bf16.mxu0 0
    %549 = vmatpush1.bf16.msra.mxu0 0
    %550 = vmatprep.subr.bf16.mxu0 0
    %551 = vmatpush1.bf16.msra.mxu0 0
    %552 = vmatprep.subr.bf16.mxu0 0
    %553 = vmatpush1.bf16.msra.mxu0 0
    %554 = vmatprep.subr.bf16.mxu0 0
    %555 = vmatpush1.bf16.msra.mxu0 0
    %556 = vmatprep.subr.bf16.mxu0 0
    %557 = vmatpush1.bf16.msra.mxu0 0
    %558 = vmatprep.subr.bf16.mxu0 0
    %559 = vmatpush1.bf16.msra.mxu0 0
    %560 = vmatprep.subr.bf16.mxu0 0
    %561 = vmatpush1.bf16.msra.mxu0 0
    %562 = vmatprep.subr.bf16.mxu0 0
    %563 = vmatpush1.bf16.msra.mxu0 0
    %564 = vmatprep.mubr.bf16.mxu0 0
    %565 = vmatmul.mubr.bf16.gmra.mrb[0].mxu0 %v530
    %v566 = vpop.f32.mrb[0].mxu0
    %v567 = vadd.f32 0.0, %v566
    %v568 = vpop.f32.mrb[0].mxu0
    %v569 = vpop.f32.mrb[0].mxu0
    %v570 = vpop.f32.mrb[0].mxu0
    %571 = vdwg.mxu0
    %v572 = vadd.f32 %v526, %v567
    %v573 = vxor.u32 %v572, 2147483648
    %v574 = vmul.f32 %v573, 1.442695
    %v575 = vpow.pop %v574
    %v576 = vadd.f32 %v575, 1.0
    %v577 = vrcp.pop %v576
    %v578 = vmul.f32 1.0, %v577
    %v579 = vtanh.pop %v572
    %v580 = vmul.f32 %v578, %v402
    %582 = vrot.lane.b32.xlu0 %v579, 32
    %v583 = vpop.permute.xlu0 %582
    %v585 = vmul.f32 %v578, %v583
    %587 = vrot.lane.b32.xlu0 %v585, 32
    %v588 = vpop.permute.xlu0 %587
    %v590 = vadd.f32 %v580, %v588
    %v591 = vtanh.pop %v590
    %593 = vrot.lane.b32.xlu0 %v591, 32
    %v594 = vpop.permute.xlu0 %593
    %v596 = vmul.f32 %v578, %v594
    %v597 = vpack.c.bf16 %v596, %v596
    %v600 = vunpack.c.l.s4 1966171168
    %v601 = vunpack.c.0.s8 %v600
    %v602 = vlaneseq
    %v603 = vshrl.u32 %v602, 7
    %v604 = vsub.s32 %v601, %v603
    %v605 = vrot.slane %v597, %v604
    %v607 = vunpack.c.l.s4 1966171168
    %v608 = vunpack.c.0.s8 %v607
    %v609 = vlaneseq
    %v610 = vshrl.u32 %v609, 7
    %v611 = vsub.s32 %v608, %v610
    %v612 = vrot.slane %v605, %v611
    %613 = vrot.lane.b32.xlu0 %v612, 64
    %v614 = vpop.permute.xlu0 %613
    %s616 = scalar_lea.vmem %s173, 6
    %617 = vst.msk [vmem:[%s616] sm:$0x1] %vm312, %v614
    %s618 = scalar_lea.vmem [#allocation6], 2
    %v619 = vld [vmem:[%s618] sm:$0x1]
    %v620 = vunpack.c.l.bf16 %v619
    %621 = vrot.lane.b32.xlu0 %v503, 64
    %v622 = vpop.permute.xlu0 %621
    %v624 = vsel %vm213, %v622, 0
    %626 = vmatprep.subr.bf16.mxu0 0
    %627 = vmatpush1.bf16.msra.mxu0 %v209
    %628 = vmatprep.subr.bf16.mxu0 0
    %629 = vmatpush1.bf16.msra.mxu0 %v210
    %630 = vmatprep.subr.bf16.mxu0 0
    %631 = vmatpush1.bf16.msra.mxu0 0
    %632 = vmatprep.subr.bf16.mxu0 0
    %633 = vmatpush1.bf16.msra.mxu0 0
    %634 = vmatprep.subr.bf16.mxu0 0
    %635 = vmatpush1.bf16.msra.mxu0 0
    %636 = vmatprep.subr.bf16.mxu0 0
    %637 = vmatpush1.bf16.msra.mxu0 0
    %638 = vmatprep.subr.bf16.mxu0 0
    %639 = vmatpush1.bf16.msra.mxu0 0
    %640 = vmatprep.subr.bf16.mxu0 0
    %641 = vmatpush1.bf16.msra.mxu0 0
    %642 = vmatprep.subr.bf16.mxu0 0
    %643 = vmatpush1.bf16.msra.mxu0 0
    %644 = vmatprep.subr.bf16.mxu0 0
    %645 = vmatpush1.bf16.msra.mxu0 0
    %646 = vmatprep.subr.bf16.mxu0 0
    %647 = vmatpush1.bf16.msra.mxu0 0
    %648 = vmatprep.subr.bf16.mxu0 0
    %649 = vmatpush1.bf16.msra.mxu0 0
    %650 = vmatprep.subr.bf16.mxu0 0
    %651 = vmatpush1.bf16.msra.mxu0 0
    %652 = vmatprep.subr.bf16.mxu0 0
    %653 = vmatpush1.bf16.msra.mxu0 0
    %654 = vmatprep.subr.bf16.mxu0 0
    %655 = vmatpush1.bf16.msra.mxu0 0
    %656 = vmatprep.subr.bf16.mxu0 0
    %657 = vmatpush1.bf16.msra.mxu0 0
    %658 = vmatprep.mubr.bf16.mxu0 0
    %659 = vmatmul.mubr.bf16.gmra.mrb[0].mxu0 %v624
    %v660 = vpop.f32.mrb[0].mxu0
    %v661 = vadd.f32 0.0, %v660
    %v662 = vpop.f32.mrb[0].mxu0
    %v663 = vpop.f32.mrb[0].mxu0
    %v664 = vpop.f32.mrb[0].mxu0
    %665 = vdwg.mxu0
    %v666 = vadd.f32 %v620, %v661
    %v667 = vxor.u32 %v666, 2147483648
    %v668 = vmul.f32 %v667, 1.442695
    %v669 = vpow.pop %v668
    %v670 = vadd.f32 %v669, 1.0
    %v671 = vrcp.pop %v670
    %v672 = vmul.f32 1.0, %v671
    %v673 = vtanh.pop %v666
    %v674 = vmul.f32 %v672, %v496
    %676 = vrot.lane.b32.xlu0 %v673, 32
    %v677 = vpop.permute.xlu0 %676
    %v679 = vmul.f32 %v672, %v677
    %681 = vrot.lane.b32.xlu0 %v679, 32
    %v682 = vpop.permute.xlu0 %681
    %v684 = vadd.f32 %v674, %v682
    %v685 = vtanh.pop %v684
    %687 = vrot.lane.b32.xlu0 %v685, 32
    %v688 = vpop.permute.xlu0 %687
    %v690 = vmul.f32 %v672, %v688
    %v691 = vpack.c.bf16 %v690, %v690
    %v694 = vunpack.c.l.s4 1966171168
    %v695 = vunpack.c.0.s8 %v694
    %v696 = vlaneseq
    %v697 = vshrl.u32 %v696, 7
    %v698 = vsub.s32 %v695, %v697
    %v699 = vrot.slane %v691, %v698
    %v701 = vunpack.c.l.s4 1966171168
    %v702 = vunpack.c.0.s8 %v701
    %v703 = vlaneseq
    %v704 = vshrl.u32 %v703, 7
    %v705 = vsub.s32 %v702, %v704
    %v706 = vrot.slane %v699, %v705
    %707 = vrot.lane.b32.xlu0 %v706, 64
    %v708 = vpop.permute.xlu0 %707
    %s710 = scalar_lea.vmem %s4, 2
    %711 = vst.msk [vmem:[%s710] sm:$0x1] %vm312, %v708
    %s712 = scalar_lea.vmem [#allocation7], 5
    %v713 = vld [vmem:[%s712] sm:$0x1]
    %v714 = vunpack.c.l.bf16 %v713
    %715 = vrot.lane.b32.xlu0 %v597, 64
    %v716 = vpop.permute.xlu0 %715
    %v718 = vsel %vm213, %v716, 0
    %720 = vmatprep.subr.bf16.mxu0 0
    %721 = vmatpush1.bf16.msra.mxu0 %v326
    %722 = vmatprep.subr.bf16.mxu0 0
    %723 = vmatpush1.bf16.msra.mxu0 %v327
    %724 = vmatprep.subr.bf16.mxu0 0
    %725 = vmatpush1.bf16.msra.mxu0 0
    %726 = vmatprep.subr.bf16.mxu0 0
    %727 = vmatpush1.bf16.msra.mxu0 0
    %728 = vmatprep.subr.bf16.mxu0 0
    %729 = vmatpush1.bf16.msra.mxu0 0
    %730 = vmatprep.subr.bf16.mxu0 0
    %731 = vmatpush1.bf16.msra.mxu0 0
    %732 = vmatprep.subr.bf16.mxu0 0
    %733 = vmatpush1.bf16.msra.mxu0 0
    %734 = vmatprep.subr.bf16.mxu0 0
    %735 = vmatpush1.bf16.msra.mxu0 0
    %736 = vmatprep.subr.bf16.mxu0 0
    %737 = vmatpush1.bf16.msra.mxu0 0
    %738 = vmatprep.subr.bf16.mxu0 0
    %739 = vmatpush1.bf16.msra.mxu0 0
    %740 = vmatprep.subr.bf16.mxu0 0
    %741 = vmatpush1.bf16.msra.mxu0 0
    %742 = vmatprep.subr.bf16.mxu0 0
    %743 = vmatpush1.bf16.msra.mxu0 0
    %744 = vmatprep.subr.bf16.mxu0 0
    %745 = vmatpush1.bf16.msra.mxu0 0
    %746 = vmatprep.subr.bf16.mxu0 0
    %747 = vmatpush1.bf16.msra.mxu0 0
    %748 = vmatprep.subr.bf16.mxu0 0
    %749 = vmatpush1.bf16.msra.mxu0 0
    %750 = vmatprep.subr.bf16.mxu0 0
    %751 = vmatpush1.bf16.msra.mxu0 0
    %752 = vmatprep.mubr.bf16.mxu0 0
    %753 = vmatmul.mubr.bf16.gmra.mrb[0].mxu0 %v718
    %v754 = vpop.f32.mrb[0].mxu0
    %v755 = vadd.f32 0.0, %v754
    %v756 = vpop.f32.mrb[0].mxu0
    %v757 = vpop.f32.mrb[0].mxu0
    %v758 = vpop.f32.mrb[0].mxu0
    %759 = vdwg.mxu0
    %v760 = vadd.f32 %v714, %v755
    %v761 = vxor.u32 %v760, 2147483648
    %v762 = vmul.f32 %v761, 1.442695
    %v763 = vpow.pop %v762
    %v764 = vadd.f32 %v763, 1.0
    %v765 = vrcp.pop %v764
    %v766 = vmul.f32 1.0, %v765
    %v767 = vtanh.pop %v760
    %v768 = vmul.f32 %v766, %v590
    %770 = vrot.lane.b32.xlu0 %v767, 32
    %v771 = vpop.permute.xlu0 %770
    %v773 = vmul.f32 %v766, %v771
    %775 = vrot.lane.b32.xlu0 %v773, 32
    %v776 = vpop.permute.xlu0 %775
    %v778 = vadd.f32 %v768, %v776
    %v779 = vtanh.pop %v778
    %781 = vrot.lane.b32.xlu0 %v779, 32
    %v782 = vpop.permute.xlu0 %781
    %v784 = vmul.f32 %v766, %v782
    %v785 = vpack.c.bf16 %v784, %v784
    %v788 = vunpack.c.l.s4 1966171168
    %v789 = vunpack.c.0.s8 %v788
    %v790 = vlaneseq
    %v791 = vshrl.u32 %v790, 7
    %v792 = vsub.s32 %v789, %v791
    %v793 = vrot.slane %v785, %v792
    %v795 = vunpack.c.l.s4 1966171168
    %v796 = vunpack.c.0.s8 %v795
    %v797 = vlaneseq
    %v798 = vshrl.u32 %v797, 7
    %v799 = vsub.s32 %v796, %v798
    %v800 = vrot.slane %v793, %v799
    %801 = vrot.lane.b32.xlu0 %v800, 64
    %v802 = vpop.permute.xlu0 %801
    %s804 = scalar_lea.vmem %s173, 5
    %805 = vst.msk [vmem:[%s804] sm:$0x1] %vm312, %v802
    %s806 = scalar_lea.vmem [#allocation6], 3
    %v807 = vld [vmem:[%s806] sm:$0x1]
    %v808 = vunpack.c.l.bf16 %v807
    %809 = vrot.lane.b32.xlu0 %v691, 64
    %v810 = vpop.permute.xlu0 %809
    %v812 = vsel %vm213, %v810, 0
    %814 = vmatprep.subr.bf16.mxu0 0
    %815 = vmatpush1.bf16.msra.mxu0 %v209
    %816 = vmatprep.subr.bf16.mxu0 0
    %817 = vmatpush1.bf16.msra.mxu0 %v210
    %818 = vmatprep.subr.bf16.mxu0 0
    %819 = vmatpush1.bf16.msra.mxu0 0
    %820 = vmatprep.subr.bf16.mxu0 0
    %821 = vmatpush1.bf16.msra.mxu0 0
    %822 = vmatprep.subr.bf16.mxu0 0
    %823 = vmatpush1.bf16.msra.mxu0 0
    %824 = vmatprep.subr.bf16.mxu0 0
    %825 = vmatpush1.bf16.msra.mxu0 0
    %826 = vmatprep.subr.bf16.mxu0 0
    %827 = vmatpush1.bf16.msra.mxu0 0
    %828 = vmatprep.subr.bf16.mxu0 0
    %829 = vmatpush1.bf16.msra.mxu0 0
    %830 = vmatprep.subr.bf16.mxu0 0
    %831 = vmatpush1.bf16.msra.mxu0 0
    %832 = vmatprep.subr.bf16.mxu0 0
    %833 = vmatpush1.bf16.msra.mxu0 0
    %834 = vmatprep.subr.bf16.mxu0 0
    %835 = vmatpush1.bf16.msra.mxu0 0
    %836 = vmatprep.subr.bf16.mxu0 0
    %837 = vmatpush1.bf16.msra.mxu0 0
    %838 = vmatprep.subr.bf16.mxu0 0
    %839 = vmatpush1.bf16.msra.mxu0 0
    %840 = vmatprep.subr.bf16.mxu0 0
    %841 = vmatpush1.bf16.msra.mxu0 0
    %842 = vmatprep.subr.bf16.mxu0 0
    %843 = vmatpush1.bf16.msra.mxu0 0
    %844 = vmatprep.subr.bf16.mxu0 0
    %845 = vmatpush1.bf16.msra.mxu0 0
    %846 = vmatprep.mubr.bf16.mxu0 0
    %847 = vmatmul.mubr.bf16.gmra.mrb[0].mxu0 %v812
    %v848 = vpop.f32.mrb[0].mxu0
    %v849 = vadd.f32 0.0, %v848
    %v850 = vpop.f32.mrb[0].mxu0
    %v851 = vpop.f32.mrb[0].mxu0
    %v852 = vpop.f32.mrb[0].mxu0
    %853 = vdwg.mxu0
    %v854 = vadd.f32 %v808, %v849
    %v855 = vxor.u32 %v854, 2147483648
    %v856 = vmul.f32 %v855, 1.442695
    %v857 = vpow.pop %v856
    %v858 = vadd.f32 %v857, 1.0
    %v859 = vrcp.pop %v858
    %v860 = vmul.f32 1.0, %v859
    %v861 = vtanh.pop %v854
    %v862 = vmul.f32 %v860, %v684
    %864 = vrot.lane.b32.xlu0 %v861, 32
    %v865 = vpop.permute.xlu0 %864
    %v867 = vmul.f32 %v860, %v865
    %869 = vrot.lane.b32.xlu0 %v867, 32
    %v870 = vpop.permute.xlu0 %869
    %v872 = vadd.f32 %v862, %v870
    %v873 = vtanh.pop %v872
    %875 = vrot.lane.b32.xlu0 %v873, 32
    %v876 = vpop.permute.xlu0 %875
    %v878 = vmul.f32 %v860, %v876
    %v879 = vpack.c.bf16 %v878, %v878
    %v882 = vunpack.c.l.s4 1966171168
    %v883 = vunpack.c.0.s8 %v882
    %v884 = vlaneseq
    %v885 = vshrl.u32 %v884, 7
    %v886 = vsub.s32 %v883, %v885
    %v887 = vrot.slane %v879, %v886
    %v889 = vunpack.c.l.s4 1966171168
    %v890 = vunpack.c.0.s8 %v889
    %v891 = vlaneseq
    %v892 = vshrl.u32 %v891, 7
    %v893 = vsub.s32 %v890, %v892
    %v894 = vrot.slane %v887, %v893
    %895 = vrot.lane.b32.xlu0 %v894, 64
    %v896 = vpop.permute.xlu0 %895
    %s898 = scalar_lea.vmem %s4, 3
    %899 = vst.msk [vmem:[%s898] sm:$0x1] %vm312, %v896
    %s900 = scalar_lea.vmem [#allocation7], 4
    %v901 = vld [vmem:[%s900] sm:$0x1]
    %v902 = vunpack.c.l.bf16 %v901
    %903 = vrot.lane.b32.xlu0 %v785, 64
    %v904 = vpop.permute.xlu0 %903
    %v906 = vsel %vm213, %v904, 0
    %908 = vmatprep.subr.bf16.mxu0 0
    %909 = vmatpush1.bf16.msra.mxu0 %v326
    %910 = vmatprep.subr.bf16.mxu0 0
    %911 = vmatpush1.bf16.msra.mxu0 %v327
    %912 = vmatprep.subr.bf16.mxu0 0
    %913 = vmatpush1.bf16.msra.mxu0 0
    %914 = vmatprep.subr.bf16.mxu0 0
    %915 = vmatpush1.bf16.msra.mxu0 0
    %916 = vmatprep.subr.bf16.mxu0 0
    %917 = vmatpush1.bf16.msra.mxu0 0
    %918 = vmatprep.subr.bf16.mxu0 0
    %919 = vmatpush1.bf16.msra.mxu0 0
    %920 = vmatprep.subr.bf16.mxu0 0
    %921 = vmatpush1.bf16.msra.mxu0 0
    %922 = vmatprep.subr.bf16.mxu0 0
    %923 = vmatpush1.bf16.msra.mxu0 0
    %924 = vmatprep.subr.bf16.mxu0 0
    %925 = vmatpush1.bf16.msra.mxu0 0
    %926 = vmatprep.subr.bf16.mxu0 0
    %927 = vmatpush1.bf16.msra.mxu0 0
    %928 = vmatprep.subr.bf16.mxu0 0
    %929 = vmatpush1.bf16.msra.mxu0 0
    %930 = vmatprep.subr.bf16.mxu0 0
    %931 = vmatpush1.bf16.msra.mxu0 0
    %932 = vmatprep.subr.bf16.mxu0 0
    %933 = vmatpush1.bf16.msra.mxu0 0
    %934 = vmatprep.subr.bf16.mxu0 0
    %935 = vmatpush1.bf16.msra.mxu0 0
    %936 = vmatprep.subr.bf16.mxu0 0
    %937 = vmatpush1.bf16.msra.mxu0 0
    %938 = vmatprep.subr.bf16.mxu0 0
    %939 = vmatpush1.bf16.msra.mxu0 0
    %940 = vmatprep.mubr.bf16.mxu0 0
    %941 = vmatmul.mubr.bf16.gmra.mrb[0].mxu0 %v906
    %v942 = vpop.f32.mrb[0].mxu0
    %v943 = vadd.f32 0.0, %v942
    %v944 = vpop.f32.mrb[0].mxu0
    %v945 = vpop.f32.mrb[0].mxu0
    %v946 = vpop.f32.mrb[0].mxu0
    %947 = vdwg.mxu0
    %v948 = vadd.f32 %v902, %v943
    %v949 = vxor.u32 %v948, 2147483648
    %v950 = vmul.f32 %v949, 1.442695
    %v951 = vpow.pop %v950
    %v952 = vadd.f32 %v951, 1.0
    %v953 = vrcp.pop %v952
    %v954 = vmul.f32 1.0, %v953
    %v955 = vtanh.pop %v948
    %v956 = vmul.f32 %v954, %v778
    %958 = vrot.lane.b32.xlu0 %v955, 32
    %v959 = vpop.permute.xlu0 %958
    %v961 = vmul.f32 %v954, %v959
    %963 = vrot.lane.b32.xlu0 %v961, 32
    %v964 = vpop.permute.xlu0 %963
    %v966 = vadd.f32 %v956, %v964
    %v967 = vtanh.pop %v966
    %969 = vrot.lane.b32.xlu0 %v967, 32
    %v970 = vpop.permute.xlu0 %969
    %v972 = vmul.f32 %v954, %v970
    %v973 = vpack.c.bf16 %v972, %v972
    %v976 = vunpack.c.l.s4 1966171168
    %v977 = vunpack.c.0.s8 %v976
    %v978 = vlaneseq
    %v979 = vshrl.u32 %v978, 7
    %v980 = vsub.s32 %v977, %v979
    %v981 = vrot.slane %v973, %v980
    %v983 = vunpack.c.l.s4 1966171168
    %v984 = vunpack.c.0.s8 %v983
    %v985 = vlaneseq
    %v986 = vshrl.u32 %v985, 7
    %v987 = vsub.s32 %v984, %v986
    %v988 = vrot.slane %v981, %v987
    %989 = vrot.lane.b32.xlu0 %v988, 64
    %v990 = vpop.permute.xlu0 %989
    %s992 = scalar_lea.vmem %s173, 4
    %993 = vst.msk [vmem:[%s992] sm:$0x1] %vm312, %v990
    %s994 = scalar_lea.vmem [#allocation6], 4
    %v995 = vld [vmem:[%s994] sm:$0x1]
    %v996 = vunpack.c.l.bf16 %v995
    %997 = vrot.lane.b32.xlu0 %v879, 64
    %v998 = vpop.permute.xlu0 %997
    %v1000 = vsel %vm213, %v998, 0
    %1002 = vmatprep.subr.bf16.mxu0 0
    %1003 = vmatpush1.bf16.msra.mxu0 %v209
    %1004 = vmatprep.subr.bf16.mxu0 0
    %1005 = vmatpush1.bf16.msra.mxu0 %v210
    %1006 = vmatprep.subr.bf16.mxu0 0
    %1007 = vmatpush1.bf16.msra.mxu0 0
    %1008 = vmatprep.subr.bf16.mxu0 0
    %1009 = vmatpush1.bf16.msra.mxu0 0
    %1010 = vmatprep.subr.bf16.mxu0 0
    %1011 = vmatpush1.bf16.msra.mxu0 0
    %1012 = vmatprep.subr.bf16.mxu0 0
    %1013 = vmatpush1.bf16.msra.mxu0 0
    %1014 = vmatprep.subr.bf16.mxu0 0
    %1015 = vmatpush1.bf16.msra.mxu0 0
    %1016 = vmatprep.subr.bf16.mxu0 0
    %1017 = vmatpush1.bf16.msra.mxu0 0
    %1018 = vmatprep.subr.bf16.mxu0 0
    %1019 = vmatpush1.bf16.msra.mxu0 0
    %1020 = vmatprep.subr.bf16.mxu0 0
    %1021 = vmatpush1.bf16.msra.mxu0 0
    %1022 = vmatprep.subr.bf16.mxu0 0
    %1023 = vmatpush1.bf16.msra.mxu0 0
    %1024 = vmatprep.subr.bf16.mxu0 0
    %1025 = vmatpush1.bf16.msra.mxu0 0
    %1026 = vmatprep.subr.bf16.mxu0 0
    %1027 = vmatpush1.bf16.msra.mxu0 0
    %1028 = vmatprep.subr.bf16.mxu0 0
    %1029 = vmatpush1.bf16.msra.mxu0 0
    %1030 = vmatprep.subr.bf16.mxu0 0
    %1031 = vmatpush1.bf16.msra.mxu0 0
    %1032 = vmatprep.subr.bf16.mxu0 0
    %1033 = vmatpush1.bf16.msra.mxu0 0
    %1034 = vmatprep.mubr.bf16.mxu0 0
    %1035 = vmatmul.mubr.bf16.gmra.mrb[0].mxu0 %v1000
    %v1036 = vpop.f32.mrb[0].mxu0
    %v1037 = vadd.f32 0.0, %v1036
    %v1038 = vpop.f32.mrb[0].mxu0
    %v1039 = vpop.f32.mrb[0].mxu0
    %v1040 = vpop.f32.mrb[0].mxu0
    %1041 = vdwg.mxu0
    %v1042 = vadd.f32 %v996, %v1037
    %v1043 = vxor.u32 %v1042, 2147483648
    %v1044 = vmul.f32 %v1043, 1.442695
    %v1045 = vpow.pop %v1044
    %v1046 = vadd.f32 %v1045, 1.0
    %v1047 = vrcp.pop %v1046
    %v1048 = vmul.f32 1.0, %v1047
    %v1049 = vtanh.pop %v1042
    %v1050 = vmul.f32 %v1048, %v872
    %1052 = vrot.lane.b32.xlu0 %v1049, 32
    %v1053 = vpop.permute.xlu0 %1052
    %v1055 = vmul.f32 %v1048, %v1053
    %1057 = vrot.lane.b32.xlu0 %v1055, 32
    %v1058 = vpop.permute.xlu0 %1057
    %v1060 = vadd.f32 %v1050, %v1058
    %v1061 = vtanh.pop %v1060
    %1063 = vrot.lane.b32.xlu0 %v1061, 32
    %v1064 = vpop.permute.xlu0 %1063
    %v1066 = vmul.f32 %v1048, %v1064
    %v1067 = vpack.c.bf16 %v1066, %v1066
    %v1070 = vunpack.c.l.s4 1966171168
    %v1071 = vunpack.c.0.s8 %v1070
    %v1072 = vlaneseq
    %v1073 = vshrl.u32 %v1072, 7
    %v1074 = vsub.s32 %v1071, %v1073
    %v1075 = vrot.slane %v1067, %v1074
    %v1077 = vunpack.c.l.s4 1966171168
    %v1078 = vunpack.c.0.s8 %v1077
    %v1079 = vlaneseq
    %v1080 = vshrl.u32 %v1079, 7
    %v1081 = vsub.s32 %v1078, %v1080
    %v1082 = vrot.slane %v1075, %v1081
    %1083 = vrot.lane.b32.xlu0 %v1082, 64
    %v1084 = vpop.permute.xlu0 %1083
    %s1086 = scalar_lea.vmem %s4, 4
    %1087 = vst.msk [vmem:[%s1086] sm:$0x1] %vm312, %v1084
    %s1088 = scalar_lea.vmem [#allocation7], 3
    %v1089 = vld [vmem:[%s1088] sm:$0x1]
    %v1090 = vunpack.c.l.bf16 %v1089
    %1091 = vrot.lane.b32.xlu0 %v973, 64
    %v1092 = vpop.permute.xlu0 %1091
    %v1094 = vsel %vm213, %v1092, 0
    %1096 = vmatprep.subr.bf16.mxu0 0
    %1097 = vmatpush1.bf16.msra.mxu0 %v326
    %1098 = vmatprep.subr.bf16.mxu0 0
    %1099 = vmatpush1.bf16.msra.mxu0 %v327
    %1100 = vmatprep.subr.bf16.mxu0 0
    %1101 = vmatpush1.bf16.msra.mxu0 0
    %1102 = vmatprep.subr.bf16.mxu0 0
    %1103 = vmatpush1.bf16.msra.mxu0 0
    %1104 = vmatprep.subr.bf16.mxu0 0
    %1105 = vmatpush1.bf16.msra.mxu0 0
    %1106 = vmatprep.subr.bf16.mxu0 0
    %1107 = vmatpush1.bf16.msra.mxu0 0
    %1108 = vmatprep.subr.bf16.mxu0 0
    %1109 = vmatpush1.bf16.msra.mxu0 0
    %1110 = vmatprep.subr.bf16.mxu0 0
    %1111 = vmatpush1.bf16.msra.mxu0 0
    %1112 = vmatprep.subr.bf16.mxu0 0
    %1113 = vmatpush1.bf16.msra.mxu0 0
    %1114 = vmatprep.subr.bf16.mxu0 0
    %1115 = vmatpush1.bf16.msra.mxu0 0
    %1116 = vmatprep.subr.bf16.mxu0 0
    %1117 = vmatpush1.bf16.msra.mxu0 0
    %1118 = vmatprep.subr.bf16.mxu0 0
    %1119 = vmatpush1.bf16.msra.mxu0 0
    %1120 = vmatprep.subr.bf16.mxu0 0
    %1121 = vmatpush1.bf16.msra.mxu0 0
    %1122 = vmatprep.subr.bf16.mxu0 0
    %1123 = vmatpush1.bf16.msra.mxu0 0
    %1124 = vmatprep.subr.bf16.mxu0 0
    %1125 = vmatpush1.bf16.msra.mxu0 0
    %1126 = vmatprep.subr.bf16.mxu0 0
    %1127 = vmatpush1.bf16.msra.mxu0 0
    %1128 = vmatprep.mubr.bf16.mxu0 0
    %1129 = vmatmul.mubr.bf16.gmra.mrb[0].mxu0 %v1094
    %v1130 = vpop.f32.mrb[0].mxu0
    %v1131 = vadd.f32 0.0, %v1130
    %v1132 = vpop.f32.mrb[0].mxu0
    %v1133 = vpop.f32.mrb[0].mxu0
    %v1134 = vpop.f32.mrb[0].mxu0
    %1135 = vdwg.mxu0
    %v1136 = vadd.f32 %v1090, %v1131
    %v1137 = vxor.u32 %v1136, 2147483648
    %v1138 = vmul.f32 %v1137, 1.442695
    %v1139 = vpow.pop %v1138
    %v1140 = vadd.f32 %v1139, 1.0
    %v1141 = vrcp.pop %v1140
    %v1142 = vmul.f32 1.0, %v1141
    %v1143 = vtanh.pop %v1136
    %v1144 = vmul.f32 %v1142, %v966
    %1146 = vrot.lane.b32.xlu0 %v1143, 32
    %v1147 = vpop.permute.xlu0 %1146
    %v1149 = vmul.f32 %v1142, %v1147
    %1151 = vrot.lane.b32.xlu0 %v1149, 32
    %v1152 = vpop.permute.xlu0 %1151
    %v1154 = vadd.f32 %v1144, %v1152
    %v1155 = vtanh.pop %v1154
    %1157 = vrot.lane.b32.xlu0 %v1155, 32
    %v1158 = vpop.permute.xlu0 %1157
    %v1160 = vmul.f32 %v1142, %v1158
    %v1161 = vpack.c.bf16 %v1160, %v1160
    %v1164 = vunpack.c.l.s4 1966171168
    %v1165 = vunpack.c.0.s8 %v1164
    %v1166 = vlaneseq
    %v1167 = vshrl.u32 %v1166, 7
    %v1168 = vsub.s32 %v1165, %v1167
    %v1169 = vrot.slane %v1161, %v1168
    %v1171 = vunpack.c.l.s4 1966171168
    %v1172 = vunpack.c.0.s8 %v1171
    %v1173 = vlaneseq
    %v1174 = vshrl.u32 %v1173, 7
    %v1175 = vsub.s32 %v1172, %v1174
    %v1176 = vrot.slane %v1169, %v1175
    %1177 = vrot.lane.b32.xlu0 %v1176, 64
    %v1178 = vpop.permute.xlu0 %1177
    %s1180 = scalar_lea.vmem %s173, 3
    %1181 = vst.msk [vmem:[%s1180] sm:$0x1] %vm312, %v1178
    %s1182 = scalar_lea.vmem [#allocation6], 5
    %v1183 = vld [vmem:[%s1182] sm:$0x1]
    %v1184 = vunpack.c.l.bf16 %v1183
    %1185 = vrot.lane.b32.xlu0 %v1067, 64
    %v1186 = vpop.permute.xlu0 %1185
    %v1188 = vsel %vm213, %v1186, 0
    %1190 = vmatprep.subr.bf16.mxu0 0
    %1191 = vmatpush1.bf16.msra.mxu0 %v209
    %1192 = vmatprep.subr.bf16.mxu0 0
    %1193 = vmatpush1.bf16.msra.mxu0 %v210
    %1194 = vmatprep.subr.bf16.mxu0 0
    %1195 = vmatpush1.bf16.msra.mxu0 0
    %1196 = vmatprep.subr.bf16.mxu0 0
    %1197 = vmatpush1.bf16.msra.mxu0 0
    %1198 = vmatprep.subr.bf16.mxu0 0
    %1199 = vmatpush1.bf16.msra.mxu0 0
    %1200 = vmatprep.subr.bf16.mxu0 0
    %1201 = vmatpush1.bf16.msra.mxu0 0
    %1202 = vmatprep.subr.bf16.mxu0 0
    %1203 = vmatpush1.bf16.msra.mxu0 0
    %1204 = vmatprep.subr.bf16.mxu0 0
    %1205 = vmatpush1.bf16.msra.mxu0 0
    %1206 = vmatprep.subr.bf16.mxu0 0
    %1207 = vmatpush1.bf16.msra.mxu0 0
    %1208 = vmatprep.subr.bf16.mxu0 0
    %1209 = vmatpush1.bf16.msra.mxu0 0
    %1210 = vmatprep.subr.bf16.mxu0 0
    %1211 = vmatpush1.bf16.msra.mxu0 0
    %1212 = vmatprep.subr.bf16.mxu0 0
    %1213 = vmatpush1.bf16.msra.mxu0 0
    %1214 = vmatprep.subr.bf16.mxu0 0
    %1215 = vmatpush1.bf16.msra.mxu0 0
    %1216 = vmatprep.subr.bf16.mxu0 0
    %1217 = vmatpush1.bf16.msra.mxu0 0
    %1218 = vmatprep.subr.bf16.mxu0 0
    %1219 = vmatpush1.bf16.msra.mxu0 0
    %1220 = vmatprep.subr.bf16.mxu0 0
    %1221 = vmatpush1.bf16.msra.mxu0 0
    %1222 = vmatprep.mubr.bf16.mxu0 0
    %1223 = vmatmul.mubr.bf16.gmra.mrb[0].mxu0 %v1188
    %v1224 = vpop.f32.mrb[0].mxu0
    %v1225 = vadd.f32 0.0, %v1224
    %v1226 = vpop.f32.mrb[0].mxu0
    %v1227 = vpop.f32.mrb[0].mxu0
    %v1228 = vpop.f32.mrb[0].mxu0
    %1229 = vdwg.mxu0
    %v1230 = vadd.f32 %v1184, %v1225
    %v1231 = vxor.u32 %v1230, 2147483648
    %v1232 = vmul.f32 %v1231, 1.442695
    %v1233 = vpow.pop %v1232
    %v1234 = vadd.f32 %v1233, 1.0
    %v1235 = vrcp.pop %v1234
    %v1236 = vmul.f32 1.0, %v1235
    %v1237 = vtanh.pop %v1230
    %v1238 = vmul.f32 %v1236, %v1060
    %1240 = vrot.lane.b32.xlu0 %v1237, 32
    %v1241 = vpop.permute.xlu0 %1240
    %v1243 = vmul.f32 %v1236, %v1241
    %1245 = vrot.lane.b32.xlu0 %v1243, 32
    %v1246 = vpop.permute.xlu0 %1245
    %v1248 = vadd.f32 %v1238, %v1246
    %v1249 = vtanh.pop %v1248
    %1251 = vrot.lane.b32.xlu0 %v1249, 32
    %v1252 = vpop.permute.xlu0 %1251
    %v1254 = vmul.f32 %v1236, %v1252
    %v1255 = vpack.c.bf16 %v1254, %v1254
    %v1258 = vunpack.c.l.s4 1966171168
    %v1259 = vunpack.c.0.s8 %v1258
    %v1260 = vlaneseq
    %v1261 = vshrl.u32 %v1260, 7
    %v1262 = vsub.s32 %v1259, %v1261
    %v1263 = vrot.slane %v1255, %v1262
    %v1265 = vunpack.c.l.s4 1966171168
    %v1266 = vunpack.c.0.s8 %v1265
    %v1267 = vlaneseq
    %v1268 = vshrl.u32 %v1267, 7
    %v1269 = vsub.s32 %v1266, %v1268
    %v1270 = vrot.slane %v1263, %v1269
    %1271 = vrot.lane.b32.xlu0 %v1270, 64
    %v1272 = vpop.permute.xlu0 %1271
    %s1274 = scalar_lea.vmem %s4, 5
    %1275 = vst.msk [vmem:[%s1274] sm:$0x1] %vm312, %v1272
    %s1276 = scalar_lea.vmem [#allocation7], 2
    %v1277 = vld [vmem:[%s1276] sm:$0x1]
    %v1278 = vunpack.c.l.bf16 %v1277
    %1279 = vrot.lane.b32.xlu0 %v1161, 64
    %v1280 = vpop.permute.xlu0 %1279
    %v1282 = vsel %vm213, %v1280, 0
    %1284 = vmatprep.subr.bf16.mxu0 0
    %1285 = vmatpush1.bf16.msra.mxu0 %v326
    %1286 = vmatprep.subr.bf16.mxu0 0
    %1287 = vmatpush1.bf16.msra.mxu0 %v327
    %1288 = vmatprep.subr.bf16.mxu0 0
    %1289 = vmatpush1.bf16.msra.mxu0 0
    %1290 = vmatprep.subr.bf16.mxu0 0
    %1291 = vmatpush1.bf16.msra.mxu0 0
    %1292 = vmatprep.subr.bf16.mxu0 0
    %1293 = vmatpush1.bf16.msra.mxu0 0
    %1294 = vmatprep.subr.bf16.mxu0 0
    %1295 = vmatpush1.bf16.msra.mxu0 0
    %1296 = vmatprep.subr.bf16.mxu0 0
    %1297 = vmatpush1.bf16.msra.mxu0 0
    %1298 = vmatprep.subr.bf16.mxu0 0
    %1299 = vmatpush1.bf16.msra.mxu0 0
    %1300 = vmatprep.subr.bf16.mxu0 0
    %1301 = vmatpush1.bf16.msra.mxu0 0
    %1302 = vmatprep.subr.bf16.mxu0 0
    %1303 = vmatpush1.bf16.msra.mxu0 0
    %1304 = vmatprep.subr.bf16.mxu0 0
    %1305 = vmatpush1.bf16.msra.mxu0 0
    %1306 = vmatprep.subr.bf16.mxu0 0
    %1307 = vmatpush1.bf16.msra.mxu0 0
    %1308 = vmatprep.subr.bf16.mxu0 0
    %1309 = vmatpush1.bf16.msra.mxu0 0
    %1310 = vmatprep.subr.bf16.mxu0 0
    %1311 = vmatpush1.bf16.msra.mxu0 0
    %1312 = vmatprep.subr.bf16.mxu0 0
    %1313 = vmatpush1.bf16.msra.mxu0 0
    %1314 = vmatprep.subr.bf16.mxu0 0
    %1315 = vmatpush1.bf16.msra.mxu0 0
    %1316 = vmatprep.mubr.bf16.mxu0 0
    %1317 = vmatmul.mubr.bf16.gmra.mrb[0].mxu0 %v1282
    %v1318 = vpop.f32.mrb[0].mxu0
    %v1319 = vadd.f32 0.0, %v1318
    %v1320 = vpop.f32.mrb[0].mxu0
    %v1321 = vpop.f32.mrb[0].mxu0
    %v1322 = vpop.f32.mrb[0].mxu0
    %1323 = vdwg.mxu0
    %v1324 = vadd.f32 %v1278, %v1319
    %v1325 = vxor.u32 %v1324, 2147483648
    %v1326 = vmul.f32 %v1325, 1.442695
    %v1327 = vpow.pop %v1326
    %v1328 = vadd.f32 %v1327, 1.0
    %v1329 = vrcp.pop %v1328
    %v1330 = vmul.f32 1.0, %v1329
    %v1331 = vtanh.pop %v1324
    %v1332 = vmul.f32 %v1330, %v1154
    %1334 = vrot.lane.b32.xlu0 %v1331, 32
    %v1335 = vpop.permute.xlu0 %1334
    %v1337 = vmul.f32 %v1330, %v1335
    %1339 = vrot.lane.b32.xlu0 %v1337, 32
    %v1340 = vpop.permute.xlu0 %1339
    %v1342 = vadd.f32 %v1332, %v1340
    %v1343 = vtanh.pop %v1342
    %1345 = vrot.lane.b32.xlu0 %v1343, 32
    %v1346 = vpop.permute.xlu0 %1345
    %v1348 = vmul.f32 %v1330, %v1346
    %v1349 = vpack.c.bf16 %v1348, %v1348
    %v1352 = vunpack.c.l.s4 1966171168
    %v1353 = vunpack.c.0.s8 %v1352
    %v1354 = vlaneseq
    %v1355 = vshrl.u32 %v1354, 7
    %v1356 = vsub.s32 %v1353, %v1355
    %v1357 = vrot.slane %v1349, %v1356
    %v1359 = vunpack.c.l.s4 1966171168
    %v1360 = vunpack.c.0.s8 %v1359
    %v1361 = vlaneseq
    %v1362 = vshrl.u32 %v1361, 7
    %v1363 = vsub.s32 %v1360, %v1362
    %v1364 = vrot.slane %v1357, %v1363
    %1365 = vrot.lane.b32.xlu0 %v1364, 64
    %v1366 = vpop.permute.xlu0 %1365
    %s1368 = scalar_lea.vmem %s173, 2
    %1369 = vst.msk [vmem:[%s1368] sm:$0x1] %vm312, %v1366
    %s1370 = scalar_lea.vmem [#allocation6], 6
    %v1371 = vld [vmem:[%s1370] sm:$0x1]
    %v1372 = vunpack.c.l.bf16 %v1371
    %1373 = vrot.lane.b32.xlu0 %v1255, 64
    %v1374 = vpop.permute.xlu0 %1373
    %v1376 = vsel %vm213, %v1374, 0
    %1378 = vmatprep.subr.bf16.mxu0 0
    %1379 = vmatpush1.bf16.msra.mxu0 %v209
    %1380 = vmatprep.subr.bf16.mxu0 0
    %1381 = vmatpush1.bf16.msra.mxu0 %v210
    %1382 = vmatprep.subr.bf16.mxu0 0
    %1383 = vmatpush1.bf16.msra.mxu0 0
    %1384 = vmatprep.subr.bf16.mxu0 0
    %1385 = vmatpush1.bf16.msra.mxu0 0
    %1386 = vmatprep.subr.bf16.mxu0 0
    %1387 = vmatpush1.bf16.msra.mxu0 0
    %1388 = vmatprep.subr.bf16.mxu0 0
    %1389 = vmatpush1.bf16.msra.mxu0 0
    %1390 = vmatprep.subr.bf16.mxu0 0
    %1391 = vmatpush1.bf16.msra.mxu0 0
    %1392 = vmatprep.subr.bf16.mxu0 0
    %1393 = vmatpush1.bf16.msra.mxu0 0
    %1394 = vmatprep.subr.bf16.mxu0 0
    %1395 = vmatpush1.bf16.msra.mxu0 0
    %1396 = vmatprep.subr.bf16.mxu0 0
    %1397 = vmatpush1.bf16.msra.mxu0 0
    %1398 = vmatprep.subr.bf16.mxu0 0
    %1399 = vmatpush1.bf16.msra.mxu0 0
    %1400 = vmatprep.subr.bf16.mxu0 0
    %1401 = vmatpush1.bf16.msra.mxu0 0
    %1402 = vmatprep.subr.bf16.mxu0 0
    %1403 = vmatpush1.bf16.msra.mxu0 0
    %1404 = vmatprep.subr.bf16.mxu0 0
    %1405 = vmatpush1.bf16.msra.mxu0 0
    %1406 = vmatprep.subr.bf16.mxu0 0
    %1407 = vmatpush1.bf16.msra.mxu0 0
    %1408 = vmatprep.subr.bf16.mxu0 0
    %1409 = vmatpush1.bf16.msra.mxu0 0
    %1410 = vmatprep.mubr.bf16.mxu0 0
    %1411 = vmatmul.mubr.bf16.gmra.mrb[0].mxu0 %v1376
    %v1412 = vpop.f32.mrb[0].mxu0
    %v1413 = vadd.f32 0.0, %v1412
    %v1414 = vpop.f32.mrb[0].mxu0
    %v1415 = vpop.f32.mrb[0].mxu0
    %v1416 = vpop.f32.mrb[0].mxu0
    %1417 = vdwg.mxu0
    %v1418 = vadd.f32 %v1372, %v1413
    %v1419 = vxor.u32 %v1418, 2147483648
    %v1420 = vmul.f32 %v1419, 1.442695
    %v1421 = vpow.pop %v1420
    %v1422 = vadd.f32 %v1421, 1.0
    %v1423 = vrcp.pop %v1422
    %v1424 = vmul.f32 1.0, %v1423
    %v1425 = vtanh.pop %v1418
    %v1426 = vmul.f32 %v1424, %v1248
    %1428 = vrot.lane.b32.xlu0 %v1425, 32
    %v1429 = vpop.permute.xlu0 %1428
    %v1431 = vmul.f32 %v1424, %v1429
    %1433 = vrot.lane.b32.xlu0 %v1431, 32
    %v1434 = vpop.permute.xlu0 %1433
    %v1436 = vadd.f32 %v1426, %v1434
    %v1437 = vtanh.pop %v1436
    %1439 = vrot.lane.b32.xlu0 %v1437, 32
    %v1440 = vpop.permute.xlu0 %1439
    %v1442 = vmul.f32 %v1424, %v1440
    %v1443 = vpack.c.bf16 %v1442, %v1442
    %v1446 = vunpack.c.l.s4 1966171168
    %v1447 = vunpack.c.0.s8 %v1446
    %v1448 = vlaneseq
    %v1449 = vshrl.u32 %v1448, 7
    %v1450 = vsub.s32 %v1447, %v1449
    %v1451 = vrot.slane %v1443, %v1450
    %v1453 = vunpack.c.l.s4 1966171168
    %v1454 = vunpack.c.0.s8 %v1453
    %v1455 = vlaneseq
    %v1456 = vshrl.u32 %v1455, 7
    %v1457 = vsub.s32 %v1454, %v1456
    %v1458 = vrot.slane %v1451, %v1457
    %1459 = vrot.lane.b32.xlu0 %v1458, 64
    %v1460 = vpop.permute.xlu0 %1459
    %s1462 = scalar_lea.vmem %s4, 6
    %1463 = vst.msk [vmem:[%s1462] sm:$0x1] %vm312, %v1460
    %s1464 = scalar_lea.vmem [#allocation7], 1
    %v1465 = vld [vmem:[%s1464] sm:$0x1]
    %v1466 = vunpack.c.l.bf16 %v1465
    %1467 = vrot.lane.b32.xlu0 %v1349, 64
    %v1468 = vpop.permute.xlu0 %1467
    %v1470 = vsel %vm213, %v1468, 0
    %1472 = vmatprep.subr.bf16.mxu0 0
    %1473 = vmatpush1.bf16.msra.mxu0 %v326
    %1474 = vmatprep.subr.bf16.mxu0 0
    %1475 = vmatpush1.bf16.msra.mxu0 %v327
    %1476 = vmatprep.subr.bf16.mxu0 0
    %1477 = vmatpush1.bf16.msra.mxu0 0
    %1478 = vmatprep.subr.bf16.mxu0 0
    %1479 = vmatpush1.bf16.msra.mxu0 0
    %1480 = vmatprep.subr.bf16.mxu0 0
    %1481 = vmatpush1.bf16.msra.mxu0 0
    %1482 = vmatprep.subr.bf16.mxu0 0
    %1483 = vmatpush1.bf16.msra.mxu0 0
    %1484 = vmatprep.subr.bf16.mxu0 0
    %1485 = vmatpush1.bf16.msra.mxu0 0
    %1486 = vmatprep.subr.bf16.mxu0 0
    %1487 = vmatpush1.bf16.msra.mxu0 0
    %1488 = vmatprep.subr.bf16.mxu0 0
    %1489 = vmatpush1.bf16.msra.mxu0 0
    %1490 = vmatprep.subr.bf16.mxu0 0
    %1491 = vmatpush1.bf16.msra.mxu0 0
    %1492 = vmatprep.subr.bf16.mxu0 0
    %1493 = vmatpush1.bf16.msra.mxu0 0
    %1494 = vmatprep.subr.bf16.mxu0 0
    %1495 = vmatpush1.bf16.msra.mxu0 0
    %1496 = vmatprep.subr.bf16.mxu0 0
    %1497 = vmatpush1.bf16.msra.mxu0 0
    %1498 = vmatprep.subr.bf16.mxu0 0
    %1499 = vmatpush1.bf16.msra.mxu0 0
    %1500 = vmatprep.subr.bf16.mxu0 0
    %1501 = vmatpush1.bf16.msra.mxu0 0
    %1502 = vmatprep.subr.bf16.mxu0 0
    %1503 = vmatpush1.bf16.msra.mxu0 0
    %1504 = vmatprep.mubr.bf16.mxu0 0
    %1505 = vmatmul.mubr.bf16.gmra.mrb[0].mxu0 %v1470
    %v1506 = vpop.f32.mrb[0].mxu0
    %v1507 = vadd.f32 0.0, %v1506
    %v1508 = vpop.f32.mrb[0].mxu0
    %v1509 = vpop.f32.mrb[0].mxu0
    %v1510 = vpop.f32.mrb[0].mxu0
    %1511 = vdwg.mxu0
    %v1512 = vadd.f32 %v1466, %v1507
    %v1513 = vxor.u32 %v1512, 2147483648
    %v1514 = vmul.f32 %v1513, 1.442695
    %v1515 = vpow.pop %v1514
    %v1516 = vadd.f32 %v1515, 1.0
    %v1517 = vrcp.pop %v1516
    %v1518 = vmul.f32 1.0, %v1517
    %v1519 = vtanh.pop %v1512
    %v1520 = vmul.f32 %v1518, %v1342
    %1522 = vrot.lane.b32.xlu0 %v1519, 32
    %v1523 = vpop.permute.xlu0 %1522
    %v1525 = vmul.f32 %v1518, %v1523
    %1527 = vrot.lane.b32.xlu0 %v1525, 32
    %v1528 = vpop.permute.xlu0 %1527
    %v1530 = vadd.f32 %v1520, %v1528
    %v1531 = vtanh.pop %v1530
    %1533 = vrot.lane.b32.xlu0 %v1531, 32
    %v1534 = vpop.permute.xlu0 %1533
    %v1536 = vmul.f32 %v1518, %v1534
    %v1537 = vpack.c.bf16 %v1536, %v1536
    %v1540 = vunpack.c.l.s4 1966171168
    %v1541 = vunpack.c.0.s8 %v1540
    %v1542 = vlaneseq
    %v1543 = vshrl.u32 %v1542, 7
    %v1544 = vsub.s32 %v1541, %v1543
    %v1545 = vrot.slane %v1537, %v1544
    %v1547 = vunpack.c.l.s4 1966171168
    %v1548 = vunpack.c.0.s8 %v1547
    %v1549 = vlaneseq
    %v1550 = vshrl.u32 %v1549, 7
    %v1551 = vsub.s32 %v1548, %v1550
    %v1552 = vrot.slane %v1545, %v1551
    %1553 = vrot.lane.b32.xlu0 %v1552, 64
    %v1554 = vpop.permute.xlu0 %1553
    %s1556 = scalar_lea.vmem %s173, 1
    %1557 = vst.msk [vmem:[%s1556] sm:$0x1] %vm312, %v1554
    %s1558 = scalar_lea.vmem [#allocation6], 7
    %v1559 = vld [vmem:[%s1558] sm:$0x1]
    %v1560 = vunpack.c.l.bf16 %v1559
    %1561 = vrot.lane.b32.xlu0 %v1443, 64
    %v1562 = vpop.permute.xlu0 %1561
    %v1564 = vsel %vm213, %v1562, 0
    %1566 = vmatprep.subr.bf16.mxu0 0
    %1567 = vmatpush1.bf16.msra.mxu0 %v209
    %1568 = vmatprep.subr.bf16.mxu0 0
    %1569 = vmatpush1.bf16.msra.mxu0 %v210
    %1570 = vmatprep.subr.bf16.mxu0 0
    %1571 = vmatpush1.bf16.msra.mxu0 0
    %1572 = vmatprep.subr.bf16.mxu0 0
    %1573 = vmatpush1.bf16.msra.mxu0 0
    %1574 = vmatprep.subr.bf16.mxu0 0
    %1575 = vmatpush1.bf16.msra.mxu0 0
    %1576 = vmatprep.subr.bf16.mxu0 0
    %1577 = vmatpush1.bf16.msra.mxu0 0
    %1578 = vmatprep.subr.bf16.mxu0 0
    %1579 = vmatpush1.bf16.msra.mxu0 0
    %1580 = vmatprep.subr.bf16.mxu0 0
    %1581 = vmatpush1.bf16.msra.mxu0 0
    %1582 = vmatprep.subr.bf16.mxu0 0
    %1583 = vmatpush1.bf16.msra.mxu0 0
    %1584 = vmatprep.subr.bf16.mxu0 0
    %1585 = vmatpush1.bf16.msra.mxu0 0
    %1586 = vmatprep.subr.bf16.mxu0 0
    %1587 = vmatpush1.bf16.msra.mxu0 0
    %1588 = vmatprep.subr.bf16.mxu0 0
    %1589 = vmatpush1.bf16.msra.mxu0 0
    %1590 = vmatprep.subr.bf16.mxu0 0
    %1591 = vmatpush1.bf16.msra.mxu0 0
    %1592 = vmatprep.subr.bf16.mxu0 0
    %1593 = vmatpush1.bf16.msra.mxu0 0
    %1594 = vmatprep.subr.bf16.mxu0 0
    %1595 = vmatpush1.bf16.msra.mxu0 0
    %1596 = vmatprep.subr.bf16.mxu0 0
    %1597 = vmatpush1.bf16.msra.mxu0 0
    %1598 = vmatprep.mubr.bf16.mxu0 0
    %1599 = vmatmul.mubr.bf16.gmra.mrb[0].mxu0 %v1564
    %v1600 = vpop.f32.mrb[0].mxu0
    %v1601 = vadd.f32 0.0, %v1600
    %v1602 = vpop.f32.mrb[0].mxu0
    %v1603 = vpop.f32.mrb[0].mxu0
    %v1604 = vpop.f32.mrb[0].mxu0
    %1605 = vdwg.mxu0
    %v1606 = vadd.f32 %v1560, %v1601
    %v1607 = vxor.u32 %v1606, 2147483648
    %v1608 = vmul.f32 %v1607, 1.442695
    %v1609 = vpow.pop %v1608
    %v1610 = vadd.f32 %v1609, 1.0
    %v1611 = vrcp.pop %v1610
    %v1612 = vmul.f32 1.0, %v1611
    %v1613 = vtanh.pop %v1606
    %v1614 = vmul.f32 %v1612, %v1436
    %1616 = vrot.lane.b32.xlu0 %v1613, 32
    %v1617 = vpop.permute.xlu0 %1616
    %v1619 = vmul.f32 %v1612, %v1617
    %1621 = vrot.lane.b32.xlu0 %v1619, 32
    %v1622 = vpop.permute.xlu0 %1621
    %v1624 = vadd.f32 %v1614, %v1622
    %v1625 = vtanh.pop %v1624
    %1627 = vrot.lane.b32.xlu0 %v1625, 32
    %v1628 = vpop.permute.xlu0 %1627
    %v1630 = vmul.f32 %v1612, %v1628
    %v1631 = vpack.c.bf16 %v1630, %v1630
    %v1634 = vunpack.c.l.s4 1966171168
    %v1635 = vunpack.c.0.s8 %v1634
    %v1636 = vlaneseq
    %v1637 = vshrl.u32 %v1636, 7
    %v1638 = vsub.s32 %v1635, %v1637
    %v1639 = vrot.slane %v1631, %v1638
    %v1641 = vunpack.c.l.s4 1966171168
    %v1642 = vunpack.c.0.s8 %v1641
    %v1643 = vlaneseq
    %v1644 = vshrl.u32 %v1643, 7
    %v1645 = vsub.s32 %v1642, %v1644
    %v1646 = vrot.slane %v1639, %v1645
    %1647 = vrot.lane.b32.xlu0 %v1646, 64
    %v1648 = vpop.permute.xlu0 %1647
    %s1650 = scalar_lea.vmem %s4, 7
    %1651 = vst.msk [vmem:[%s1650] sm:$0x1] %vm312, %v1648
    %v1652 = vld [vmem:[#allocation7] sm:$0x1]
    %v1653 = vunpack.c.l.bf16 %v1652
    %1654 = vrot.lane.b32.xlu0 %v1537, 64
    %v1655 = vpop.permute.xlu0 %1654
    %v1657 = vsel %vm213, %v1655, 0
    %1659 = vmatprep.subr.bf16.mxu0 0
    %1660 = vmatpush1.bf16.msra.mxu0 %v326
    %1661 = vmatprep.subr.bf16.mxu0 0
    %1662 = vmatpush1.bf16.msra.mxu0 %v327
    %1663 = vmatprep.subr.bf16.mxu0 0
    %1664 = vmatpush1.bf16.msra.mxu0 0
    %1665 = vmatprep.subr.bf16.mxu0 0
    %1666 = vmatpush1.bf16.msra.mxu0 0
    %1667 = vmatprep.subr.bf16.mxu0 0
    %1668 = vmatpush1.bf16.msra.mxu0 0
    %1669 = vmatprep.subr.bf16.mxu0 0
    %1670 = vmatpush1.bf16.msra.mxu0 0
    %1671 = vmatprep.subr.bf16.mxu0 0
    %1672 = vmatpush1.bf16.msra.mxu0 0
    %1673 = vmatprep.subr.bf16.mxu0 0
    %1674 = vmatpush1.bf16.msra.mxu0 0
    %1675 = vmatprep.subr.bf16.mxu0 0
    %1676 = vmatpush1.bf16.msra.mxu0 0
    %1677 = vmatprep.subr.bf16.mxu0 0
    %1678 = vmatpush1.bf16.msra.mxu0 0
    %1679 = vmatprep.subr.bf16.mxu0 0
    %1680 = vmatpush1.bf16.msra.mxu0 0
    %1681 = vmatprep.subr.bf16.mxu0 0
    %1682 = vmatpush1.bf16.msra.mxu0 0
    %1683 = vmatprep.subr.bf16.mxu0 0
    %1684 = vmatpush1.bf16.msra.mxu0 0
    %1685 = vmatprep.subr.bf16.mxu0 0
    %1686 = vmatpush1.bf16.msra.mxu0 0
    %1687 = vmatprep.subr.bf16.mxu0 0
    %1688 = vmatpush1.bf16.msra.mxu0 0
    %1689 = vmatprep.subr.bf16.mxu0 0
    %1690 = vmatpush1.bf16.msra.mxu0 0
    %1691 = vmatprep.mubr.bf16.mxu0 0
    %1692 = vmatmul.mubr.bf16.gmra.mrb[0].mxu0 %v1657
    %v1693 = vpop.f32.mrb[0].mxu0
    %v1694 = vadd.f32 0.0, %v1693
    %v1695 = vpop.f32.mrb[0].mxu0
    %v1696 = vpop.f32.mrb[0].mxu0
    %v1697 = vpop.f32.mrb[0].mxu0
    %1698 = vdwg.mxu0
    %v1699 = vadd.f32 %v1653, %v1694
    %v1700 = vxor.u32 %v1699, 2147483648
    %v1701 = vmul.f32 %v1700, 1.442695
    %v1702 = vpow.pop %v1701
    %v1703 = vadd.f32 %v1702, 1.0
    %v1704 = vrcp.pop %v1703
    %v1705 = vmul.f32 1.0, %v1704
    %v1706 = vtanh.pop %v1699
    %v1707 = vmul.f32 %v1705, %v1530
    %1709 = vrot.lane.b32.xlu0 %v1706, 32
    %v1710 = vpop.permute.xlu0 %1709
    %v1712 = vmul.f32 %v1705, %v1710
    %1714 = vrot.lane.b32.xlu0 %v1712, 32
    %v1715 = vpop.permute.xlu0 %1714
    %v1717 = vadd.f32 %v1707, %v1715
    %v1718 = vtanh.pop %v1717
    %1720 = vrot.lane.b32.xlu0 %v1718, 32
    %v1721 = vpop.permute.xlu0 %1720
    %v1723 = vmul.f32 %v1705, %v1721
    %v1724 = vpack.c.bf16 %v1723, %v1723
    %v1727 = vunpack.c.l.s4 1966171168
    %v1728 = vunpack.c.0.s8 %v1727
    %v1729 = vlaneseq
    %v1730 = vshrl.u32 %v1729, 7
    %v1731 = vsub.s32 %v1728, %v1730
    %v1732 = vrot.slane %v1724, %v1731
    %v1734 = vunpack.c.l.s4 1966171168
    %v1735 = vunpack.c.0.s8 %v1734
    %v1736 = vlaneseq
    %v1737 = vshrl.u32 %v1736, 7
    %v1738 = vsub.s32 %v1735, %v1737
    %v1739 = vrot.slane %v1732, %v1738
    %1740 = vrot.lane.b32.xlu0 %v1739, 64
    %v1741 = vpop.permute.xlu0 %1740
    %1743 = vst.msk [vmem:[%s173] sm:$0x1] %vm312, %v1741
    %v1746 = vunpack.c.l.s4 1983009808
    %v1747 = vunpack.c.0.s8 %v1746
    %v1748 = vlaneseq
    %v1749 = vshrl.u32 %v1748, 7
    %v1750 = vsub.s32 %v1747, %v1749
    %v1751 = vrot.slane %v1630, %v1750
    %1752 = vrot.lane.b32.xlu0 %v1751, 64
    %v1753 = vpop.permute.xlu0 %1752
    %vm1755 = vcmask 254976
    %1756 = vst.msk [vmem:[#allocation2] sm:$0x3] %vm1755, %v1753
    %v1759 = vunpack.c.l.s4 1983009808
    %v1760 = vunpack.c.0.s8 %v1759
    %v1761 = vlaneseq
    %v1762 = vshrl.u32 %v1761, 7
    %v1763 = vsub.s32 %v1760, %v1762
    %v1764 = vrot.slane %v1624, %v1763
    %1765 = vrot.lane.b32.xlu0 %v1764, 96
    %v1766 = vpop.permute.xlu0 %1765
    %1768 = vst.msk [vmem:[#allocation3] sm:$0x3] %vm1755, %v1766
    %v1771 = vunpack.c.l.s4 1983009808
    %v1772 = vunpack.c.0.s8 %v1771
    %v1773 = vlaneseq
    %v1774 = vshrl.u32 %v1773, 7
    %v1775 = vsub.s32 %v1772, %v1774
    %v1776 = vrot.slane %v1723, %v1775
    %1777 = vrot.lane.b32.xlu0 %v1776, 64
    %v1778 = vpop.permute.xlu0 %1777
    %1780 = vst.msk [vmem:[#allocation4] sm:$0x3] %vm1755, %v1778
    %v1783 = vunpack.c.l.s4 1983009808
    %v1784 = vunpack.c.0.s8 %v1783
    %v1785 = vlaneseq
    %v1786 = vshrl.u32 %v1785, 7
    %v1787 = vsub.s32 %v1784, %v1786
    %v1788 = vrot.slane %v1717, %v1787
    %1789 = vrot.lane.b32.xlu0 %v1788, 96
    %v1790 = vpop.permute.xlu0 %1789
    %1792 = vst.msk [vmem:[#allocation5] sm:$0x3] %vm1755, %v1790
    %s1793 = ssub.s32 0, 0
    %s1794 = smul.u32 8, %s1793
    %p1795 = scmp.lt.s32.totalorder %s1794, 7
    %s1796 = scalar_select %p1795, %s1794, 7
    %s1797 = scalar_lea.vmem %s5, %s1796
    // Predicated region
    $region104: #{music_lstm_forward.7} parent=1 // pred_check
      _
    $region105: #{music_lstm_forward.7} parent=1 // pred_check_branch
      %1799 = sbr.rel (0) target = $region107
    $region106: #{music_lstm_forward.7} parent=1 // pred_region
      _
    $region107: #{music_lstm_forward.7} parent=1 // pred_fallthru
      _
    // Predicated region
    $region108: #{music_lstm_forward.7} parent=1 // pred_check
      _
    $region109: #{music_lstm_forward.7} parent=1 // pred_check_branch
      %1801 = sbr.rel (0) target = $region111
    $region110: #{music_lstm_forward.7} parent=1 // pred_region
      %s1802 = ssub.s32 0, 0
      %s1803 = smul.u32 8, %s1802
    $region111: #{music_lstm_forward.7} parent=1 // pred_fallthru
      _
    // Predicated region
    $region112: #{music_lstm_forward.7} parent=1 // pred_check
      _
    $region113: #{music_lstm_forward.7} parent=1 // pred_check_branch
      %1805 = sbr.rel (0) target = $region115
    $region114: #{music_lstm_forward.7} parent=1 // pred_region
      _
    $region115: #{music_lstm_forward.7} parent=1 // pred_fallthru
      _
    // Predicated region
    $region116: #{music_lstm_forward.7} parent=1 // pred_check
      _
    $region117: #{music_lstm_forward.7} parent=1 // pred_check_branch
      %1807 = sbr.rel (0) target = $region119
    $region118: #{music_lstm_forward.7} parent=1 // pred_region
      %s1808 = ssub.s32 0, 0
      %s1809 = smul.u32 8, %s1808
      %p1810 = scmp.lt.s32.totalorder %s1809, 7
      %s1811 = scalar_select %p1810, %s1809, 7
      %s1812 = scalar_lea.vmem %s5, %s1811
    $region119: #{music_lstm_forward.7} parent=1 // pred_fallthru
      _

</llo_original>
